<compile_context>
chip_gen: v6e
topology: v6e:2x2x1
jax: 0.10.0
libtpu: 0.0.40
codegen_flags: <defaults>
</compile_context>

<pallas_src>
import functools

import numpy as np
import jax
import jax.numpy as jnp
from jax.experimental import pallas as pl
from jax.experimental.pallas import tpu as pltpu


def _pair(v):
    if isinstance(v, (tuple, list)):
        assert len(v) == 2
        return int(v[0]), int(v[1])
    return int(v), int(v)


def _round_up(x, m):
    return ((x + m - 1) // m) * m


def _phase_kernel_taps(k, s, p):
    """Per layer phase r in [0, s): ascending list of contributing kernel taps kk."""
    out = []
    for r in range(s):
        t = (r + p) % s
        out.append([m * s + t for m in range((k - t + s - 1) // s)] if t < k else [])
    return out


def _dim_geometry(prev_t, prev_h, k, s, p, op):
    """Composed-phase geometry along one spatial dim.

    prev_t / prev_h: cumulative phase modulus and valid extent of the input.
    Returns (h, t, hs, phases); phases[R] = dict(
        r     = layer phase,
        taps  = [(prev_composed_phase, slab_offset), ...]  (same m-order as
                 _phase_kernel_taps(k, s, p)[r]),
        valid = number of exact (non-overcomputed) slab rows of phase R).
    """
    h = (prev_h - 1) * s - 2 * p + k + op
    t = prev_t * s
    hs = -(-h // t)
    phases = []
    for R in range(t):
        r = R % s
        tt = (r + p) % s
        c = (r + p) // s
        q = R // s
        taps = []
        m = 0
        while m * s + tt < k:
            d = q + c - m                      # input index = prev_t*(u) + d
            taps.append((d % prev_t, d // prev_t))
            m += 1
        valid = -(-(h - R) // t) if R < h else 0
        phases.append(dict(r=r, taps=taps, valid=max(0, min(hs, valid))))
    return h, t, hs, phases


class _ConvTLayerParams:
    """Per layer-phase 2-D weights + bias for one ConvTranspose2d."""

    def __init__(self, w, b, ksize, stride, pad, opad, cin_eff):
        # w: [Cin, Cout, KH, KW] (PyTorch ConvTranspose2d layout), b: [Cout].
        self.w, self.b = w, b                        # originals (reference impl)
        self.ksize, self.stride = _pair(ksize), _pair(stride)
        self.pad, self.opad = _pair(pad), _pair(opad)
        cin, cout, kh, kw = (int(d) for d in w.shape)
        self.cin, self.cout = cin, cout
        self.cin_eff = cin_eff                       # channels of incoming slabs
        self.cout_p = _round_up(cout, 8)             # sublane-dense out channels

        (sy, sx), (py, px) = self.stride, self.pad
        w_full = jnp.zeros((cin_eff, self.cout_p, kh, kw), jnp.float32)
        w_full = w_full.at[:cin, :cout].set(w.astype(jnp.float32))
        taps_y = _phase_kernel_taps(kh, sy, py)
        taps_x = _phase_kernel_taps(kw, sx, px)
        w_list = []
        for ry in range(sy):
            for rx in range(sx):
                cols = [w_full[:, :, ky, kx]                   # [cin_eff, cout_p]
                        for ky in taps_y[ry] for kx in taps_x[rx]]
                if cols:
                    wp = jnp.concatenate(cols, axis=0).T       # [cout_p, ntaps*cin]
                else:
                    wp = jnp.zeros((self.cout_p, 0), jnp.float32)
                w_list.append(wp)
        self.kt_max = max(1, max(wp.shape[1] for wp in w_list))
        self.w_phase = jnp.stack(
            [jnp.pad(wp, ((0, 0), (0, self.kt_max - wp.shape[1])))
             for wp in w_list], axis=0)              # [sy*sx, cout_p, kt_max]
        self.bias_col = jnp.zeros((self.cout_p, 1), jnp.float32).at[:cout, 0].set(
            b.astype(jnp.float32))


# ------------------------------ Pallas kernel --------------------------------
def _pad_lanes(x, left, right):
    """Zero-pad a flat [C, N] slab along the lane axis."""
    parts = []
    if left:
        parts.append(jnp.zeros((x.shape[0], left), x.dtype))
    parts.append(x)
    if right:
        parts.append(jnp.zeros((x.shape[0], right), x.dtype))
    return jnp.concatenate(parts, axis=1) if len(parts) > 1 else x


def _fused_convt_kernel(x_ref, masks_ref, *rest, meta, sigmoid_output):
    """Runs the full ConvTranspose2d stack for one batch element.

    x_ref:     [1, Cin_p, N]    flat input slab (row stride WS, zero padded)
    masks_ref: [n_masks, N]     precomputed 0/1 boundary masks
    rest:      (w1, b1, w2, b2, ..., out_ref)
       w_l:    [sy*sx, Cout_p, Kt_max] per layer-phase 2-D weights
       b_l:    [Cout_p, 1]
       out:    [1, T_y*T_x, Cout_p, N] composed-phase outputs of the last layer
    """
    out_ref = rest[-1]
    wb_refs = rest[:-1]
    n_layers = len(meta)
    nmax = x_ref.shape[-1]
    masks = masks_ref[...]

    # Composed-phase slabs of the current layer input; layer 0 = the input.
    slabs = {(0, 0): x_ref[0]}
    for li, lm in enumerate(meta):
        w_all = wb_refs[2 * li][...]            # [n_layer_phases, cout_p, kt_max]
        bias = wb_refs[2 * li + 1][...]         # [cout_p, 1]
        last = li == n_layers - 1
        pad_l, pad_r = lm['pad_l'], lm['pad_r']
        padded = {k: _pad_lanes(v, pad_l, pad_r) for k, v in slabs.items()}
        win_cache = {}
        new_slabs = {}
        for ph in lm['phases']:
            pieces = []
            for (src, shift, mid) in ph['taps']:
                key = (src, shift, mid)
                if key not in win_cache:
                    lo = pad_l + shift                       # static lane offset
                    win = padded[src][:, lo:lo + nmax]
                    win_cache[key] = win * masks[mid:mid + 1, :]
                pieces.append(win_cache[key])
            if pieces:
                pat = (jnp.concatenate(pieces, axis=0)
                       if len(pieces) > 1 else pieces[0])    # [kt, N] im2col patch
                wmat = w_all[ph['r_idx']][:, :pat.shape[0]]  # [cout_p, kt]
                acc = jax.lax.dot_general(                   # one MXU matmul/phase
                    wmat, pat,
                    dimension_numbers=(((1,), (0,)), ((), ())),
                    preferred_element_type=jnp.float32)
            else:                                            # stride>kernel phase
                acc = jnp.zeros((bias.shape[0], nmax), jnp.float32)
            acc = acc + bias
            if not last:
                acc = jnp.maximum(acc, 0.0)                  # ReLU between layers
            elif sigmoid_output:
                acc = jax.nn.sigmoid(acc)
            if last:
                out_ref[0, ph['out_idx']] = acc.astype(out_ref.dtype)
            else:
                new_slabs[ph['phase']] = acc
        slabs = new_slabs


# --------------------------- fused forward (NCHW) ----------------------------
def convtranspose_stack_forward(x, layers, sigmoid_output=False):
    """Fused forward of a ConvTranspose2d(+ReLU) stack on NCHW data."""
    B, C0, H0, W0 = (int(d) for d in x.shape)
    assert C0 == layers[0].cin

    # ---- static composed-phase geometry (pure Python, trace time) ----------
    dims = []
    pty, phy = 1, H0
    ptx, pwx = 1, W0
    hs_all, ws_all = [H0], [W0]
    for layer in layers:
        (kh, kw), (sy, sx) = layer.ksize, layer.stride
        (py, px), (opy, opx) = layer.pad, layer.opad
        hy, ty, hsy, py_ph = _dim_geometry(pty, phy, kh, sy, py, opy)
        wx, tx, wsx, px_ph = _dim_geometry(ptx, pwx, kw, sx, px, opx)
        dims.append((hy, ty, hsy, py_ph, wx, tx, wsx, px_ph))
        hs_all.append(hsy)
        ws_all.append(wsx)
        pty, phy, ptx, pwx = ty, hy, tx, wx

    hsmax, ws = max(hs_all), max(ws_all)     # common slab grid / row stride
    nrow = hsmax * ws
    nmax = _round_up(max(nrow, 128), 128)    # lane-dense flat slab length

    # ---- per-tap boundary masks (deduplicated, precomputed with numpy) -----
    p_idx = np.arange(nmax)
    row_i = p_idx // ws
    col_i = p_idx % ws
    in_grid = p_idx < nrow
    mask_rows, mask_ids = [], {}

    def mask_id(bounds):
        if bounds not in mask_ids:
            rlo, rhi, clo, chi = bounds
            ok = (in_grid & (row_i >= rlo) & (row_i < rhi)
                  & (col_i >= clo) & (col_i < chi))
            mask_ids[bounds] = len(mask_rows)
            mask_rows.append(ok.astype(np.float32))
        return mask_ids[bounds]

    metas = []
    valid_y = {0: H0}
    valid_x = {0: W0}
    for layer, (hy, ty, hsy, py_ph, wx, tx, wsx, px_ph) in zip(layers, dims):
        _, sx = layer.stride
        shifts = [0]
        phases = []
        for Ry in range(ty):
            iy = py_ph[Ry]
            for Rx in range(tx):
                ix = px_ph[Rx]
                taps = []
                for (rpy, offy) in iy['taps']:
                    for (rpx, offx) in ix['taps']:
                        shift = offy * ws + offx
                        shifts.append(shift)
                        bounds = (-offy, valid_y[rpy] - offy,
                                  -offx, valid_x[rpx] - offx)
                        taps.append(((rpy, rpx), shift, mask_id(bounds)))
                phases.append(dict(phase=(Ry, Rx),
                                   r_idx=iy['r'] * sx + ix['r'],
                                   out_idx=Ry * tx + Rx,
                                   taps=taps))
        metas.append(dict(phases=phases,
                          pad_l=max(0, -min(shifts)),
                          pad_r=max(0, max(shifts))))
        valid_y = {R: py_ph[R]['valid'] for R in range(ty)}
        valid_x = {R: px_ph[R]['valid'] for R in range(tx)}

    if not mask_rows:
        mask_rows.append(np.zeros(nmax, np.float32))
    masks = jnp.asarray(np.stack(mask_rows, axis=0))

    # ---- flat, lane-dense input slab (row stride ws, Cin padded to 8) ------
    cin_p = layers[0].cin_eff
    xp = x.astype(jnp.float32)
    if cin_p > C0 or hsmax > H0 or ws > W0:
        xp = jnp.pad(xp, ((0, 0), (0, cin_p - C0),
                          (0, hsmax - H0), (0, ws - W0)))
    x_flat = xp.reshape(B, cin_p, nrow)
    if nmax > nrow:
        x_flat = jnp.pad(x_flat, ((0, 0), (0, 0), (0, nmax - nrow)))

    # ---- single fused pallas_call over the batch ----------------------------
    h_out, t_y, _, _, w_out, t_x, _, _ = dims[-1]
    n_out_ph = t_y * t_x
    cout_p = layers[-1].cout_p
    cout = layers[-1].cout

    wb_args, wb_specs = [], []
    for layer in layers:
        wb_args += [layer.w_phase, layer.bias_col]
        wb_specs += [pl.BlockSpec(layer.w_phase.shape, lambda b: (0, 0, 0)),
                     pl.BlockSpec(layer.bias_col.shape, lambda b: (0, 0))]

    flops = 0
    for layer, lm in zip(layers, metas):
        for ph in lm['phases']:
            flops += 2 * layer.cout_p * layer.cin_eff * len(ph['taps']) * nmax
    flops *= B
    bytes_accessed = (x_flat.size + masks.size + sum(a.size for a in wb_args)
                      + B * n_out_ph * cout_p * nmax) * 4
    transcendentals = B * n_out_ph * cout_p * nmax if sigmoid_output else 0

    kernel = functools.partial(_fused_convt_kernel, meta=tuple(metas),
                               sigmoid_output=sigmoid_output)
    out = pl.pallas_call(
        kernel,
        out_shape=jax.ShapeDtypeStruct((B, n_out_ph, cout_p, nmax), jnp.float32),
        grid_spec=pltpu.PrefetchScalarGridSpec(
            num_scalar_prefetch=0,
            grid=(B,),                                   # 2 steps -> both v7x TCs
            in_specs=[pl.BlockSpec((1, cin_p, nmax), lambda b: (b, 0, 0)),
                      pl.BlockSpec(masks.shape, lambda b: (0, 0))] + wb_specs,
            out_specs=pl.BlockSpec((1, n_out_ph, cout_p, nmax),
                                   lambda b: (b, 0, 0, 0)),
        ),
        compiler_params=pltpu.CompilerParams(
            dimension_semantics=("parallel",),
            vmem_limit_bytes=32 * 1024 * 1024),
        cost_estimate=pl.CostEstimate(flops=flops,
                                      transcendentals=transcendentals,
                                      bytes_accessed=bytes_accessed),
    )(x_flat, masks, *wb_args)

    # ---- one pixel-shuffle of the composed phases (single XLA op) ----------
    y = out[:, :, :cout, :nrow].reshape(B, t_y, t_x, cout, hsmax, ws)
    y = jnp.transpose(y, (0, 3, 4, 1, 5, 2)).reshape(
        B, cout, hsmax * t_y, ws * t_x)
    return y[:, :, :h_out, :w_out]


# ------------------------------- model ---------------------------------------
class ConvTranspose2dModelPallas:
    """JAX/Pallas port of rlpyt's ConvTranspose2dModel (nonlinearity=ReLU)."""

    def __init__(self, in_channels, channels, kernel_sizes, strides,
                 paddings=None, output_paddings=None, sigmoid_output=False,
                 key=None):
        n = len(channels)
        if paddings is None:
            paddings = [0] * n
        if output_paddings is None:
            output_paddings = [0] * n
        assert len(channels) == len(kernel_sizes) == len(strides) \
            == len(paddings) == len(output_paddings)
        self.sigmoid_output = sigmoid_output
        in_chs = [in_channels] + list(channels[:-1])

        # Deterministic PyTorch-style uniform(+-1/sqrt(fan_in)) init.
        key = jax.random.PRNGKey(0) if key is None else key
        self.layers = []
        cin_eff = _round_up(in_channels, 8)    # incoming slab channels (padded)
        for ic, oc, k, s, p, op in zip(in_chs, channels, kernel_sizes, strides,
                                       paddings, output_paddings):
            key, wk, bk = jax.random.split(key, 3)
            kh, kw = _pair(k)
            bound = 1.0 / float((ic * kh * kw) ** 0.5)
            w = jax.random.uniform(wk, (ic, oc, kh, kw), jnp.float32,
                                   -bound, bound)
            b = jax.random.uniform(bk, (oc,), jnp.float32, -bound, bound)
            layer = _ConvTLayerParams(w, b, k, s, p, op, cin_eff=cin_eff)
            self.layers.append(layer)
            cin_eff = layer.cout_p

    def __call__(self, x_nchw):
        """Assumes shape is already [B, C, H, W] (PyTorch convention)."""
        return convtranspose_stack_forward(x_nchw, self.layers,
                                           self.sigmoid_output)


# ---------------------------- pure-JAX reference -----------------------------
def _ref_convt_layer(x_nchw, w_t, b, stride, pad, opad):
    kh, kw = int(w_t.shape[2]), int(w_t.shape[3])
    (sy, sx), (py, px), (opy, opx) = _pair(stride), _pair(pad), _pair(opad)
    w_conv = jnp.transpose(w_t[:, :, ::-1, ::-1], (1, 0, 2, 3))   # OIHW
    y = jax.lax.conv_general_dilated(
        x_nchw, w_conv, window_strides=(1, 1),
        padding=[(kh - 1 - py, kh - 1 - py + opy),
                 (kw - 1 - px, kw - 1 - px + opx)],
        lhs_dilation=(sy, sx),
        dimension_numbers=('NCHW', 'OIHW', 'NCHW'),
        precision=jax.lax.Precision.HIGHEST)
    return y + b[None, :, None, None]


def _ref_model(model, x_nchw):
    x = x_nchw
    n_layers = len(model.layers)
    for i, layer in enumerate(model.layers):
        x = _ref_convt_layer(x, layer.w, layer.b, layer.stride, layer.pad,
                             layer.opad)
        if i < n_layers - 1:
            x = jnp.maximum(x, 0.0)
        elif model.sigmoid_output:
            x = jax.nn.sigmoid(x)
    return x


if __name__ == "__main__":
    key = jax.random.PRNGKey(0)
    x = jax.random.normal(key, (2, 4, 16, 16), jnp.float32)   # [B, C, H, W]

    model = ConvTranspose2dModelPallas(
        in_channels=4,
        channels=[8, 4],
        kernel_sizes=[4, 4],
        strides=[2, 2],
        paddings=[1, 1],
        output_paddings=[0, 0],
        sigmoid_output=False,
        key=jax.random.PRNGKey(1),
    )

    fwd = jax.jit(lambda inp: model(inp))
    out = jax.block_until_ready(fwd(x))
    assert out.shape == (2, 4, 64, 64), out.shape

    ref = jax.block_until_ready(_ref_model(model, x))
    max_err = float(jnp.max(jnp.abs(out - ref)))
    # Tightened 100x vs v2 (1e-2) so tap/phase indexing regressions can't hide;
    # small margin left only for MXU f32 multi-pass rounding.
    assert jnp.allclose(out, ref, atol=1e-4, rtol=1e-4), max_err

    print("KERNEL_OK")
</pallas_src>

<mosaic_0001>
module attributes {stable_mosaic.version = 11 : i64} {
  func.func @_fused_convt_kernel(%arg0: i32, %arg1: memref<1x8x256xf32, #tpu.memory_space<vmem>>, %arg2: memref<9x256xf32, #tpu.memory_space<vmem>>, %arg3: memref<4x8x32xf32, #tpu.memory_space<vmem>>, %arg4: memref<8x1xf32, #tpu.memory_space<vmem>>, %arg5: memref<4x8x32xf32, #tpu.memory_space<vmem>>, %arg6: memref<8x1xf32, #tpu.memory_space<vmem>>, %arg7: memref<1x16x8x256xf32, #tpu.memory_space<vmem>>) attributes {dimension_semantics = [#tpu.dimension_semantics<parallel>], iteration_bounds = array<i64: 2>, scalar_prefetch = 0 : i64, scratch_operands = 0 : i64, tpu.core_type = #tpu.core_type<tc>, window_params = [{transform_indices = @transform_0, window_bounds = array<i64: 1, 8, 256>}, {pipeline_mode = #tpu.pipeline_mode<synchronous>, transform_indices = @transform_1, window_bounds = array<i64: 9, 256>}, {pipeline_mode = #tpu.pipeline_mode<synchronous>, transform_indices = @transform_2, window_bounds = array<i64: 4, 8, 32>}, {pipeline_mode = #tpu.pipeline_mode<synchronous>, transform_indices = @transform_3, window_bounds = array<i64: 8, 1>}, {pipeline_mode = #tpu.pipeline_mode<synchronous>, transform_indices = @transform_4, window_bounds = array<i64: 4, 8, 32>}, {pipeline_mode = #tpu.pipeline_mode<synchronous>, transform_indices = @transform_5, window_bounds = array<i64: 8, 1>}, {transform_indices = @transform_6, window_bounds = array<i64: 1, 16, 8, 256>}]} {
    %c0 = arith.constant 0 : index
    %c0_0 = arith.constant 0 : index
    %0 = vector.load %arg2[%c0, %c0_0] : memref<9x256xf32, #tpu.memory_space<vmem>>, vector<9x256xf32>
    %c0_1 = arith.constant 0 : index
    %c0_2 = arith.constant 0 : index
    %c0_3 = arith.constant 0 : index
    %1 = vector.load %arg1[%c0_1, %c0_2, %c0_3] : memref<1x8x256xf32, #tpu.memory_space<vmem>>, vector<1x8x256xf32>
    %2 = vector.shape_cast %1 : vector<1x8x256xf32> to vector<8x256xf32>
    %c0_4 = arith.constant 0 : index
    %c0_5 = arith.constant 0 : index
    %c0_6 = arith.constant 0 : index
    %3 = vector.load %arg3[%c0_4, %c0_5, %c0_6] : memref<4x8x32xf32, #tpu.memory_space<vmem>>, vector<4x8x32xf32>
    %c0_7 = arith.constant 0 : index
    %c0_8 = arith.constant 0 : index
    %4 = vector.load %arg4[%c0_7, %c0_8] : memref<8x1xf32, #tpu.memory_space<vmem>>, vector<8x1xf32>
    %cst = arith.constant 0.000000e+00 : f32
    %5 = vector.broadcast %cst : f32 to vector<8x17xf32>
    %cst_9 = arith.constant 0.000000e+00 : f32
    %6 = vector.broadcast %cst_9 : f32 to vector<8x17xf32>
    %7 = tpu.concatenate %5, %2, %6 in 1 : vector<8x17xf32>, vector<8x256xf32>, vector<8x17xf32> -> vector<8x290xf32>
    %8 = vector.extract_strided_slice %7 {offsets = [0, 17], sizes = [8, 256], strides = [1, 1]} : vector<8x290xf32> to vector<8x256xf32>
    %9 = vector.extract_strided_slice %0 {offsets = [0, 0], sizes = [1, 256], strides = [1, 1]} : vector<9x256xf32> to vector<1x256xf32>
    %10 = vector.broadcast %9 : vector<1x256xf32> to vector<8x256xf32>
    %11 = arith.mulf %8, %10 : vector<8x256xf32>
    %12 = vector.extract_strided_slice %7 {offsets = [0, 16], sizes = [8, 256], strides = [1, 1]} : vector<8x290xf32> to vector<8x256xf32>
    %13 = vector.extract_strided_slice %0 {offsets = [1, 0], sizes = [1, 256], strides = [1, 1]} : vector<9x256xf32> to vector<1x256xf32>
    %14 = vector.broadcast %13 : vector<1x256xf32> to vector<8x256xf32>
    %15 = arith.mulf %12, %14 : vector<8x256xf32>
    %16 = vector.extract_strided_slice %7 {offsets = [0, 1], sizes = [8, 256], strides = [1, 1]} : vector<8x290xf32> to vector<8x256xf32>
    %17 = vector.extract_strided_slice %0 {offsets = [2, 0], sizes = [1, 256], strides = [1, 1]} : vector<9x256xf32> to vector<1x256xf32>
    %18 = vector.broadcast %17 : vector<1x256xf32> to vector<8x256xf32>
    %19 = arith.mulf %16, %18 : vector<8x256xf32>
    %20 = vector.extract_strided_slice %7 {offsets = [0, 0], sizes = [8, 256], strides = [1, 1]} : vector<8x290xf32> to vector<8x256xf32>
    %21 = vector.extract_strided_slice %0 {offsets = [3, 0], sizes = [1, 256], strides = [1, 1]} : vector<9x256xf32> to vector<1x256xf32>
    %22 = vector.broadcast %21 : vector<1x256xf32> to vector<8x256xf32>
    %23 = arith.mulf %20, %22 : vector<8x256xf32>
    %24 = tpu.concatenate %11, %15, %19, %23 in 0 : vector<8x256xf32>, vector<8x256xf32>, vector<8x256xf32>, vector<8x256xf32> -> vector<32x256xf32>
    %25 = vector.extract_strided_slice %3 {offsets = [0, 0, 0], sizes = [1, 8, 32], strides = [1, 1, 1]} : vector<4x8x32xf32> to vector<1x8x32xf32>
    %26 = vector.shape_cast %25 : vector<1x8x32xf32> to vector<8x32xf32>
    %cst_10 = arith.constant dense<0.000000e+00> : vector<8x256xf32>
    %27 = tpu.matmul %26, %24, %cst_10 {dimension_numbers = #tpu.dot_dimension_numbers<[1], [0], [0], [1], [0, 0, 1, 1], [], []>} : vector<8x32xf32>, vector<32x256xf32>, vector<8x256xf32> -> vector<8x256xf32>
    %28 = vector.broadcast %4 : vector<8x1xf32> to vector<8x256xf32>
    %29 = arith.addf %27, %28 : vector<8x256xf32>
    %cst_11 = arith.constant 0.000000e+00 : f32
    %30 = vector.broadcast %cst_11 : f32 to vector<8x256xf32>
    %31 = arith.maximumf %29, %30 : vector<8x256xf32>
    %32 = vector.extract_strided_slice %7 {offsets = [0, 18], sizes = [8, 256], strides = [1, 1]} : vector<8x290xf32> to vector<8x256xf32>
    %33 = vector.extract_strided_slice %0 {offsets = [4, 0], sizes = [1, 256], strides = [1, 1]} : vector<9x256xf32> to vector<1x256xf32>
    %34 = vector.broadcast %33 : vector<1x256xf32> to vector<8x256xf32>
    %35 = arith.mulf %32, %34 : vector<8x256xf32>
    %36 = vector.extract_strided_slice %7 {offsets = [0, 2], sizes = [8, 256], strides = [1, 1]} : vector<8x290xf32> to vector<8x256xf32>
    %37 = vector.extract_strided_slice %0 {offsets = [5, 0], sizes = [1, 256], strides = [1, 1]} : vector<9x256xf32> to vector<1x256xf32>
    %38 = vector.broadcast %37 : vector<1x256xf32> to vector<8x256xf32>
    %39 = arith.mulf %36, %38 : vector<8x256xf32>
    %40 = tpu.concatenate %35, %11, %39, %19 in 0 : vector<8x256xf32>, vector<8x256xf32>, vector<8x256xf32>, vector<8x256xf32> -> vector<32x256xf32>
    %41 = vector.extract_strided_slice %3 {offsets = [1, 0, 0], sizes = [1, 8, 32], strides = [1, 1, 1]} : vector<4x8x32xf32> to vector<1x8x32xf32>
    %42 = vector.shape_cast %41 : vector<1x8x32xf32> to vector<8x32xf32>
    %cst_12 = arith.constant dense<0.000000e+00> : vector<8x256xf32>
    %43 = tpu.matmul %42, %40, %cst_12 {dimension_numbers = #tpu.dot_dimension_numbers<[1], [0], [0], [1], [0, 0, 1, 1], [], []>} : vector<8x32xf32>, vector<32x256xf32>, vector<8x256xf32> -> vector<8x256xf32>
    %44 = vector.broadcast %4 : vector<8x1xf32> to vector<8x256xf32>
    %45 = arith.addf %43, %44 : vector<8x256xf32>
    %cst_13 = arith.constant 0.000000e+00 : f32
    %46 = vector.broadcast %cst_13 : f32 to vector<8x256xf32>
    %47 = arith.maximumf %45, %46 : vector<8x256xf32>
    %48 = vector.extract_strided_slice %7 {offsets = [0, 33], sizes = [8, 256], strides = [1, 1]} : vector<8x290xf32> to vector<8x256xf32>
    %49 = vector.extract_strided_slice %0 {offsets = [6, 0], sizes = [1, 256], strides = [1, 1]} : vector<9x256xf32> to vector<1x256xf32>
    %50 = vector.broadcast %49 : vector<1x256xf32> to vector<8x256xf32>
    %51 = arith.mulf %48, %50 : vector<8x256xf32>
    %52 = vector.extract_strided_slice %7 {offsets = [0, 32], sizes = [8, 256], strides = [1, 1]} : vector<8x290xf32> to vector<8x256xf32>
    %53 = vector.extract_strided_slice %0 {offsets = [7, 0], sizes = [1, 256], strides = [1, 1]} : vector<9x256xf32> to vector<1x256xf32>
    %54 = vector.broadcast %53 : vector<1x256xf32> to vector<8x256xf32>
    %55 = arith.mulf %52, %54 : vector<8x256xf32>
    %56 = tpu.concatenate %51, %55, %11, %15 in 0 : vector<8x256xf32>, vector<8x256xf32>, vector<8x256xf32>, vector<8x256xf32> -> vector<32x256xf32>
    %57 = vector.extract_strided_slice %3 {offsets = [2, 0, 0], sizes = [1, 8, 32], strides = [1, 1, 1]} : vector<4x8x32xf32> to vector<1x8x32xf32>
    %58 = vector.shape_cast %57 : vector<1x8x32xf32> to vector<8x32xf32>
    %cst_14 = arith.constant dense<0.000000e+00> : vector<8x256xf32>
    %59 = tpu.matmul %58, %56, %cst_14 {dimension_numbers = #tpu.dot_dimension_numbers<[1], [0], [0], [1], [0, 0, 1, 1], [], []>} : vector<8x32xf32>, vector<32x256xf32>, vector<8x256xf32> -> vector<8x256xf32>
    %60 = vector.broadcast %4 : vector<8x1xf32> to vector<8x256xf32>
    %61 = arith.addf %59, %60 : vector<8x256xf32>
    %cst_15 = arith.constant 0.000000e+00 : f32
    %62 = vector.broadcast %cst_15 : f32 to vector<8x256xf32>
    %63 = arith.maximumf %61, %62 : vector<8x256xf32>
    %64 = vector.extract_strided_slice %7 {offsets = [0, 34], sizes = [8, 256], strides = [1, 1]} : vector<8x290xf32> to vector<8x256xf32>
    %65 = vector.extract_strided_slice %0 {offsets = [8, 0], sizes = [1, 256], strides = [1, 1]} : vector<9x256xf32> to vector<1x256xf32>
    %66 = vector.broadcast %65 : vector<1x256xf32> to vector<8x256xf32>
    %67 = arith.mulf %64, %66 : vector<8x256xf32>
    %68 = tpu.concatenate %67, %51, %35, %11 in 0 : vector<8x256xf32>, vector<8x256xf32>, vector<8x256xf32>, vector<8x256xf32> -> vector<32x256xf32>
    %69 = vector.extract_strided_slice %3 {offsets = [3, 0, 0], sizes = [1, 8, 32], strides = [1, 1, 1]} : vector<4x8x32xf32> to vector<1x8x32xf32>
    %70 = vector.shape_cast %69 : vector<1x8x32xf32> to vector<8x32xf32>
    %cst_16 = arith.constant dense<0.000000e+00> : vector<8x256xf32>
    %71 = tpu.matmul %70, %68, %cst_16 {dimension_numbers = #tpu.dot_dimension_numbers<[1], [0], [0], [1], [0, 0, 1, 1], [], []>} : vector<8x32xf32>, vector<32x256xf32>, vector<8x256xf32> -> vector<8x256xf32>
    %72 = vector.broadcast %4 : vector<8x1xf32> to vector<8x256xf32>
    %73 = arith.addf %71, %72 : vector<8x256xf32>
    %cst_17 = arith.constant 0.000000e+00 : f32
    %74 = vector.broadcast %cst_17 : f32 to vector<8x256xf32>
    %75 = arith.maximumf %73, %74 : vector<8x256xf32>
    %c0_18 = arith.constant 0 : index
    %c0_19 = arith.constant 0 : index
    %c0_20 = arith.constant 0 : index
    %76 = vector.load %arg5[%c0_18, %c0_19, %c0_20] : memref<4x8x32xf32, #tpu.memory_space<vmem>>, vector<4x8x32xf32>
    %c0_21 = arith.constant 0 : index
    %c0_22 = arith.constant 0 : index
    %77 = vector.load %arg6[%c0_21, %c0_22] : memref<8x1xf32, #tpu.memory_space<vmem>>, vector<8x1xf32>
    %cst_23 = arith.constant 0.000000e+00 : f32
    %78 = vector.broadcast %cst_23 : f32 to vector<8x17xf32>
    %cst_24 = arith.constant 0.000000e+00 : f32
    %79 = vector.broadcast %cst_24 : f32 to vector<8x17xf32>
    %80 = tpu.concatenate %78, %31, %79 in 1 : vector<8x17xf32>, vector<8x256xf32>, vector<8x17xf32> -> vector<8x290xf32>
    %cst_25 = arith.constant 0.000000e+00 : f32
    %81 = vector.broadcast %cst_25 : f32 to vector<8x17xf32>
    %cst_26 = arith.constant 0.000000e+00 : f32
    %82 = vector.broadcast %cst_26 : f32 to vector<8x17xf32>
    %83 = tpu.concatenate %81, %47, %82 in 1 : vector<8x17xf32>, vector<8x256xf32>, vector<8x17xf32> -> vector<8x290xf32>
    %cst_27 = arith.constant 0.000000e+00 : f32
    %84 = vector.broadcast %cst_27 : f32 to vector<8x17xf32>
    %cst_28 = arith.constant 0.000000e+00 : f32
    %85 = vector.broadcast %cst_28 : f32 to vector<8x17xf32>
    %86 = tpu.concatenate %84, %63, %85 in 1 : vector<8x17xf32>, vector<8x256xf32>, vector<8x17xf32> -> vector<8x290xf32>
    %cst_29 = arith.constant 0.000000e+00 : f32
    %87 = vector.broadcast %cst_29 : f32 to vector<8x17xf32>
    %cst_30 = arith.constant 0.000000e+00 : f32
    %88 = vector.broadcast %cst_30 : f32 to vector<8x17xf32>
    %89 = tpu.concatenate %87, %75, %88 in 1 : vector<8x17xf32>, vector<8x256xf32>, vector<8x17xf32> -> vector<8x290xf32>
    %90 = vector.extract_strided_slice %80 {offsets = [0, 17], sizes = [8, 256], strides = [1, 1]} : vector<8x290xf32> to vector<8x256xf32>
    %91 = vector.extract_strided_slice %0 {offsets = [0, 0], sizes = [1, 256], strides = [1, 1]} : vector<9x256xf32> to vector<1x256xf32>
    %92 = vector.broadcast %91 : vector<1x256xf32> to vector<8x256xf32>
    %93 = arith.mulf %90, %92 : vector<8x256xf32>
    %94 = vector.extract_strided_slice %83 {offsets = [0, 16], sizes = [8, 256], strides = [1, 1]} : vector<8x290xf32> to vector<8x256xf32>
    %95 = vector.extract_strided_slice %0 {offsets = [1, 0], sizes = [1, 256], strides = [1, 1]} : vector<9x256xf32> to vector<1x256xf32>
    %96 = vector.broadcast %95 : vector<1x256xf32> to vector<8x256xf32>
    %97 = arith.mulf %94, %96 : vector<8x256xf32>
    %98 = vector.extract_strided_slice %86 {offsets = [0, 1], sizes = [8, 256], strides = [1, 1]} : vector<8x290xf32> to vector<8x256xf32>
    %99 = vector.extract_strided_slice %0 {offsets = [2, 0], sizes = [1, 256], strides = [1, 1]} : vector<9x256xf32> to vector<1x256xf32>
    %100 = vector.broadcast %99 : vector<1x256xf32> to vector<8x256xf32>
    %101 = arith.mulf %98, %100 : vector<8x256xf32>
    %102 = vector.extract_strided_slice %89 {offsets = [0, 0], sizes = [8, 256], strides = [1, 1]} : vector<8x290xf32> to vector<8x256xf32>
    %103 = vector.extract_strided_slice %0 {offsets = [3, 0], sizes = [1, 256], strides = [1, 1]} : vector<9x256xf32> to vector<1x256xf32>
    %104 = vector.broadcast %103 : vector<1x256xf32> to vector<8x256xf32>
    %105 = arith.mulf %102, %104 : vector<8x256xf32>
    %106 = tpu.concatenate %93, %97, %101, %105 in 0 : vector<8x256xf32>, vector<8x256xf32>, vector<8x256xf32>, vector<8x256xf32> -> vector<32x256xf32>
    %107 = vector.extract_strided_slice %76 {offsets = [0, 0, 0], sizes = [1, 8, 32], strides = [1, 1, 1]} : vector<4x8x32xf32> to vector<1x8x32xf32>
    %108 = vector.shape_cast %107 : vector<1x8x32xf32> to vector<8x32xf32>
    %cst_31 = arith.constant dense<0.000000e+00> : vector<8x256xf32>
    %109 = tpu.matmul %108, %106, %cst_31 {dimension_numbers = #tpu.dot_dimension_numbers<[1], [0], [0], [1], [0, 0, 1, 1], [], []>} : vector<8x32xf32>, vector<32x256xf32>, vector<8x256xf32> -> vector<8x256xf32>
    %110 = vector.broadcast %77 : vector<8x1xf32> to vector<8x256xf32>
    %111 = arith.addf %109, %110 : vector<8x256xf32>
    %c0_32 = arith.constant 0 : index
    %c0_33 = arith.constant 0 : index
    %c0_34 = arith.constant 0 : index
    %c0_35 = arith.constant 0 : index
    %112 = vector.load %arg7[%c0_32, %c0_33, %c0_34, %c0_35] : memref<1x16x8x256xf32, #tpu.memory_space<vmem>>, vector<1x1x8x256xf32>
    %113 = vector.shape_cast %112 : vector<1x1x8x256xf32> to vector<8x256xf32>
    %114 = vector.shape_cast %111 : vector<8x256xf32> to vector<1x1x8x256xf32>
    tpu.vector_store %arg7[%c0_32, %c0_33, %c0_34, %c0_35], %114 {strides = array<i32>} : memref<1x16x8x256xf32, #tpu.memory_space<vmem>>, vector<1x1x8x256xf32>,
    %115 = vector.extract_strided_slice %83 {offsets = [0, 17], sizes = [8, 256], strides = [1, 1]} : vector<8x290xf32> to vector<8x256xf32>
    %116 = vector.extract_strided_slice %0 {offsets = [0, 0], sizes = [1, 256], strides = [1, 1]} : vector<9x256xf32> to vector<1x256xf32>
    %117 = vector.broadcast %116 : vector<1x256xf32> to vector<8x256xf32>
    %118 = arith.mulf %115, %117 : vector<8x256xf32>
    %119 = vector.extract_strided_slice %89 {offsets = [0, 1], sizes = [8, 256], strides = [1, 1]} : vector<8x290xf32> to vector<8x256xf32>
    %120 = vector.extract_strided_slice %0 {offsets = [2, 0], sizes = [1, 256], strides = [1, 1]} : vector<9x256xf32> to vector<1x256xf32>
    %121 = vector.broadcast %120 : vector<1x256xf32> to vector<8x256xf32>
    %122 = arith.mulf %119, %121 : vector<8x256xf32>
    %123 = tpu.concatenate %118, %93, %122, %101 in 0 : vector<8x256xf32>, vector<8x256xf32>, vector<8x256xf32>, vector<8x256xf32> -> vector<32x256xf32>
    %124 = vector.extract_strided_slice %76 {offsets = [1, 0, 0], sizes = [1, 8, 32], strides = [1, 1, 1]} : vector<4x8x32xf32> to vector<1x8x32xf32>
    %125 = vector.shape_cast %124 : vector<1x8x32xf32> to vector<8x32xf32>
    %cst_36 = arith.constant dense<0.000000e+00> : vector<8x256xf32>
    %126 = tpu.matmul %125, %123, %cst_36 {dimension_numbers = #tpu.dot_dimension_numbers<[1], [0], [0], [1], [0, 0, 1, 1], [], []>} : vector<8x32xf32>, vector<32x256xf32>, vector<8x256xf32> -> vector<8x256xf32>
    %127 = vector.broadcast %77 : vector<8x1xf32> to vector<8x256xf32>
    %128 = arith.addf %126, %127 : vector<8x256xf32>
    %c0_37 = arith.constant 0 : index
    %c1 = arith.constant 1 : index
    %c0_38 = arith.constant 0 : index
    %c0_39 = arith.constant 0 : index
    %129 = vector.load %arg7[%c0_37, %c1, %c0_38, %c0_39] : memref<1x16x8x256xf32, #tpu.memory_space<vmem>>, vector<1x1x8x256xf32>
    %130 = vector.shape_cast %129 : vector<1x1x8x256xf32> to vector<8x256xf32>
    %131 = vector.shape_cast %128 : vector<8x256xf32> to vector<1x1x8x256xf32>
    tpu.vector_store %arg7[%c0_37, %c1, %c0_38, %c0_39], %131 {strides = array<i32>} : memref<1x16x8x256xf32, #tpu.memory_space<vmem>>, vector<1x1x8x256xf32>,
    %132 = tpu.concatenate %118, %93, %122, %101 in 0 : vector<8x256xf32>, vector<8x256xf32>, vector<8x256xf32>, vector<8x256xf32> -> vector<32x256xf32>
    %133 = vector.extract_strided_slice %76 {offsets = [0, 0, 0], sizes = [1, 8, 32], strides = [1, 1, 1]} : vector<4x8x32xf32> to vector<1x8x32xf32>
    %134 = vector.shape_cast %133 : vector<1x8x32xf32> to vector<8x32xf32>
    %cst_40 = arith.constant dense<0.000000e+00> : vector<8x256xf32>
    %135 = tpu.matmul %134, %132, %cst_40 {dimension_numbers = #tpu.dot_dimension_numbers<[1], [0], [0], [1], [0, 0, 1, 1], [], []>} : vector<8x32xf32>, vector<32x256xf32>, vector<8x256xf32> -> vector<8x256xf32>
    %136 = vector.broadcast %77 : vector<8x1xf32> to vector<8x256xf32>
    %137 = arith.addf %135, %136 : vector<8x256xf32>
    %c0_41 = arith.constant 0 : index
    %c2 = arith.constant 2 : index
    %c0_42 = arith.constant 0 : index
    %c0_43 = arith.constant 0 : index
    %138 = vector.load %arg7[%c0_41, %c2, %c0_42, %c0_43] : memref<1x16x8x256xf32, #tpu.memory_space<vmem>>, vector<1x1x8x256xf32>
    %139 = vector.shape_cast %138 : vector<1x1x8x256xf32> to vector<8x256xf32>
    %140 = vector.shape_cast %137 : vector<8x256xf32> to vector<1x1x8x256xf32>
    tpu.vector_store %arg7[%c0_41, %c2, %c0_42, %c0_43], %140 {strides = array<i32>} : memref<1x16x8x256xf32, #tpu.memory_space<vmem>>, vector<1x1x8x256xf32>,
    %141 = vector.extract_strided_slice %80 {offsets = [0, 18], sizes = [8, 256], strides = [1, 1]} : vector<8x290xf32> to vector<8x256xf32>
    %142 = vector.extract_strided_slice %0 {offsets = [4, 0], sizes = [1, 256], strides = [1, 1]} : vector<9x256xf32> to vector<1x256xf32>
    %143 = vector.broadcast %142 : vector<1x256xf32> to vector<8x256xf32>
    %144 = arith.mulf %141, %143 : vector<8x256xf32>
    %145 = vector.extract_strided_slice %86 {offsets = [0, 2], sizes = [8, 256], strides = [1, 1]} : vector<8x290xf32> to vector<8x256xf32>
    %146 = vector.extract_strided_slice %0 {offsets = [5, 0], sizes = [1, 256], strides = [1, 1]} : vector<9x256xf32> to vector<1x256xf32>
    %147 = vector.broadcast %146 : vector<1x256xf32> to vector<8x256xf32>
    %148 = arith.mulf %145, %147 : vector<8x256xf32>
    %149 = tpu.concatenate %144, %118, %148, %122 in 0 : vector<8x256xf32>, vector<8x256xf32>, vector<8x256xf32>, vector<8x256xf32> -> vector<32x256xf32>
    %150 = vector.extract_strided_slice %76 {offsets = [1, 0, 0], sizes = [1, 8, 32], strides = [1, 1, 1]} : vector<4x8x32xf32> to vector<1x8x32xf32>
    %151 = vector.shape_cast %150 : vector<1x8x32xf32> to vector<8x32xf32>
    %cst_44 = arith.constant dense<0.000000e+00> : vector<8x256xf32>
    %152 = tpu.matmul %151, %149, %cst_44 {dimension_numbers = #tpu.dot_dimension_numbers<[1], [0], [0], [1], [0, 0, 1, 1], [], []>} : vector<8x32xf32>, vector<32x256xf32>, vector<8x256xf32> -> vector<8x256xf32>
    %153 = vector.broadcast %77 : vector<8x1xf32> to vector<8x256xf32>
    %154 = arith.addf %152, %153 : vector<8x256xf32>
    %c0_45 = arith.constant 0 : index
    %c3 = arith.constant 3 : index
    %c0_46 = arith.constant 0 : index
    %c0_47 = arith.constant 0 : index
    %155 = vector.load %arg7[%c0_45, %c3, %c0_46, %c0_47] : memref<1x16x8x256xf32, #tpu.memory_space<vmem>>, vector<1x1x8x256xf32>
    %156 = vector.shape_cast %155 : vector<1x1x8x256xf32> to vector<8x256xf32>
    %157 = vector.shape_cast %154 : vector<8x256xf32> to vector<1x1x8x256xf32>
    tpu.vector_store %arg7[%c0_45, %c3, %c0_46, %c0_47], %157 {strides = array<i32>} : memref<1x16x8x256xf32, #tpu.memory_space<vmem>>, vector<1x1x8x256xf32>,
    %158 = vector.extract_strided_slice %86 {offsets = [0, 17], sizes = [8, 256], strides = [1, 1]} : vector<8x290xf32> to vector<8x256xf32>
    %159 = vector.extract_strided_slice %0 {offsets = [0, 0], sizes = [1, 256], strides = [1, 1]} : vector<9x256xf32> to vector<1x256xf32>
    %160 = vector.broadcast %159 : vector<1x256xf32> to vector<8x256xf32>
    %161 = arith.mulf %158, %160 : vector<8x256xf32>
    %162 = vector.extract_strided_slice %89 {offsets = [0, 16], sizes = [8, 256], strides = [1, 1]} : vector<8x290xf32> to vector<8x256xf32>
    %163 = vector.extract_strided_slice %0 {offsets = [1, 0], sizes = [1, 256], strides = [1, 1]} : vector<9x256xf32> to vector<1x256xf32>
    %164 = vector.broadcast %163 : vector<1x256xf32> to vector<8x256xf32>
    %165 = arith.mulf %162, %164 : vector<8x256xf32>
    %166 = tpu.concatenate %161, %165, %93, %97 in 0 : vector<8x256xf32>, vector<8x256xf32>, vector<8x256xf32>, vector<8x256xf32> -> vector<32x256xf32>
    %167 = vector.extract_strided_slice %76 {offsets = [2, 0, 0], sizes = [1, 8, 32], strides = [1, 1, 1]} : vector<4x8x32xf32> to vector<1x8x32xf32>
    %168 = vector.shape_cast %167 : vector<1x8x32xf32> to vector<8x32xf32>
    %cst_48 = arith.constant dense<0.000000e+00> : vector<8x256xf32>
    %169 = tpu.matmul %168, %166, %cst_48 {dimension_numbers = #tpu.dot_dimension_numbers<[1], [0], [0], [1], [0, 0, 1, 1], [], []>} : vector<8x32xf32>, vector<32x256xf32>, vector<8x256xf32> -> vector<8x256xf32>
    %170 = vector.broadcast %77 : vector<8x1xf32> to vector<8x256xf32>
    %171 = arith.addf %169, %170 : vector<8x256xf32>
    %c0_49 = arith.constant 0 : index
    %c4 = arith.constant 4 : index
    %c0_50 = arith.constant 0 : index
    %c0_51 = arith.constant 0 : index
    %172 = vector.load %arg7[%c0_49, %c4, %c0_50, %c0_51] : memref<1x16x8x256xf32, #tpu.memory_space<vmem>>, vector<1x1x8x256xf32>
    %173 = vector.shape_cast %172 : vector<1x1x8x256xf32> to vector<8x256xf32>
    %174 = vector.shape_cast %171 : vector<8x256xf32> to vector<1x1x8x256xf32>
    tpu.vector_store %arg7[%c0_49, %c4, %c0_50, %c0_51], %174 {strides = array<i32>} : memref<1x16x8x256xf32, #tpu.memory_space<vmem>>, vector<1x1x8x256xf32>,
    %175 = vector.extract_strided_slice %89 {offsets = [0, 17], sizes = [8, 256], strides = [1, 1]} : vector<8x290xf32> to vector<8x256xf32>
    %176 = vector.extract_strided_slice %0 {offsets = [0, 0], sizes = [1, 256], strides = [1, 1]} : vector<9x256xf32> to vector<1x256xf32>
    %177 = vector.broadcast %176 : vector<1x256xf32> to vector<8x256xf32>
    %178 = arith.mulf %175, %177 : vector<8x256xf32>
    %179 = tpu.concatenate %178, %161, %118, %93 in 0 : vector<8x256xf32>, vector<8x256xf32>, vector<8x256xf32>, vector<8x256xf32> -> vector<32x256xf32>
    %180 = vector.extract_strided_slice %76 {offsets = [3, 0, 0], sizes = [1, 8, 32], strides = [1, 1, 1]} : vector<4x8x32xf32> to vector<1x8x32xf32>
    %181 = vector.shape_cast %180 : vector<1x8x32xf32> to vector<8x32xf32>
    %cst_52 = arith.constant dense<0.000000e+00> : vector<8x256xf32>
    %182 = tpu.matmul %181, %179, %cst_52 {dimension_numbers = #tpu.dot_dimension_numbers<[1], [0], [0], [1], [0, 0, 1, 1], [], []>} : vector<8x32xf32>, vector<32x256xf32>, vector<8x256xf32> -> vector<8x256xf32>
    %183 = vector.broadcast %77 : vector<8x1xf32> to vector<8x256xf32>
    %184 = arith.addf %182, %183 : vector<8x256xf32>
    %c0_53 = arith.constant 0 : index
    %c5 = arith.constant 5 : index
    %c0_54 = arith.constant 0 : index
    %c0_55 = arith.constant 0 : index
    %185 = vector.load %arg7[%c0_53, %c5, %c0_54, %c0_55] : memref<1x16x8x256xf32, #tpu.memory_space<vmem>>, vector<1x1x8x256xf32>
    %186 = vector.shape_cast %185 : vector<1x1x8x256xf32> to vector<8x256xf32>
    %187 = vector.shape_cast %184 : vector<8x256xf32> to vector<1x1x8x256xf32>
    tpu.vector_store %arg7[%c0_53, %c5, %c0_54, %c0_55], %187 {strides = array<i32>} : memref<1x16x8x256xf32, #tpu.memory_space<vmem>>, vector<1x1x8x256xf32>,
    %188 = tpu.concatenate %178, %161, %118, %93 in 0 : vector<8x256xf32>, vector<8x256xf32>, vector<8x256xf32>, vector<8x256xf32> -> vector<32x256xf32>
    %189 = vector.extract_strided_slice %76 {offsets = [2, 0, 0], sizes = [1, 8, 32], strides = [1, 1, 1]} : vector<4x8x32xf32> to vector<1x8x32xf32>
    %190 = vector.shape_cast %189 : vector<1x8x32xf32> to vector<8x32xf32>
    %cst_56 = arith.constant dense<0.000000e+00> : vector<8x256xf32>
    %191 = tpu.matmul %190, %188, %cst_56 {dimension_numbers = #tpu.dot_dimension_numbers<[1], [0], [0], [1], [0, 0, 1, 1], [], []>} : vector<8x32xf32>, vector<32x256xf32>, vector<8x256xf32> -> vector<8x256xf32>
    %192 = vector.broadcast %77 : vector<8x1xf32> to vector<8x256xf32>
    %193 = arith.addf %191, %192 : vector<8x256xf32>
    %c0_57 = arith.constant 0 : index
    %c6 = arith.constant 6 : index
    %c0_58 = arith.constant 0 : index
    %c0_59 = arith.constant 0 : index
    %194 = vector.load %arg7[%c0_57, %c6, %c0_58, %c0_59] : memref<1x16x8x256xf32, #tpu.memory_space<vmem>>, vector<1x1x8x256xf32>
    %195 = vector.shape_cast %194 : vector<1x1x8x256xf32> to vector<8x256xf32>
    %196 = vector.shape_cast %193 : vector<8x256xf32> to vector<1x1x8x256xf32>
    tpu.vector_store %arg7[%c0_57, %c6, %c0_58, %c0_59], %196 {strides = array<i32>} : memref<1x16x8x256xf32, #tpu.memory_space<vmem>>, vector<1x1x8x256xf32>,
    %197 = vector.extract_strided_slice %86 {offsets = [0, 18], sizes = [8, 256], strides = [1, 1]} : vector<8x290xf32> to vector<8x256xf32>
    %198 = vector.extract_strided_slice %0 {offsets = [4, 0], sizes = [1, 256], strides = [1, 1]} : vector<9x256xf32> to vector<1x256xf32>
    %199 = vector.broadcast %198 : vector<1x256xf32> to vector<8x256xf32>
    %200 = arith.mulf %197, %199 : vector<8x256xf32>
    %201 = tpu.concatenate %200, %178, %144, %118 in 0 : vector<8x256xf32>, vector<8x256xf32>, vector<8x256xf32>, vector<8x256xf32> -> vector<32x256xf32>
    %202 = vector.extract_strided_slice %76 {offsets = [3, 0, 0], sizes = [1, 8, 32], strides = [1, 1, 1]} : vector<4x8x32xf32> to vector<1x8x32xf32>
    %203 = vector.shape_cast %202 : vector<1x8x32xf32> to vector<8x32xf32>
    %cst_60 = arith.constant dense<0.000000e+00> : vector<8x256xf32>
    %204 = tpu.matmul %203, %201, %cst_60 {dimension_numbers = #tpu.dot_dimension_numbers<[1], [0], [0], [1], [0, 0, 1, 1], [], []>} : vector<8x32xf32>, vector<32x256xf32>, vector<8x256xf32> -> vector<8x256xf32>
    %205 = vector.broadcast %77 : vector<8x1xf32> to vector<8x256xf32>
    %206 = arith.addf %204, %205 : vector<8x256xf32>
    %c0_61 = arith.constant 0 : index
    %c7 = arith.constant 7 : index
    %c0_62 = arith.constant 0 : index
    %c0_63 = arith.constant 0 : index
    %207 = vector.load %arg7[%c0_61, %c7, %c0_62, %c0_63] : memref<1x16x8x256xf32, #tpu.memory_space<vmem>>, vector<1x1x8x256xf32>
    %208 = vector.shape_cast %207 : vector<1x1x8x256xf32> to vector<8x256xf32>
    %209 = vector.shape_cast %206 : vector<8x256xf32> to vector<1x1x8x256xf32>
    tpu.vector_store %arg7[%c0_61, %c7, %c0_62, %c0_63], %209 {strides = array<i32>} : memref<1x16x8x256xf32, #tpu.memory_space<vmem>>, vector<1x1x8x256xf32>,
    %210 = tpu.concatenate %161, %165, %93, %97 in 0 : vector<8x256xf32>, vector<8x256xf32>, vector<8x256xf32>, vector<8x256xf32> -> vector<32x256xf32>
    %211 = vector.extract_strided_slice %76 {offsets = [0, 0, 0], sizes = [1, 8, 32], strides = [1, 1, 1]} : vector<4x8x32xf32> to vector<1x8x32xf32>
    %212 = vector.shape_cast %211 : vector<1x8x32xf32> to vector<8x32xf32>
    %cst_64 = arith.constant dense<0.000000e+00> : vector<8x256xf32>
    %213 = tpu.matmul %212, %210, %cst_64 {dimension_numbers = #tpu.dot_dimension_numbers<[1], [0], [0], [1], [0, 0, 1, 1], [], []>} : vector<8x32xf32>, vector<32x256xf32>, vector<8x256xf32> -> vector<8x256xf32>
    %214 = vector.broadcast %77 : vector<8x1xf32> to vector<8x256xf32>
    %215 = arith.addf %213, %214 : vector<8x256xf32>
    %c0_65 = arith.constant 0 : index
    %c8 = arith.constant 8 : index
    %c0_66 = arith.constant 0 : index
    %c0_67 = arith.constant 0 : index
    %216 = vector.load %arg7[%c0_65, %c8, %c0_66, %c0_67] : memref<1x16x8x256xf32, #tpu.memory_space<vmem>>, vector<1x1x8x256xf32>
    %217 = vector.shape_cast %216 : vector<1x1x8x256xf32> to vector<8x256xf32>
    %218 = vector.shape_cast %215 : vector<8x256xf32> to vector<1x1x8x256xf32>
    tpu.vector_store %arg7[%c0_65, %c8, %c0_66, %c0_67], %218 {strides = array<i32>} : memref<1x16x8x256xf32, #tpu.memory_space<vmem>>, vector<1x1x8x256xf32>,
    %219 = tpu.concatenate %178, %161, %118, %93 in 0 : vector<8x256xf32>, vector<8x256xf32>, vector<8x256xf32>, vector<8x256xf32> -> vector<32x256xf32>
    %220 = vector.extract_strided_slice %76 {offsets = [1, 0, 0], sizes = [1, 8, 32], strides = [1, 1, 1]} : vector<4x8x32xf32> to vector<1x8x32xf32>
    %221 = vector.shape_cast %220 : vector<1x8x32xf32> to vector<8x32xf32>
    %cst_68 = arith.constant dense<0.000000e+00> : vector<8x256xf32>
    %222 = tpu.matmul %221, %219, %cst_68 {dimension_numbers = #tpu.dot_dimension_numbers<[1], [0], [0], [1], [0, 0, 1, 1], [], []>} : vector<8x32xf32>, vector<32x256xf32>, vector<8x256xf32> -> vector<8x256xf32>
    %223 = vector.broadcast %77 : vector<8x1xf32> to vector<8x256xf32>
    %224 = arith.addf %222, %223 : vector<8x256xf32>
    %c0_69 = arith.constant 0 : index
    %c9 = arith.constant 9 : index
    %c0_70 = arith.constant 0 : index
    %c0_71 = arith.constant 0 : index
    %225 = vector.load %arg7[%c0_69, %c9, %c0_70, %c0_71] : memref<1x16x8x256xf32, #tpu.memory_space<vmem>>, vector<1x1x8x256xf32>
    %226 = vector.shape_cast %225 : vector<1x1x8x256xf32> to vector<8x256xf32>
    %227 = vector.shape_cast %224 : vector<8x256xf32> to vector<1x1x8x256xf32>
    tpu.vector_store %arg7[%c0_69, %c9, %c0_70, %c0_71], %227 {strides = array<i32>} : memref<1x16x8x256xf32, #tpu.memory_space<vmem>>, vector<1x1x8x256xf32>,
    %228 = tpu.concatenate %178, %161, %118, %93 in 0 : vector<8x256xf32>, vector<8x256xf32>, vector<8x256xf32>, vector<8x256xf32> -> vector<32x256xf32>
    %229 = vector.extract_strided_slice %76 {offsets = [0, 0, 0], sizes = [1, 8, 32], strides = [1, 1, 1]} : vector<4x8x32xf32> to vector<1x8x32xf32>
    %230 = vector.shape_cast %229 : vector<1x8x32xf32> to vector<8x32xf32>
    %cst_72 = arith.constant dense<0.000000e+00> : vector<8x256xf32>
    %231 = tpu.matmul %230, %228, %cst_72 {dimension_numbers = #tpu.dot_dimension_numbers<[1], [0], [0], [1], [0, 0, 1, 1], [], []>} : vector<8x32xf32>, vector<32x256xf32>, vector<8x256xf32> -> vector<8x256xf32>
    %232 = vector.broadcast %77 : vector<8x1xf32> to vector<8x256xf32>
    %233 = arith.addf %231, %232 : vector<8x256xf32>
    %c0_73 = arith.constant 0 : index
    %c10 = arith.constant 10 : index
    %c0_74 = arith.constant 0 : index
    %c0_75 = arith.constant 0 : index
    %234 = vector.load %arg7[%c0_73, %c10, %c0_74, %c0_75] : memref<1x16x8x256xf32, #tpu.memory_space<vmem>>, vector<1x1x8x256xf32>
    %235 = vector.shape_cast %234 : vector<1x1x8x256xf32> to vector<8x256xf32>
    %236 = vector.shape_cast %233 : vector<8x256xf32> to vector<1x1x8x256xf32>
    tpu.vector_store %arg7[%c0_73, %c10, %c0_74, %c0_75], %236 {strides = array<i32>} : memref<1x16x8x256xf32, #tpu.memory_space<vmem>>, vector<1x1x8x256xf32>,
    %237 = tpu.concatenate %200, %178, %144, %118 in 0 : vector<8x256xf32>, vector<8x256xf32>, vector<8x256xf32>, vector<8x256xf32> -> vector<32x256xf32>
    %238 = vector.extract_strided_slice %76 {offsets = [1, 0, 0], sizes = [1, 8, 32], strides = [1, 1, 1]} : vector<4x8x32xf32> to vector<1x8x32xf32>
    %239 = vector.shape_cast %238 : vector<1x8x32xf32> to vector<8x32xf32>
    %cst_76 = arith.constant dense<0.000000e+00> : vector<8x256xf32>
    %240 = tpu.matmul %239, %237, %cst_76 {dimension_numbers = #tpu.dot_dimension_numbers<[1], [0], [0], [1], [0, 0, 1, 1], [], []>} : vector<8x32xf32>, vector<32x256xf32>, vector<8x256xf32> -> vector<8x256xf32>
    %241 = vector.broadcast %77 : vector<8x1xf32> to vector<8x256xf32>
    %242 = arith.addf %240, %241 : vector<8x256xf32>
    %c0_77 = arith.constant 0 : index
    %c11 = arith.constant 11 : index
    %c0_78 = arith.constant 0 : index
    %c0_79 = arith.constant 0 : index
    %243 = vector.load %arg7[%c0_77, %c11, %c0_78, %c0_79] : memref<1x16x8x256xf32, #tpu.memory_space<vmem>>, vector<1x1x8x256xf32>
    %244 = vector.shape_cast %243 : vector<1x1x8x256xf32> to vector<8x256xf32>
    %245 = vector.shape_cast %242 : vector<8x256xf32> to vector<1x1x8x256xf32>
    tpu.vector_store %arg7[%c0_77, %c11, %c0_78, %c0_79], %245 {strides = array<i32>} : memref<1x16x8x256xf32, #tpu.memory_space<vmem>>, vector<1x1x8x256xf32>,
    %246 = vector.extract_strided_slice %80 {offsets = [0, 33], sizes = [8, 256], strides = [1, 1]} : vector<8x290xf32> to vector<8x256xf32>
    %247 = vector.extract_strided_slice %0 {offsets = [6, 0], sizes = [1, 256], strides = [1, 1]} : vector<9x256xf32> to vector<1x256xf32>
    %248 = vector.broadcast %247 : vector<1x256xf32> to vector<8x256xf32>
    %249 = arith.mulf %246, %248 : vector<8x256xf32>
    %250 = vector.extract_strided_slice %83 {offsets = [0, 32], sizes = [8, 256], strides = [1, 1]} : vector<8x290xf32> to vector<8x256xf32>
    %251 = vector.extract_strided_slice %0 {offsets = [7, 0], sizes = [1, 256], strides = [1, 1]} : vector<9x256xf32> to vector<1x256xf32>
    %252 = vector.broadcast %251 : vector<1x256xf32> to vector<8x256xf32>
    %253 = arith.mulf %250, %252 : vector<8x256xf32>
    %254 = tpu.concatenate %249, %253, %161, %165 in 0 : vector<8x256xf32>, vector<8x256xf32>, vector<8x256xf32>, vector<8x256xf32> -> vector<32x256xf32>
    %255 = vector.extract_strided_slice %76 {offsets = [2, 0, 0], sizes = [1, 8, 32], strides = [1, 1, 1]} : vector<4x8x32xf32> to vector<1x8x32xf32>
    %256 = vector.shape_cast %255 : vector<1x8x32xf32> to vector<8x32xf32>
    %cst_80 = arith.constant dense<0.000000e+00> : vector<8x256xf32>
    %257 = tpu.matmul %256, %254, %cst_80 {dimension_numbers = #tpu.dot_dimension_numbers<[1], [0], [0], [1], [0, 0, 1, 1], [], []>} : vector<8x32xf32>, vector<32x256xf32>, vector<8x256xf32> -> vector<8x256xf32>
    %258 = vector.broadcast %77 : vector<8x1xf32> to vector<8x256xf32>
    %259 = arith.addf %257, %258 : vector<8x256xf32>
    %c0_81 = arith.constant 0 : index
    %c12 = arith.constant 12 : index
    %c0_82 = arith.constant 0 : index
    %c0_83 = arith.constant 0 : index
    %260 = vector.load %arg7[%c0_81, %c12, %c0_82, %c0_83] : memref<1x16x8x256xf32, #tpu.memory_space<vmem>>, vector<1x1x8x256xf32>
    %261 = vector.shape_cast %260 : vector<1x1x8x256xf32> to vector<8x256xf32>
    %262 = vector.shape_cast %259 : vector<8x256xf32> to vector<1x1x8x256xf32>
    tpu.vector_store %arg7[%c0_81, %c12, %c0_82, %c0_83], %262 {strides = array<i32>} : memref<1x16x8x256xf32, #tpu.memory_space<vmem>>, vector<1x1x8x256xf32>,
    %263 = vector.extract_strided_slice %83 {offsets = [0, 33], sizes = [8, 256], strides = [1, 1]} : vector<8x290xf32> to vector<8x256xf32>
    %264 = vector.extract_strided_slice %0 {offsets = [6, 0], sizes = [1, 256], strides = [1, 1]} : vector<9x256xf32> to vector<1x256xf32>
    %265 = vector.broadcast %264 : vector<1x256xf32> to vector<8x256xf32>
    %266 = arith.mulf %263, %265 : vector<8x256xf32>
    %267 = tpu.concatenate %266, %249, %178, %161 in 0 : vector<8x256xf32>, vector<8x256xf32>, vector<8x256xf32>, vector<8x256xf32> -> vector<32x256xf32>
    %268 = vector.extract_strided_slice %76 {offsets = [3, 0, 0], sizes = [1, 8, 32], strides = [1, 1, 1]} : vector<4x8x32xf32> to vector<1x8x32xf32>
    %269 = vector.shape_cast %268 : vector<1x8x32xf32> to vector<8x32xf32>
    %cst_84 = arith.constant dense<0.000000e+00> : vector<8x256xf32>
    %270 = tpu.matmul %269, %267, %cst_84 {dimension_numbers = #tpu.dot_dimension_numbers<[1], [0], [0], [1], [0, 0, 1, 1], [], []>} : vector<8x32xf32>, vector<32x256xf32>, vector<8x256xf32> -> vector<8x256xf32>
    %271 = vector.broadcast %77 : vector<8x1xf32> to vector<8x256xf32>
    %272 = arith.addf %270, %271 : vector<8x256xf32>
    %c0_85 = arith.constant 0 : index
    %c13 = arith.constant 13 : index
    %c0_86 = arith.constant 0 : index
    %c0_87 = arith.constant 0 : index
    %273 = vector.load %arg7[%c0_85, %c13, %c0_86, %c0_87] : memref<1x16x8x256xf32, #tpu.memory_space<vmem>>, vector<1x1x8x256xf32>
    %274 = vector.shape_cast %273 : vector<1x1x8x256xf32> to vector<8x256xf32>
    %275 = vector.shape_cast %272 : vector<8x256xf32> to vector<1x1x8x256xf32>
    tpu.vector_store %arg7[%c0_85, %c13, %c0_86, %c0_87], %275 {strides = array<i32>} : memref<1x16x8x256xf32, #tpu.memory_space<vmem>>, vector<1x1x8x256xf32>,
    %276 = tpu.concatenate %266, %249, %178, %161 in 0 : vector<8x256xf32>, vector<8x256xf32>, vector<8x256xf32>, vector<8x256xf32> -> vector<32x256xf32>
    %277 = vector.extract_strided_slice %76 {offsets = [2, 0, 0], sizes = [1, 8, 32], strides = [1, 1, 1]} : vector<4x8x32xf32> to vector<1x8x32xf32>
    %278 = vector.shape_cast %277 : vector<1x8x32xf32> to vector<8x32xf32>
    %cst_88 = arith.constant dense<0.000000e+00> : vector<8x256xf32>
    %279 = tpu.matmul %278, %276, %cst_88 {dimension_numbers = #tpu.dot_dimension_numbers<[1], [0], [0], [1], [0, 0, 1, 1], [], []>} : vector<8x32xf32>, vector<32x256xf32>, vector<8x256xf32> -> vector<8x256xf32>
    %280 = vector.broadcast %77 : vector<8x1xf32> to vector<8x256xf32>
    %281 = arith.addf %279, %280 : vector<8x256xf32>
    %c0_89 = arith.constant 0 : index
    %c14 = arith.constant 14 : index
    %c0_90 = arith.constant 0 : index
    %c0_91 = arith.constant 0 : index
    %282 = vector.load %arg7[%c0_89, %c14, %c0_90, %c0_91] : memref<1x16x8x256xf32, #tpu.memory_space<vmem>>, vector<1x1x8x256xf32>
    %283 = vector.shape_cast %282 : vector<1x1x8x256xf32> to vector<8x256xf32>
    %284 = vector.shape_cast %281 : vector<8x256xf32> to vector<1x1x8x256xf32>
    tpu.vector_store %arg7[%c0_89, %c14, %c0_90, %c0_91], %284 {strides = array<i32>} : memref<1x16x8x256xf32, #tpu.memory_space<vmem>>, vector<1x1x8x256xf32>,
    %285 = vector.extract_strided_slice %80 {offsets = [0, 34], sizes = [8, 256], strides = [1, 1]} : vector<8x290xf32> to vector<8x256xf32>
    %286 = vector.extract_strided_slice %0 {offsets = [8, 0], sizes = [1, 256], strides = [1, 1]} : vector<9x256xf32> to vector<1x256xf32>
    %287 = vector.broadcast %286 : vector<1x256xf32> to vector<8x256xf32>
    %288 = arith.mulf %285, %287 : vector<8x256xf32>
    %289 = tpu.concatenate %288, %266, %200, %178 in 0 : vector<8x256xf32>, vector<8x256xf32>, vector<8x256xf32>, vector<8x256xf32> -> vector<32x256xf32>
    %290 = vector.extract_strided_slice %76 {offsets = [3, 0, 0], sizes = [1, 8, 32], strides = [1, 1, 1]} : vector<4x8x32xf32> to vector<1x8x32xf32>
    %291 = vector.shape_cast %290 : vector<1x8x32xf32> to vector<8x32xf32>
    %cst_92 = arith.constant dense<0.000000e+00> : vector<8x256xf32>
    %292 = tpu.matmul %291, %289, %cst_92 {dimension_numbers = #tpu.dot_dimension_numbers<[1], [0], [0], [1], [0, 0, 1, 1], [], []>} : vector<8x32xf32>, vector<32x256xf32>, vector<8x256xf32> -> vector<8x256xf32>
    %293 = vector.broadcast %77 : vector<8x1xf32> to vector<8x256xf32>
    %294 = arith.addf %292, %293 : vector<8x256xf32>
    %c0_93 = arith.constant 0 : index
    %c15 = arith.constant 15 : index
    %c0_94 = arith.constant 0 : index
    %c0_95 = arith.constant 0 : index
    %295 = vector.load %arg7[%c0_93, %c15, %c0_94, %c0_95] : memref<1x16x8x256xf32, #tpu.memory_space<vmem>>, vector<1x1x8x256xf32>
    %296 = vector.shape_cast %295 : vector<1x1x8x256xf32> to vector<8x256xf32>
    %297 = vector.shape_cast %294 : vector<8x256xf32> to vector<1x1x8x256xf32>
    tpu.vector_store %arg7[%c0_93, %c15, %c0_94, %c0_95], %297 {strides = array<i32>} : memref<1x16x8x256xf32, #tpu.memory_space<vmem>>, vector<1x1x8x256xf32>,
    return
  }
  func.func @transform_0(%arg0: i32) -> (i32, i32, i32) {
    %c0_i32 = arith.constant 0 : i32
    %c0_i32_0 = arith.constant 0 : i32
    %c0_i32_1 = arith.constant 0 : i32
    return %arg0, %c0_i32, %c0_i32_0 : i32, i32, i32
  }
  func.func @transform_1(%arg0: i32) -> (i32, i32) {
    %c0_i32 = arith.constant 0 : i32
    %c0_i32_0 = arith.constant 0 : i32
    %c0_i32_1 = arith.constant 0 : i32
    return %c0_i32, %c0_i32_0 : i32, i32
  }
  func.func @transform_2(%arg0: i32) -> (i32, i32, i32) {
    %c0_i32 = arith.constant 0 : i32
    %c0_i32_0 = arith.constant 0 : i32
    %c0_i32_1 = arith.constant 0 : i32
    %c0_i32_2 = arith.constant 0 : i32
    return %c0_i32, %c0_i32_0, %c0_i32_1 : i32, i32, i32
  }
  func.func @transform_3(%arg0: i32) -> (i32, i32) {
    %c0_i32 = arith.constant 0 : i32
    %c0_i32_0 = arith.constant 0 : i32
    %c0_i32_1 = arith.constant 0 : i32
    return %c0_i32, %c0_i32_0 : i32, i32
  }
  func.func @transform_4(%arg0: i32) -> (i32, i32, i32) {
    %c0_i32 = arith.constant 0 : i32
    %c0_i32_0 = arith.constant 0 : i32
    %c0_i32_1 = arith.constant 0 : i32
    %c0_i32_2 = arith.constant 0 : i32
    return %c0_i32, %c0_i32_0, %c0_i32_1 : i32, i32, i32
  }
  func.func @transform_5(%arg0: i32) -> (i32, i32) {
    %c0_i32 = arith.constant 0 : i32
    %c0_i32_0 = arith.constant 0 : i32
    %c0_i32_1 = arith.constant 0 : i32
    return %c0_i32, %c0_i32_0 : i32, i32
  }
  func.func @transform_6(%arg0: i32) -> (i32, i32, i32, i32) {
    %c0_i32 = arith.constant 0 : i32
    %c0_i32_0 = arith.constant 0 : i32
    %c0_i32_1 = arith.constant 0 : i32
    %c0_i32_2 = arith.constant 0 : i32
    return %arg0, %c0_i32, %c0_i32_0, %c0_i32_1 : i32, i32, i32, i32
  }
}

</mosaic_0001>

<llo_original>
// kernel: _lambda_.1
$region0: #{_lambda_.1}
  #allocation0 [shape = 'u32[]', space=smem, size = 0x4, offset = 0x4, fixed_abs, tag = 'smem constant byte address 0x4 - core index']
  #allocation1 [shape = 'u32[144,128]{1,0:T(1,128)}', space=vmem, size = 0x12000, scoped, tag = 'internal scratch']
  %s0 = inlined_call_operand.vmem [shape: f32[2,8,256], index: 0, kind: input, shape index: {}]
  %s1 = inlined_call_operand.hbm [shape: f32[9,256], index: 1, kind: input, shape index: {}]
  %s2 = inlined_call_operand.hbm [shape: f32[4,8,32], index: 2, kind: input, shape index: {}]
  %s3 = inlined_call_operand.hbm [shape: f32[8,1], index: 3, kind: input, shape index: {}]
  %s4 = inlined_call_operand.hbm [shape: f32[4,8,32], index: 4, kind: input, shape index: {}]
  %s5 = inlined_call_operand.hbm [shape: f32[8,1], index: 5, kind: input, shape index: {}]
  %s6 = inlined_call_operand.vmem [shape: f32[2,16,8,256], index: 6, kind: output, shape index: {}]
  %s7 = sld [smem:[#allocation0]]
  $region77: #{_lambda_.1} parent=0
    _
  %s9 = ssub.s32 1, %s7
  %s10 = scalar_select 0, %s9, %s7
  $region1: #{_lambda_.1} parent=0
    #allocation2 [shape = 'u8[16384]{0}', space=vmem, size = 0x4000, scoped, tag = 'input window, operand 1, single buffered']
    #allocation3 [shape = 's32[2]{0}', space=sflag, size = 0x8, scoped, tag = 'scoped memory for _lambda_.1']
    #allocation4 [shape = 'u8[16384]{0}', space=vmem, size = 0x4000, scoped, tag = 'input window, operand 2, single buffered']
    #allocation5 [shape = 's32[1]{0}', space=sflag, size = 0x4, scoped, tag = 'scoped memory for _lambda_.1']
    #allocation6 [shape = 'u8[4096]{0}', space=vmem, size = 0x1000, scoped, tag = 'input window, operand 3, single buffered']
    #allocation7 [shape = 'u8[16384]{0}', space=vmem, size = 0x4000, scoped, tag = 'input window, operand 4, single buffered']
    #allocation8 [shape = 's32[1]{0}', space=sflag, size = 0x4, scoped, tag = 'scoped memory for _lambda_.1']
    #allocation9 [shape = 'u8[4096]{0}', space=vmem, size = 0x1000, scoped, tag = 'input window, operand 5, single buffered']
    %11 = vsyncpa [#allocation3], 0
    %12 = vsyncpa [#allocation5], 0
    %13 = vsyncpa [#allocation8], 0
    loop: start=0, step=1, limit=4
    $region2: #{_lambda_.1} parent=1 // loop_pre_header
      _
    $region3: #{_lambda_.1} parent=1 // loop_header
      %s15 = sphi 0, %s19
      %p16 = scmp.ge.s32.totalorder %s15, 4
      %s25 = sphi 0, %s27
      %s28 = sphi 0, %s25
      %s29 = sphi 0, %s28
      %s45 = sphi 0, %s29
      %s49 = sphi 0, %s49
      %s51 = sphi 0, %s49
      %s52 = sphi 0, %s51
      %s66 = sphi 0, %s52
      %s70 = sphi 0, %s70
      %s72 = sphi 0, %s70
      %s73 = sphi 0, %s72
      %s87 = sphi 0, %s73
      %s91 = sphi 0, %s91
      %s93 = sphi 0, %s91
      %s94 = sphi 0, %s93
      %s108 = sphi 0, %s94
      %s112 = sphi 0, %s112
      %s114 = sphi 0, %s112
      %s115 = sphi 0, %s114
      %s129 = sphi 0, %s115
      %s133 = sphi 0, %s133
      %s135 = sphi 0, %s133
      %s136 = sphi 0, %s135
      %s150 = sphi 0, %s136
      %s156 = sphi 0, %s158
      %s159 = sphi 0, %s156
      %s160 = sphi 0, %s159
      %s176 = sphi 0, %s160
    $region4: #{_lambda_.1} parent=1 // loop_header_branch
      %18 = sbr.rel (%p16) target = $region8
    $region5: #{_lambda_.1} parent=1 // loop_body
      %s20 = ssub.s32 %s15, 1
      %s21 = ssub.s32 %s15, 2
      %s22 = sadd.s32 %s15, 1
      %s23 = ssub.s32 %s15, %s22
      %p24 = scmp.eq.s32.totalorder %s23, 0
      %s26 = sadd.s32 %s25, 1
      %s27 = scalar_select %p24, %s25, %s26
      %p30 = pneg %p24
      %p31 = scmp.eq.s32.totalorder %s15, 1
      %p32 = por %p30, %p31
      %p33 = scmp.ne.s32.totalorder %s25, %s28
      %p34 = scmp.eq.s32.totalorder %s15, 0
      %p35 = por %p33, %p34
      %p36 = scmp.ne.s32.totalorder %s25, %s28
      %p37 = scmp.eq.s32.totalorder %s20, 1
      %p38 = por %p36, %p37
      %p39 = scmp.ne.s32.totalorder %s28, %s29
      %p40 = scmp.eq.s32.totalorder %s20, 0
      %p41 = por %p39, %p40
      %p42 = scmp.ne.s32.totalorder %s28, %s29
      %p43 = scmp.eq.s32.totalorder %s21, 1
      %p44 = por %p42, %p43
      %p46 = scmp.ne.s32.totalorder %s29, %s45
      %p47 = scmp.eq.s32.totalorder %s21, 0
      %p48 = por %p46, %p47
      %s50 = sadd.s32 %s49, 1
      %p53 = scmp.eq.s32.totalorder %s15, 1
      %p54 = scmp.ne.s32.totalorder %s49, %s51
      %p55 = scmp.eq.s32.totalorder %s15, 0
      %p56 = por %p54, %p55
      %p57 = scmp.ne.s32.totalorder %s49, %s51
      %p58 = scmp.eq.s32.totalorder %s20, 1
      %p59 = por %p57, %p58
      %p60 = scmp.ne.s32.totalorder %s51, %s52
      %p61 = scmp.eq.s32.totalorder %s20, 0
      %p62 = por %p60, %p61
      %p63 = scmp.ne.s32.totalorder %s51, %s52
      %p64 = scmp.eq.s32.totalorder %s21, 1
      %p65 = por %p63, %p64
      %p67 = scmp.ne.s32.totalorder %s52, %s66
      %p68 = scmp.eq.s32.totalorder %s21, 0
      %p69 = por %p67, %p68
      %s71 = sadd.s32 %s70, 1
      %p74 = scmp.eq.s32.totalorder %s15, 1
      %p75 = scmp.ne.s32.totalorder %s70, %s72
      %p76 = scmp.eq.s32.totalorder %s15, 0
      %p77 = por %p75, %p76
      %p78 = scmp.ne.s32.totalorder %s70, %s72
      %p79 = scmp.eq.s32.totalorder %s20, 1
      %p80 = por %p78, %p79
      %p81 = scmp.ne.s32.totalorder %s72, %s73
      %p82 = scmp.eq.s32.totalorder %s20, 0
      %p83 = por %p81, %p82
      %p84 = scmp.ne.s32.totalorder %s72, %s73
      %p85 = scmp.eq.s32.totalorder %s21, 1
      %p86 = por %p84, %p85
      %p88 = scmp.ne.s32.totalorder %s73, %s87
      %p89 = scmp.eq.s32.totalorder %s21, 0
      %p90 = por %p88, %p89
      %s92 = sadd.s32 %s91, 1
      %p95 = scmp.eq.s32.totalorder %s15, 1
      %p96 = scmp.ne.s32.totalorder %s91, %s93
      %p97 = scmp.eq.s32.totalorder %s15, 0
      %p98 = por %p96, %p97
      %p99 = scmp.ne.s32.totalorder %s91, %s93
      %p100 = scmp.eq.s32.totalorder %s20, 1
      %p101 = por %p99, %p100
      %p102 = scmp.ne.s32.totalorder %s93, %s94
      %p103 = scmp.eq.s32.totalorder %s20, 0
      %p104 = por %p102, %p103
      %p105 = scmp.ne.s32.totalorder %s93, %s94
      %p106 = scmp.eq.s32.totalorder %s21, 1
      %p107 = por %p105, %p106
      %p109 = scmp.ne.s32.totalorder %s94, %s108
      %p110 = scmp.eq.s32.totalorder %s21, 0
      %p111 = por %p109, %p110
      %s113 = sadd.s32 %s112, 1
      %p116 = scmp.eq.s32.totalorder %s15, 1
      %p117 = scmp.ne.s32.totalorder %s112, %s114
      %p118 = scmp.eq.s32.totalorder %s15, 0
      %p119 = por %p117, %p118
      %p120 = scmp.ne.s32.totalorder %s112, %s114
      %p121 = scmp.eq.s32.totalorder %s20, 1
      %p122 = por %p120, %p121
      %p123 = scmp.ne.s32.totalorder %s114, %s115
      %p124 = scmp.eq.s32.totalorder %s20, 0
      %p125 = por %p123, %p124
      %p126 = scmp.ne.s32.totalorder %s114, %s115
      %p127 = scmp.eq.s32.totalorder %s21, 1
      %p128 = por %p126, %p127
      %p130 = scmp.ne.s32.totalorder %s115, %s129
      %p131 = scmp.eq.s32.totalorder %s21, 0
      %p132 = por %p130, %p131
      %s134 = sadd.s32 %s133, 1
      %p137 = scmp.eq.s32.totalorder %s15, 1
      %p138 = scmp.ne.s32.totalorder %s133, %s135
      %p139 = scmp.eq.s32.totalorder %s15, 0
      %p140 = por %p138, %p139
      %p141 = scmp.ne.s32.totalorder %s133, %s135
      %p142 = scmp.eq.s32.totalorder %s20, 1
      %p143 = por %p141, %p142
      %p144 = scmp.ne.s32.totalorder %s135, %s136
      %p145 = scmp.eq.s32.totalorder %s20, 0
      %p146 = por %p144, %p145
      %p147 = scmp.ne.s32.totalorder %s135, %s136
      %p148 = scmp.eq.s32.totalorder %s21, 1
      %p149 = por %p147, %p148
      %p151 = scmp.ne.s32.totalorder %s136, %s150
      %p152 = scmp.eq.s32.totalorder %s21, 0
      %p153 = por %p151, %p152
      %s154 = ssub.s32 %s15, %s22
      %p155 = scmp.eq.s32.totalorder %s154, 0
      %s157 = sadd.s32 %s156, 1
      %s158 = scalar_select %p155, %s156, %s157
      %p161 = pneg %p155
      %p162 = scmp.eq.s32.totalorder %s15, 1
      %p163 = por %p161, %p162
      %p164 = scmp.ne.s32.totalorder %s156, %s159
      %p165 = scmp.eq.s32.totalorder %s15, 0
      %p166 = por %p164, %p165
      %p167 = scmp.ne.s32.totalorder %s156, %s159
      %p168 = scmp.eq.s32.totalorder %s20, 1
      %p169 = por %p167, %p168
      %p170 = scmp.ne.s32.totalorder %s159, %s160
      %p171 = scmp.eq.s32.totalorder %s20, 0
      %p172 = por %p170, %p171
      %p173 = scmp.ne.s32.totalorder %s159, %s160
      %p174 = scmp.eq.s32.totalorder %s21, 1
      %p175 = por %p173, %p174
      %p177 = scmp.ne.s32.totalorder %s160, %s176
      %p178 = scmp.eq.s32.totalorder %s21, 0
      %p179 = por %p177, %p178
      %p180 = scmp.le.s32.totalorder 1, %s15
      %p181 = scmp.lt.s32.totalorder %s15, 3
      %p182 = pnand %p180, %p181
      %p183 = pneg %p182
      // Predicated region
      $region9: #{_lambda_.1} parent=5 // pred_check
        _
      $region10: #{_lambda_.1} parent=5 // pred_check_branch
        %185 = sbr.rel (%p182) target = $region12
      $region11: #{_lambda_.1} parent=5 // pred_region
        %s186 = ssub.s32 %s15, 1
        // Predicated region
        $region13: #{_lambda_.1} parent=11 // pred_check
          %p187 = pneg %p62
        $region14: #{_lambda_.1} parent=11 // pred_check_branch
          %189 = sbr.rel (%p187) target = $region16
        $region15: #{_lambda_.1} parent=11 // pred_region
          %s191 = ssub.s32 512, 512
          %192 = vsyncadd [#allocation3], %s191
          %s193 = sshll.u32 [#allocation2], 4
          %s194 = int_to_ptr.vmem [resolvable:$true] %s193
          %199 = dma.hbm_to_vmem [thread:$0]  %s1, 512, %s194, [#allocation3], 256, 256, 16
        $region16: #{_lambda_.1} parent=11 // pred_fallthru
          _
        // Predicated region
        $region17: #{_lambda_.1} parent=11 // pred_check
          %p200 = pneg %p83
        $region18: #{_lambda_.1} parent=11 // pred_check_branch
          %202 = sbr.rel (%p200) target = $region20
        $region19: #{_lambda_.1} parent=11 // pred_region
          %s204 = ssub.s32 512, 512
          %205 = vsyncadd [#allocation5], %s204
          %s206 = sshll.u32 [#allocation4], 4
          %s207 = int_to_ptr.vmem [resolvable:$true] %s206
          %212 = dma.hbm_to_vmem [thread:$0]  %s2, 512, %s207, [#allocation5], 128, 128, 8
        $region20: #{_lambda_.1} parent=11 // pred_fallthru
          _
        // Predicated region
        $region21: #{_lambda_.1} parent=11 // pred_check
          %p213 = pneg %p104
        $region22: #{_lambda_.1} parent=11 // pred_check_branch
          %215 = sbr.rel (%p213) target = $region24
        $region23: #{_lambda_.1} parent=11 // pred_region
          %s217 = ssub.s32 128, 128
          %218 = vsyncadd [#allocation5], %s217
          %s220 = sshll.u32 [#allocation6], 4
          %s221 = int_to_ptr.vmem [resolvable:$true] %s220
          %223 = dma.hbm_to_vmem [thread:$0]  %s3, 128, %s221, [#allocation5]
        $region24: #{_lambda_.1} parent=11 // pred_fallthru
          _
        // Predicated region
        $region25: #{_lambda_.1} parent=11 // pred_check
          %p224 = pneg %p125
        $region26: #{_lambda_.1} parent=11 // pred_check_branch
          %226 = sbr.rel (%p224) target = $region28
        $region27: #{_lambda_.1} parent=11 // pred_region
          %s228 = ssub.s32 512, 512
          %229 = vsyncadd [#allocation8], %s228
          %s230 = sshll.u32 [#allocation7], 4
          %s231 = int_to_ptr.vmem [resolvable:$true] %s230
          %236 = dma.hbm_to_vmem [thread:$0]  %s4, 512, %s231, [#allocation8], 128, 128, 8
        $region28: #{_lambda_.1} parent=11 // pred_fallthru
          _
        // Predicated region
        $region29: #{_lambda_.1} parent=11 // pred_check
          %p237 = pneg %p146
        $region30: #{_lambda_.1} parent=11 // pred_check_branch
          %239 = sbr.rel (%p237) target = $region32
        $region31: #{_lambda_.1} parent=11 // pred_region
          %s241 = ssub.s32 128, 128
          %242 = vsyncadd [#allocation8], %s241
          %s244 = sshll.u32 [#allocation9], 4
          %s245 = int_to_ptr.vmem [resolvable:$true] %s244
          %247 = dma.hbm_to_vmem [thread:$0]  %s5, 128, %s245, [#allocation8]
        $region32: #{_lambda_.1} parent=11 // pred_fallthru
          _
      $region12: #{_lambda_.1} parent=5 // pred_fallthru
        _
      %p248 = scmp.lt.s32.totalorder %s15, 2
      // Predicated region
      $region33: #{_lambda_.1} parent=5 // pred_check
        %p249 = pneg %p248
      $region34: #{_lambda_.1} parent=5 // pred_check_branch
        %251 = sbr.rel (%p249) target = $region36
      $region35: #{_lambda_.1} parent=5 // pred_region
        // Predicated region
        $region37: #{_lambda_.1} parent=35 // pred_check
          %p252 = pneg %p35
        $region38: #{_lambda_.1} parent=35 // pred_check_branch
          %254 = sbr.rel (%p252) target = $region40
        $region39: #{_lambda_.1} parent=35 // pred_region
          %p255 = scmp.lt.s32.totalorder %s15, 1
          %s256 = scalar_select %p255, %s15, 1
          %s257 = smul.addr %s256, 2
          %s258 = smul.addr %s257, 8
          %s259 = scalar_lea.vmem %s0, %s258
        $region40: #{_lambda_.1} parent=35 // pred_fallthru
          _
      $region36: #{_lambda_.1} parent=5 // pred_fallthru
        _
      %p260 = scmp.le.s32.totalorder 1, %s15
      %p261 = scmp.lt.s32.totalorder %s15, 3
      %p262 = pnand %p260, %p261
      %p263 = pneg %p262
      // Predicated region
      $region41: #{_lambda_.1} parent=5 // pred_check
        _
      $region42: #{_lambda_.1} parent=5 // pred_check_branch
        %265 = sbr.rel (%p262) target = $region44
      $region43: #{_lambda_.1} parent=5 // pred_region
        %s266 = ssub.s32 %s15, 1
        // Predicated region
        $region45: #{_lambda_.1} parent=43 // pred_check
          %p267 = pneg %p62
        $region46: #{_lambda_.1} parent=43 // pred_check_branch
          %269 = sbr.rel (%p267) target = $region48
        $region47: #{_lambda_.1} parent=43 // pred_region
          %270 = dma.done [#allocation3], 512
        $region48: #{_lambda_.1} parent=43 // pred_fallthru
          _
        // Predicated region
        $region49: #{_lambda_.1} parent=43 // pred_check
          %p271 = pneg %p83
        $region50: #{_lambda_.1} parent=43 // pred_check_branch
          %273 = sbr.rel (%p271) target = $region52
        $region51: #{_lambda_.1} parent=43 // pred_region
          %274 = dma.done [#allocation5], 512
        $region52: #{_lambda_.1} parent=43 // pred_fallthru
          _
        // Predicated region
        $region53: #{_lambda_.1} parent=43 // pred_check
          %p275 = pneg %p104
        $region54: #{_lambda_.1} parent=43 // pred_check_branch
          %277 = sbr.rel (%p275) target = $region56
        $region55: #{_lambda_.1} parent=43 // pred_region
          %278 = dma.done [#allocation5], 128
        $region56: #{_lambda_.1} parent=43 // pred_fallthru
          _
        // Predicated region
        $region57: #{_lambda_.1} parent=43 // pred_check
          %p279 = pneg %p125
        $region58: #{_lambda_.1} parent=43 // pred_check_branch
          %281 = sbr.rel (%p279) target = $region60
        $region59: #{_lambda_.1} parent=43 // pred_region
          %282 = dma.done [#allocation8], 512
        $region60: #{_lambda_.1} parent=43 // pred_fallthru
          _
        // Predicated region
        $region61: #{_lambda_.1} parent=43 // pred_check
          %p283 = pneg %p146
        $region62: #{_lambda_.1} parent=43 // pred_check_branch
          %285 = sbr.rel (%p283) target = $region64
        $region63: #{_lambda_.1} parent=43 // pred_region
          %286 = dma.done [#allocation8], 128
        $region64: #{_lambda_.1} parent=43 // pred_fallthru
          _
        %p287 = scmp.lt.s32.totalorder %s20, 1
        %s288 = scalar_select %p287, %s20, 1
        %s289 = smul.addr %s288, 2
        %s290 = smul.addr %s289, 8
        %s291 = scalar_lea.vmem %s0, %s290
        %p292 = pneg %p41
        %p293 = pneg %p38
        %p294 = pneg %p62
        %p295 = pneg %p59
        %p296 = pneg %p83
        %p297 = pneg %p80
        %p298 = pneg %p104
        %p299 = pneg %p101
        %p300 = pneg %p125
        %p301 = pneg %p122
        %p302 = pneg %p146
        %p303 = pneg %p143
        %p304 = pneg %p172
        %p305 = pneg %p169
        %p306 = scmp.lt.s32.totalorder %s20, 1
        %s307 = scalar_select %p306, %s20, 1
        %s308 = smul.addr %s307, 32
        %s309 = smul.addr %s308, 8
        %s310 = scalar_lea.vmem %s6, %s309
        %p311 = scmp.lt.s32.totalorder %s20, 1
        %s312 = scalar_select %p311, %s20, 1
        %s313 = smul.addr %s312, 2
        %s314 = smul.addr %s313, 8
        %s315 = scalar_lea.vmem %s0, %s314
        %p316 = scmp.lt.s32.totalorder %s20, 1
        %s317 = scalar_select %p316, %s20, 1
        %s318 = smul.addr %s317, 32
        %s319 = smul.addr %s318, 8
        %s320 = scalar_lea.vmem %s6, %s319
        %v321 = vld [vmem:[#allocation2] sm:$0xff]
        %v322 = vld [vmem:[#allocation2 + $0x8] sm:$0xff]
        %v323 = vld [vmem:[#allocation2 + $0x10] sm:$0x1]
        %v324 = vld [vmem:[#allocation2 + $0x18] sm:$0x1]
        %v325 = vld [vmem:[%s315] sm:$0xff]
        %v326 = vld [vmem:[%s315 + $0x8] sm:$0xff]
        %v327 = vld [vmem:[#allocation4] sm:$0xff]
        %v328 = vld [vmem:[#allocation4 + $0x8] sm:$0xff]
        %v329 = vld [vmem:[#allocation4 + $0x10] sm:$0xff]
        %v330 = vld [vmem:[#allocation4 + $0x18] sm:$0xff]
        %v331 = vld [vmem:[#allocation6] sm:$0xff]
        %334 = vrot.lane.b32.xlu0 %v325, 17
        %v335 = vpop.permute.xlu0 %334
        %336 = vrot.lane.b32.xlu0 %v326, 17
        %v337 = vpop.permute.xlu0 %336
        %vm338 = vcmask 138240
        %v339 = vsel %vm338, %v335, %v337
        %v343 = vsel %vm338, 0.0, %v335
        %v344 = vsel %vm338, %v337, 0.0
        %v345 = vlaneseq
        %v346 = vshrl.u32 %v345, 7
        %v347 = vsub.s32 0, %v346
        %v348 = vrot.slane %v321, %v347
        %v349 = vlaneseq
        %v350 = vshrl.u32 %v349, 7
        %v351 = vsub.s32 0, %v350
        %v352 = vrot.slane %v322, %v351
        %355 = vrot.lane.b32.xlu0 %v348, 17
        %v356 = vpop.permute.xlu0 %355
        %357 = vrot.lane.b32.xlu0 %v352, 17
        %v358 = vpop.permute.xlu0 %357
        %v359 = vsel %vm338, %v356, %v358
        %v363 = vmul.f32 %v343, %v356
        %v364 = vmul.f32 %v339, %v359
        %v365 = vmul.f32 %v344, %v358
        %v366 = vlaneseq
        %v367 = vshrl.u32 %v366, 7
        %v368 = vsub.s32 1, %v367
        %v369 = vrot.slane %v321, %v368
        %v370 = vlaneseq
        %v371 = vshrl.u32 %v370, 7
        %v372 = vsub.s32 1, %v371
        %v373 = vrot.slane %v322, %v372
        %376 = vrot.lane.b32.xlu0 %v369, 16
        %v377 = vpop.permute.xlu0 %376
        %378 = vrot.lane.b32.xlu0 %v373, 16
        %v379 = vpop.permute.xlu0 %378
        %vm380 = vcmask 130048
        %v381 = vsel %vm380, %v377, %v379
        %v385 = vmul.f32 %v343, %v377
        %v386 = vmul.f32 %v339, %v381
        %v387 = vmul.f32 %v344, %v379
        %v388 = vlaneseq
        %v389 = vshrl.u32 %v388, 7
        %v390 = vsub.s32 2, %v389
        %v391 = vrot.slane %v321, %v390
        %v392 = vlaneseq
        %v393 = vshrl.u32 %v392, 7
        %v394 = vsub.s32 2, %v393
        %v395 = vrot.slane %v322, %v394
        %398 = vrot.lane.b32.xlu0 %v391, 1
        %v399 = vpop.permute.xlu0 %398
        %400 = vrot.lane.b32.xlu0 %v395, 1
        %v401 = vpop.permute.xlu0 %400
        %vm402 = vcmask 7168
        %v403 = vsel %vm402, %v399, %v401
        %v407 = vmul.f32 %v343, %v399
        %v408 = vmul.f32 %v339, %v403
        %v409 = vmul.f32 %v344, %v401
        %v410 = vlaneseq
        %v411 = vshrl.u32 %v410, 7
        %v412 = vsub.s32 3, %v411
        %v413 = vrot.slane %v321, %v412
        %v414 = vlaneseq
        %v415 = vshrl.u32 %v414, 7
        %v416 = vsub.s32 3, %v415
        %v417 = vrot.slane %v322, %v416
        %v418 = vmul.f32 %v343, %v413
        %v419 = vmul.f32 %v339, %v417
        %423 = vrot.lane.b32.xlu0 %v385, 1
        %v424 = vpop.permute.xlu0 %423
        %425 = vrot.lane.b32.xlu0 %v386, 1
        %v426 = vpop.permute.xlu0 %425
        %427 = vrot.lane.b32.xlu0 %v387, 1
        %v428 = vpop.permute.xlu0 %427
        %v429 = vsel %vm402, %v424, %v426
        %v430 = vsel %vm402, %v426, %v428
        %434 = vrot.lane.b32.xlu0 %v407, 16
        %v435 = vpop.permute.xlu0 %434
        %436 = vrot.lane.b32.xlu0 %v408, 16
        %v437 = vpop.permute.xlu0 %436
        %438 = vrot.lane.b32.xlu0 %v409, 16
        %v439 = vpop.permute.xlu0 %438
        %v440 = vsel %vm380, %v435, %v437
        %v441 = vsel %vm380, %v437, %v439
        %444 = vrot.lane.b32.xlu0 %v418, 17
        %v445 = vpop.permute.xlu0 %444
        %446 = vrot.lane.b32.xlu0 %v419, 17
        %v447 = vpop.permute.xlu0 %446
        %v448 = vsel %vm338, %v445, %v447
        %450 = vset.pattern.permute.xlu0 0
        %451 = vperm.xlu0 %450, %v331
        %v452 = vpop.permute.xlu0 %451
        %457 = vrot.lane.b32.xlu0 %v363, 111
        %v458 = vpop.permute.xlu0 %457
        %459 = vrot.lane.b32.xlu0 %v364, 111
        %v460 = vpop.permute.xlu0 %459
        %461 = vrot.lane.b32.xlu0 %v365, 111
        %v462 = vpop.permute.xlu0 %461
        %463 = vrot.lane.b32.xlu0 %v424, 111
        %v464 = vpop.permute.xlu0 %463
        %465 = vrot.lane.b32.xlu0 %v429, 111
        %v466 = vpop.permute.xlu0 %465
        %467 = vrot.lane.b32.xlu0 %v430, 111
        %v468 = vpop.permute.xlu0 %467
        %469 = vrot.lane.b32.xlu0 %v435, 111
        %v470 = vpop.permute.xlu0 %469
        %471 = vrot.lane.b32.xlu0 %v440, 111
        %v472 = vpop.permute.xlu0 %471
        %473 = vrot.lane.b32.xlu0 %v441, 111
        %v474 = vpop.permute.xlu0 %473
        %475 = vrot.lane.b32.xlu0 %v445, 111
        %v476 = vpop.permute.xlu0 %475
        %477 = vrot.lane.b32.xlu0 %v448, 111
        %v478 = vpop.permute.xlu0 %477
        %479 = vrot.lane.b32.xlu0 %v447, 111
        %v480 = vpop.permute.xlu0 %479
        %vm481 = vcmask 908288
        %v482 = vsel %vm481, %v458, %v460
        %v483 = vsel %vm481, %v460, %v462
        %v484 = vsel %vm481, %v464, %v466
        %v485 = vsel %vm481, %v466, %v468
        %v486 = vsel %vm481, %v470, %v472
        %v487 = vsel %vm481, %v472, %v474
        %v488 = vsel %vm481, %v476, %v478
        %v489 = vsel %vm481, %v478, %v480
        %vm498 = vcmask 261120
        %v500 = vsel %vm498, %v327, 0
        %502 = vmatprep.subr.mxu0 0.0
        %503 = vmatpush1.msra.mxu0 0.0
        %504 = vmatprep.subr.mxu0 0.0
        %505 = vmatpush1.msra.mxu0 0.0
        %506 = vmatprep.subr.mxu0 0.0
        %507 = vmatpush1.msra.mxu0 0.0
        %508 = vmatprep.subr.mxu0 0.0
        %509 = vmatpush1.msra.mxu0 0.0
        %510 = vmatprep.subr.mxu0 0.0
        %511 = vmatpush1.msra.mxu0 0.0
        %512 = vmatprep.subr.mxu0 0.0
        %513 = vmatpush1.msra.mxu0 0.0
        %514 = vmatprep.subr.mxu0 0.0
        %515 = vmatpush1.msra.mxu0 0.0
        %516 = vmatprep.subr.mxu0 0.0
        %517 = vmatpush1.msra.mxu0 0.0
        %518 = vmatprep.subr.mxu0 0.0
        %519 = vmatpush1.msra.mxu0 0.0
        %520 = vmatprep.subr.mxu0 0.0
        %521 = vmatpush1.msra.mxu0 0.0
        %522 = vmatprep.subr.mxu0 0.0
        %523 = vmatpush1.msra.mxu0 0.0
        %524 = vmatprep.subr.mxu0 0.0
        %525 = vmatpush1.msra.mxu0 0.0
        %526 = vmatprep.subr.mxu0 %v489
        %527 = vmatpush1.msra.mxu0 %v488
        %528 = vmatprep.subr.mxu0 %v487
        %529 = vmatpush1.msra.mxu0 %v486
        %530 = vmatprep.subr.mxu0 %v485
        %531 = vmatpush1.msra.mxu0 %v484
        %532 = vmatprep.subr.mxu0 %v483
        %533 = vmatpush1.msra.mxu0 %v482
        %534 = vmatprep.subr.mxu0 0.0
        %535 = vmatpush2.msra.mxu0 0.0
        %536 = vmatprep.subr.mxu0 0.0
        %537 = vmatpush2.msra.mxu0 0.0
        %538 = vmatprep.subr.mxu0 0.0
        %539 = vmatpush2.msra.mxu0 0.0
        %540 = vmatprep.subr.mxu0 0.0
        %541 = vmatpush2.msra.mxu0 0.0
        %542 = vmatprep.subr.mxu0 0.0
        %543 = vmatpush2.msra.mxu0 0.0
        %544 = vmatprep.subr.mxu0 0.0
        %545 = vmatpush2.msra.mxu0 0.0
        %546 = vmatprep.subr.mxu0 0.0
        %547 = vmatpush2.msra.mxu0 0.0
        %548 = vmatprep.subr.mxu0 0.0
        %549 = vmatpush2.msra.mxu0 0.0
        %550 = vmatprep.subr.mxu0 0.0
        %551 = vmatpush2.msra.mxu0 0.0
        %552 = vmatprep.subr.mxu0 0.0
        %553 = vmatpush2.msra.mxu0 0.0
        %554 = vmatprep.subr.mxu0 0.0
        %555 = vmatpush2.msra.mxu0 0.0
        %556 = vmatprep.subr.mxu0 0.0
        %557 = vmatpush2.msra.mxu0 0.0
        %558 = vmatprep.subr.mxu0 0.0
        %559 = vmatpush2.msra.mxu0 0.0
        %560 = vmatprep.subr.mxu0 0.0
        %561 = vmatpush2.msra.mxu0 0.0
        %562 = vmatprep.subr.mxu0 0.0
        %563 = vmatpush2.msra.mxu0 0.0
        %564 = vmatprep.subr.mxu0 0.0
        %565 = vmatpush2.msra.mxu0 0.0
        %566 = vmatprep.mubr.f32.mxu0 0.0
        %567 = vmatmul.mubr.f32.gmra.mxu0 %v500
        %v568 = vpop.f32.mrf.mxu0
        %v569 = vadd.f32 %v452, %v568
        %v570 = vpop.f32.mrf.mxu0
        %v571 = vadd.f32 %v452, %v570
        %572 = vdwg.mxu0
        %v573 = vmax.f32 %v569, 0.0
        %v574 = vmax.f32 %v571, 0.0
        %v575 = vlaneseq
        %v576 = vshrl.u32 %v575, 7
        %v577 = vsub.s32 4, %v576
        %v578 = vrot.slane %v321, %v577
        %v579 = vlaneseq
        %v580 = vshrl.u32 %v579, 7
        %v581 = vsub.s32 4, %v580
        %v582 = vrot.slane %v322, %v581
        %585 = vrot.lane.b32.xlu0 %v578, 18
        %v586 = vpop.permute.xlu0 %585
        %587 = vrot.lane.b32.xlu0 %v582, 18
        %v588 = vpop.permute.xlu0 %587
        %vm589 = vcmask 146432
        %v590 = vsel %vm589, %v586, %v588
        %v594 = vmul.f32 %v343, %v586
        %v595 = vmul.f32 %v339, %v590
        %v596 = vmul.f32 %v344, %v588
        %v597 = vlaneseq
        %v598 = vshrl.u32 %v597, 7
        %v599 = vsub.s32 5, %v598
        %v600 = vrot.slane %v321, %v599
        %v601 = vlaneseq
        %v602 = vshrl.u32 %v601, 7
        %v603 = vsub.s32 5, %v602
        %v604 = vrot.slane %v322, %v603
        %607 = vrot.lane.b32.xlu0 %v600, 2
        %v608 = vpop.permute.xlu0 %607
        %609 = vrot.lane.b32.xlu0 %v604, 2
        %v610 = vpop.permute.xlu0 %609
        %vm611 = vcmask 15360
        %v612 = vsel %vm611, %v608, %v610
        %v616 = vmul.f32 %v343, %v608
        %v617 = vmul.f32 %v339, %v612
        %v618 = vmul.f32 %v344, %v610
        %619 = vrot.lane.b32.xlu0 %v363, 1
        %v620 = vpop.permute.xlu0 %619
        %621 = vrot.lane.b32.xlu0 %v364, 1
        %v622 = vpop.permute.xlu0 %621
        %623 = vrot.lane.b32.xlu0 %v365, 1
        %v624 = vpop.permute.xlu0 %623
        %v625 = vsel %vm402, %v620, %v622
        %v626 = vsel %vm402, %v622, %v624
        %630 = vrot.lane.b32.xlu0 %v616, 16
        %v631 = vpop.permute.xlu0 %630
        %632 = vrot.lane.b32.xlu0 %v617, 16
        %v633 = vpop.permute.xlu0 %632
        %634 = vrot.lane.b32.xlu0 %v618, 16
        %v635 = vpop.permute.xlu0 %634
        %v636 = vsel %vm380, %v631, %v633
        %v637 = vsel %vm380, %v633, %v635
        %638 = vrot.lane.b32.xlu0 %v407, 17
        %v639 = vpop.permute.xlu0 %638
        %640 = vrot.lane.b32.xlu0 %v408, 17
        %v641 = vpop.permute.xlu0 %640
        %642 = vrot.lane.b32.xlu0 %v409, 17
        %v643 = vpop.permute.xlu0 %642
        %v644 = vsel %vm338, %v639, %v641
        %v645 = vsel %vm338, %v641, %v643
        %649 = vrot.lane.b32.xlu0 %v594, 110
        %v650 = vpop.permute.xlu0 %649
        %651 = vrot.lane.b32.xlu0 %v595, 110
        %v652 = vpop.permute.xlu0 %651
        %653 = vrot.lane.b32.xlu0 %v596, 110
        %v654 = vpop.permute.xlu0 %653
        %655 = vrot.lane.b32.xlu0 %v620, 110
        %v656 = vpop.permute.xlu0 %655
        %657 = vrot.lane.b32.xlu0 %v625, 110
        %v658 = vpop.permute.xlu0 %657
        %659 = vrot.lane.b32.xlu0 %v626, 110
        %v660 = vpop.permute.xlu0 %659
        %661 = vrot.lane.b32.xlu0 %v631, 110
        %v662 = vpop.permute.xlu0 %661
        %663 = vrot.lane.b32.xlu0 %v636, 110
        %v664 = vpop.permute.xlu0 %663
        %665 = vrot.lane.b32.xlu0 %v637, 110
        %v666 = vpop.permute.xlu0 %665
        %667 = vrot.lane.b32.xlu0 %v639, 110
        %v668 = vpop.permute.xlu0 %667
        %669 = vrot.lane.b32.xlu0 %v644, 110
        %v670 = vpop.permute.xlu0 %669
        %671 = vrot.lane.b32.xlu0 %v645, 110
        %v672 = vpop.permute.xlu0 %671
        %vm673 = vcmask 900096
        %v674 = vsel %vm673, %v650, %v652
        %v675 = vsel %vm673, %v652, %v654
        %v676 = vsel %vm673, %v656, %v658
        %v677 = vsel %vm673, %v658, %v660
        %v678 = vsel %vm673, %v662, %v664
        %v679 = vsel %vm673, %v664, %v666
        %v680 = vsel %vm673, %v668, %v670
        %v681 = vsel %vm673, %v670, %v672
        %v691 = vsel %vm498, %v328, 0
        %693 = vmatprep.subr.mxu0 0.0
        %694 = vmatpush1.msra.mxu0 0.0
        %695 = vmatprep.subr.mxu0 0.0
        %696 = vmatpush1.msra.mxu0 0.0
        %697 = vmatprep.subr.mxu0 0.0
        %698 = vmatpush1.msra.mxu0 0.0
        %699 = vmatprep.subr.mxu0 0.0
        %700 = vmatpush1.msra.mxu0 0.0
        %701 = vmatprep.subr.mxu0 0.0
        %702 = vmatpush1.msra.mxu0 0.0
        %703 = vmatprep.subr.mxu0 0.0
        %704 = vmatpush1.msra.mxu0 0.0
        %705 = vmatprep.subr.mxu0 0.0
        %706 = vmatpush1.msra.mxu0 0.0
        %707 = vmatprep.subr.mxu0 0.0
        %708 = vmatpush1.msra.mxu0 0.0
        %709 = vmatprep.subr.mxu0 0.0
        %710 = vmatpush1.msra.mxu0 0.0
        %711 = vmatprep.subr.mxu0 0.0
        %712 = vmatpush1.msra.mxu0 0.0
        %713 = vmatprep.subr.mxu0 0.0
        %714 = vmatpush1.msra.mxu0 0.0
        %715 = vmatprep.subr.mxu0 0.0
        %716 = vmatpush1.msra.mxu0 0.0
        %717 = vmatprep.subr.mxu0 %v681
        %718 = vmatpush1.msra.mxu0 %v680
        %719 = vmatprep.subr.mxu0 %v679
        %720 = vmatpush1.msra.mxu0 %v678
        %721 = vmatprep.subr.mxu0 %v677
        %722 = vmatpush1.msra.mxu0 %v676
        %723 = vmatprep.subr.mxu0 %v675
        %724 = vmatpush1.msra.mxu0 %v674
        %725 = vmatprep.subr.mxu0 0.0
        %726 = vmatpush2.msra.mxu0 0.0
        %727 = vmatprep.subr.mxu0 0.0
        %728 = vmatpush2.msra.mxu0 0.0
        %729 = vmatprep.subr.mxu0 0.0
        %730 = vmatpush2.msra.mxu0 0.0
        %731 = vmatprep.subr.mxu0 0.0
        %732 = vmatpush2.msra.mxu0 0.0
        %733 = vmatprep.subr.mxu0 0.0
        %734 = vmatpush2.msra.mxu0 0.0
        %735 = vmatprep.subr.mxu0 0.0
        %736 = vmatpush2.msra.mxu0 0.0
        %737 = vmatprep.subr.mxu0 0.0
        %738 = vmatpush2.msra.mxu0 0.0
        %739 = vmatprep.subr.mxu0 0.0
        %740 = vmatpush2.msra.mxu0 0.0
        %741 = vmatprep.subr.mxu0 0.0
        %742 = vmatpush2.msra.mxu0 0.0
        %743 = vmatprep.subr.mxu0 0.0
        %744 = vmatpush2.msra.mxu0 0.0
        %745 = vmatprep.subr.mxu0 0.0
        %746 = vmatpush2.msra.mxu0 0.0
        %747 = vmatprep.subr.mxu0 0.0
        %748 = vmatpush2.msra.mxu0 0.0
        %749 = vmatprep.subr.mxu0 0.0
        %750 = vmatpush2.msra.mxu0 0.0
        %751 = vmatprep.subr.mxu0 0.0
        %752 = vmatpush2.msra.mxu0 0.0
        %753 = vmatprep.subr.mxu0 0.0
        %754 = vmatpush2.msra.mxu0 0.0
        %755 = vmatprep.subr.mxu0 0.0
        %756 = vmatpush2.msra.mxu0 0.0
        %757 = vmatprep.mubr.f32.mxu0 0.0
        %758 = vmatmul.mubr.f32.gmra.mxu0 %v691
        %v759 = vpop.f32.mrf.mxu0
        %v760 = vadd.f32 %v452, %v759
        %v761 = vpop.f32.mrf.mxu0
        %v762 = vadd.f32 %v452, %v761
        %763 = vdwg.mxu0
        %v764 = vmax.f32 %v760, 0.0
        %v765 = vmax.f32 %v762, 0.0
        %v766 = vlaneseq
        %v767 = vshrl.u32 %v766, 7
        %v768 = vsub.s32 6, %v767
        %v769 = vrot.slane %v321, %v768
        %v770 = vlaneseq
        %v771 = vshrl.u32 %v770, 7
        %v772 = vsub.s32 6, %v771
        %v773 = vrot.slane %v322, %v772
        %776 = vrot.lane.b32.xlu0 %v769, 33
        %v777 = vpop.permute.xlu0 %776
        %778 = vrot.lane.b32.xlu0 %v773, 33
        %v779 = vpop.permute.xlu0 %778
        %vm780 = vcmask 269312
        %v781 = vsel %vm780, %v777, %v779
        %v785 = vmul.f32 %v343, %v777
        %v786 = vmul.f32 %v339, %v781
        %v787 = vmul.f32 %v344, %v779
        %v788 = vlaneseq
        %v789 = vshrl.u32 %v788, 7
        %v790 = vsub.s32 7, %v789
        %v791 = vrot.slane %v321, %v790
        %v792 = vlaneseq
        %v793 = vshrl.u32 %v792, 7
        %v794 = vsub.s32 7, %v793
        %v795 = vrot.slane %v322, %v794
        %798 = vrot.lane.b32.xlu0 %v791, 32
        %v799 = vpop.permute.xlu0 %798
        %800 = vrot.lane.b32.xlu0 %v795, 32
        %v801 = vpop.permute.xlu0 %800
        %v802 = vsel %vm498, %v799, %v801
        %v806 = vmul.f32 %v343, %v799
        %v807 = vmul.f32 %v339, %v802
        %v808 = vmul.f32 %v344, %v801
        %812 = vrot.lane.b32.xlu0 %v806, 1
        %v813 = vpop.permute.xlu0 %812
        %814 = vrot.lane.b32.xlu0 %v807, 1
        %v815 = vpop.permute.xlu0 %814
        %816 = vrot.lane.b32.xlu0 %v808, 1
        %v817 = vpop.permute.xlu0 %816
        %v818 = vsel %vm402, %v813, %v815
        %v819 = vsel %vm402, %v815, %v817
        %820 = vrot.lane.b32.xlu0 %v363, 16
        %v821 = vpop.permute.xlu0 %820
        %822 = vrot.lane.b32.xlu0 %v364, 16
        %v823 = vpop.permute.xlu0 %822
        %824 = vrot.lane.b32.xlu0 %v365, 16
        %v825 = vpop.permute.xlu0 %824
        %v826 = vsel %vm380, %v821, %v823
        %v827 = vsel %vm380, %v823, %v825
        %828 = vrot.lane.b32.xlu0 %v385, 17
        %v829 = vpop.permute.xlu0 %828
        %830 = vrot.lane.b32.xlu0 %v386, 17
        %v831 = vpop.permute.xlu0 %830
        %832 = vrot.lane.b32.xlu0 %v387, 17
        %v833 = vpop.permute.xlu0 %832
        %v834 = vsel %vm338, %v829, %v831
        %v835 = vsel %vm338, %v831, %v833
        %839 = vrot.lane.b32.xlu0 %v785, 95
        %v840 = vpop.permute.xlu0 %839
        %841 = vrot.lane.b32.xlu0 %v786, 95
        %v842 = vpop.permute.xlu0 %841
        %843 = vrot.lane.b32.xlu0 %v787, 95
        %v844 = vpop.permute.xlu0 %843
        %845 = vrot.lane.b32.xlu0 %v813, 95
        %v846 = vpop.permute.xlu0 %845
        %847 = vrot.lane.b32.xlu0 %v818, 95
        %v848 = vpop.permute.xlu0 %847
        %849 = vrot.lane.b32.xlu0 %v819, 95
        %v850 = vpop.permute.xlu0 %849
        %851 = vrot.lane.b32.xlu0 %v821, 95
        %v852 = vpop.permute.xlu0 %851
        %853 = vrot.lane.b32.xlu0 %v826, 95
        %v854 = vpop.permute.xlu0 %853
        %855 = vrot.lane.b32.xlu0 %v827, 95
        %v856 = vpop.permute.xlu0 %855
        %857 = vrot.lane.b32.xlu0 %v829, 95
        %v858 = vpop.permute.xlu0 %857
        %859 = vrot.lane.b32.xlu0 %v834, 95
        %v860 = vpop.permute.xlu0 %859
        %861 = vrot.lane.b32.xlu0 %v835, 95
        %v862 = vpop.permute.xlu0 %861
        %vm863 = vcmask 777216
        %v864 = vsel %vm863, %v840, %v842
        %v865 = vsel %vm863, %v842, %v844
        %v866 = vsel %vm863, %v846, %v848
        %v867 = vsel %vm863, %v848, %v850
        %v868 = vsel %vm863, %v852, %v854
        %v869 = vsel %vm863, %v854, %v856
        %v870 = vsel %vm863, %v858, %v860
        %v871 = vsel %vm863, %v860, %v862
        %v881 = vsel %vm498, %v329, 0
        %883 = vmatprep.subr.mxu0 0.0
        %884 = vmatpush1.msra.mxu0 0.0
        %885 = vmatprep.subr.mxu0 0.0
        %886 = vmatpush1.msra.mxu0 0.0
        %887 = vmatprep.subr.mxu0 0.0
        %888 = vmatpush1.msra.mxu0 0.0
        %889 = vmatprep.subr.mxu0 0.0
        %890 = vmatpush1.msra.mxu0 0.0
        %891 = vmatprep.subr.mxu0 0.0
        %892 = vmatpush1.msra.mxu0 0.0
        %893 = vmatprep.subr.mxu0 0.0
        %894 = vmatpush1.msra.mxu0 0.0
        %895 = vmatprep.subr.mxu0 0.0
        %896 = vmatpush1.msra.mxu0 0.0
        %897 = vmatprep.subr.mxu0 0.0
        %898 = vmatpush1.msra.mxu0 0.0
        %899 = vmatprep.subr.mxu0 0.0
        %900 = vmatpush1.msra.mxu0 0.0
        %901 = vmatprep.subr.mxu0 0.0
        %902 = vmatpush1.msra.mxu0 0.0
        %903 = vmatprep.subr.mxu0 0.0
        %904 = vmatpush1.msra.mxu0 0.0
        %905 = vmatprep.subr.mxu0 0.0
        %906 = vmatpush1.msra.mxu0 0.0
        %907 = vmatprep.subr.mxu0 %v871
        %908 = vmatpush1.msra.mxu0 %v870
        %909 = vmatprep.subr.mxu0 %v869
        %910 = vmatpush1.msra.mxu0 %v868
        %911 = vmatprep.subr.mxu0 %v867
        %912 = vmatpush1.msra.mxu0 %v866
        %913 = vmatprep.subr.mxu0 %v865
        %914 = vmatpush1.msra.mxu0 %v864
        %915 = vmatprep.subr.mxu0 0.0
        %916 = vmatpush2.msra.mxu0 0.0
        %917 = vmatprep.subr.mxu0 0.0
        %918 = vmatpush2.msra.mxu0 0.0
        %919 = vmatprep.subr.mxu0 0.0
        %920 = vmatpush2.msra.mxu0 0.0
        %921 = vmatprep.subr.mxu0 0.0
        %922 = vmatpush2.msra.mxu0 0.0
        %923 = vmatprep.subr.mxu0 0.0
        %924 = vmatpush2.msra.mxu0 0.0
        %925 = vmatprep.subr.mxu0 0.0
        %926 = vmatpush2.msra.mxu0 0.0
        %927 = vmatprep.subr.mxu0 0.0
        %928 = vmatpush2.msra.mxu0 0.0
        %929 = vmatprep.subr.mxu0 0.0
        %930 = vmatpush2.msra.mxu0 0.0
        %931 = vmatprep.subr.mxu0 0.0
        %932 = vmatpush2.msra.mxu0 0.0
        %933 = vmatprep.subr.mxu0 0.0
        %934 = vmatpush2.msra.mxu0 0.0
        %935 = vmatprep.subr.mxu0 0.0
        %936 = vmatpush2.msra.mxu0 0.0
        %937 = vmatprep.subr.mxu0 0.0
        %938 = vmatpush2.msra.mxu0 0.0
        %939 = vmatprep.subr.mxu0 0.0
        %940 = vmatpush2.msra.mxu0 0.0
        %941 = vmatprep.subr.mxu0 0.0
        %942 = vmatpush2.msra.mxu0 0.0
        %943 = vmatprep.subr.mxu0 0.0
        %944 = vmatpush2.msra.mxu0 0.0
        %945 = vmatprep.subr.mxu0 0.0
        %946 = vmatpush2.msra.mxu0 0.0
        %947 = vmatprep.mubr.f32.mxu0 0.0
        %948 = vmatmul.mubr.f32.gmra.mxu0 %v881
        %v949 = vpop.f32.mrf.mxu0
        %v950 = vadd.f32 %v452, %v949
        %v951 = vpop.f32.mrf.mxu0
        %v952 = vadd.f32 %v452, %v951
        %953 = vdwg.mxu0
        %v954 = vmax.f32 %v950, 0.0
        %v955 = vmax.f32 %v952, 0.0
        %v956 = vlaneseq
        %v957 = vshrl.u32 %v956, 7
        %v958 = vsub.s32 0, %v957
        %v959 = vrot.slane %v323, %v958
        %v960 = vlaneseq
        %v961 = vshrl.u32 %v960, 7
        %v962 = vsub.s32 0, %v961
        %v963 = vrot.slane %v324, %v962
        %966 = vrot.lane.b32.xlu0 %v959, 34
        %v967 = vpop.permute.xlu0 %966
        %968 = vrot.lane.b32.xlu0 %v963, 34
        %v969 = vpop.permute.xlu0 %968
        %vm970 = vcmask 277504
        %v971 = vsel %vm970, %v967, %v969
        %v975 = vmul.f32 %v343, %v967
        %v976 = vmul.f32 %v339, %v971
        %v977 = vmul.f32 %v344, %v969
        %978 = vrot.lane.b32.xlu0 %v785, 1
        %v979 = vpop.permute.xlu0 %978
        %980 = vrot.lane.b32.xlu0 %v786, 1
        %v981 = vpop.permute.xlu0 %980
        %982 = vrot.lane.b32.xlu0 %v787, 1
        %v983 = vpop.permute.xlu0 %982
        %v984 = vsel %vm402, %v979, %v981
        %v985 = vsel %vm402, %v981, %v983
        %986 = vrot.lane.b32.xlu0 %v594, 16
        %v987 = vpop.permute.xlu0 %986
        %988 = vrot.lane.b32.xlu0 %v595, 16
        %v989 = vpop.permute.xlu0 %988
        %990 = vrot.lane.b32.xlu0 %v596, 16
        %v991 = vpop.permute.xlu0 %990
        %v992 = vsel %vm380, %v987, %v989
        %v993 = vsel %vm380, %v989, %v991
        %994 = vrot.lane.b32.xlu0 %v363, 17
        %v995 = vpop.permute.xlu0 %994
        %996 = vrot.lane.b32.xlu0 %v364, 17
        %v997 = vpop.permute.xlu0 %996
        %998 = vrot.lane.b32.xlu0 %v365, 17
        %v999 = vpop.permute.xlu0 %998
        %v1000 = vsel %vm338, %v995, %v997
        %v1001 = vsel %vm338, %v997, %v999
        %1005 = vrot.lane.b32.xlu0 %v975, 94
        %v1006 = vpop.permute.xlu0 %1005
        %1007 = vrot.lane.b32.xlu0 %v976, 94
        %v1008 = vpop.permute.xlu0 %1007
        %1009 = vrot.lane.b32.xlu0 %v977, 94
        %v1010 = vpop.permute.xlu0 %1009
        %1011 = vrot.lane.b32.xlu0 %v979, 94
        %v1012 = vpop.permute.xlu0 %1011
        %1013 = vrot.lane.b32.xlu0 %v984, 94
        %v1014 = vpop.permute.xlu0 %1013
        %1015 = vrot.lane.b32.xlu0 %v985, 94
        %v1016 = vpop.permute.xlu0 %1015
        %1017 = vrot.lane.b32.xlu0 %v987, 94
        %v1018 = vpop.permute.xlu0 %1017
        %1019 = vrot.lane.b32.xlu0 %v992, 94
        %v1020 = vpop.permute.xlu0 %1019
        %1021 = vrot.lane.b32.xlu0 %v993, 94
        %v1022 = vpop.permute.xlu0 %1021
        %1023 = vrot.lane.b32.xlu0 %v995, 94
        %v1024 = vpop.permute.xlu0 %1023
        %1025 = vrot.lane.b32.xlu0 %v1000, 94
        %v1026 = vpop.permute.xlu0 %1025
        %1027 = vrot.lane.b32.xlu0 %v1001, 94
        %v1028 = vpop.permute.xlu0 %1027
        %vm1029 = vcmask 769024
        %v1030 = vsel %vm1029, %v1006, %v1008
        %v1031 = vsel %vm1029, %v1008, %v1010
        %v1032 = vsel %vm1029, %v1012, %v1014
        %v1033 = vsel %vm1029, %v1014, %v1016
        %v1034 = vsel %vm1029, %v1018, %v1020
        %v1035 = vsel %vm1029, %v1020, %v1022
        %v1036 = vsel %vm1029, %v1024, %v1026
        %v1037 = vsel %vm1029, %v1026, %v1028
        %v1047 = vsel %vm498, %v330, 0
        %1049 = vmatprep.subr.mxu0 0.0
        %1050 = vmatpush1.msra.mxu0 0.0
        %1051 = vmatprep.subr.mxu0 0.0
        %1052 = vmatpush1.msra.mxu0 0.0
        %1053 = vmatprep.subr.mxu0 0.0
        %1054 = vmatpush1.msra.mxu0 0.0
        %1055 = vmatprep.subr.mxu0 0.0
        %1056 = vmatpush1.msra.mxu0 0.0
        %1057 = vmatprep.subr.mxu0 0.0
        %1058 = vmatpush1.msra.mxu0 0.0
        %1059 = vmatprep.subr.mxu0 0.0
        %1060 = vmatpush1.msra.mxu0 0.0
        %1061 = vmatprep.subr.mxu0 0.0
        %1062 = vmatpush1.msra.mxu0 0.0
        %1063 = vmatprep.subr.mxu0 0.0
        %1064 = vmatpush1.msra.mxu0 0.0
        %1065 = vmatprep.subr.mxu0 0.0
        %1066 = vmatpush1.msra.mxu0 0.0
        %1067 = vmatprep.subr.mxu0 0.0
        %1068 = vmatpush1.msra.mxu0 0.0
        %1069 = vmatprep.subr.mxu0 0.0
        %1070 = vmatpush1.msra.mxu0 0.0
        %1071 = vmatprep.subr.mxu0 0.0
        %1072 = vmatpush1.msra.mxu0 0.0
        %1073 = vmatprep.subr.mxu0 %v1037
        %1074 = vmatpush1.msra.mxu0 %v1036
        %1075 = vmatprep.subr.mxu0 %v1035
        %1076 = vmatpush1.msra.mxu0 %v1034
        %1077 = vmatprep.subr.mxu0 %v1033
        %1078 = vmatpush1.msra.mxu0 %v1032
        %1079 = vmatprep.subr.mxu0 %v1031
        %1080 = vmatpush1.msra.mxu0 %v1030
        %1081 = vmatprep.subr.mxu0 0.0
        %1082 = vmatpush2.msra.mxu0 0.0
        %1083 = vmatprep.subr.mxu0 0.0
        %1084 = vmatpush2.msra.mxu0 0.0
        %1085 = vmatprep.subr.mxu0 0.0
        %1086 = vmatpush2.msra.mxu0 0.0
        %1087 = vmatprep.subr.mxu0 0.0
        %1088 = vmatpush2.msra.mxu0 0.0
        %1089 = vmatprep.subr.mxu0 0.0
        %1090 = vmatpush2.msra.mxu0 0.0
        %1091 = vmatprep.subr.mxu0 0.0
        %1092 = vmatpush2.msra.mxu0 0.0
        %1093 = vmatprep.subr.mxu0 0.0
        %1094 = vmatpush2.msra.mxu0 0.0
        %1095 = vmatprep.subr.mxu0 0.0
        %1096 = vmatpush2.msra.mxu0 0.0
        %1097 = vmatprep.subr.mxu0 0.0
        %1098 = vmatpush2.msra.mxu0 0.0
        %1099 = vmatprep.subr.mxu0 0.0
        %1100 = vmatpush2.msra.mxu0 0.0
        %1101 = vmatprep.subr.mxu0 0.0
        %1102 = vmatpush2.msra.mxu0 0.0
        %1103 = vmatprep.subr.mxu0 0.0
        %1104 = vmatpush2.msra.mxu0 0.0
        %1105 = vmatprep.subr.mxu0 0.0
        %1106 = vmatpush2.msra.mxu0 0.0
        %1107 = vmatprep.subr.mxu0 0.0
        %1108 = vmatpush2.msra.mxu0 0.0
        %1109 = vmatprep.subr.mxu0 0.0
        %1110 = vmatpush2.msra.mxu0 0.0
        %1111 = vmatprep.subr.mxu0 0.0
        %1112 = vmatpush2.msra.mxu0 0.0
        %1113 = vmatprep.mubr.f32.mxu0 0.0
        %1114 = vmatmul.mubr.f32.gmra.mxu0 %v1047
        %v1115 = vpop.f32.mrf.mxu0
        %v1116 = vadd.f32 %v452, %v1115
        %v1117 = vpop.f32.mrf.mxu0
        %v1118 = vadd.f32 %v452, %v1117
        %1119 = vdwg.mxu0
        %v1120 = vmax.f32 %v1116, 0.0
        %v1121 = vmax.f32 %v1118, 0.0
        %v1122 = vld [vmem:[#allocation7] sm:$0xff]
        %v1123 = vld [vmem:[#allocation7 + $0x8] sm:$0xff]
        %v1124 = vld [vmem:[#allocation7 + $0x10] sm:$0xff]
        %v1125 = vld [vmem:[#allocation7 + $0x18] sm:$0xff]
        %v1126 = vld [vmem:[#allocation9] sm:$0xff]
        %1129 = vrot.lane.b32.xlu0 %v573, 17
        %v1130 = vpop.permute.xlu0 %1129
        %1131 = vrot.lane.b32.xlu0 %v574, 17
        %v1132 = vpop.permute.xlu0 %1131
        %v1133 = vsel %vm338, %v1130, %v1132
        %v1137 = vsel %vm338, 0.0, %v1130
        %v1138 = vsel %vm338, %v1132, 0.0
        %1141 = vrot.lane.b32.xlu0 %v764, 17
        %v1142 = vpop.permute.xlu0 %1141
        %1143 = vrot.lane.b32.xlu0 %v765, 17
        %v1144 = vpop.permute.xlu0 %1143
        %v1145 = vsel %vm338, %v1142, %v1144
        %v1149 = vsel %vm338, 0.0, %v1142
        %v1150 = vsel %vm338, %v1144, 0.0
        %1153 = vrot.lane.b32.xlu0 %v954, 17
        %v1154 = vpop.permute.xlu0 %1153
        %1155 = vrot.lane.b32.xlu0 %v955, 17
        %v1156 = vpop.permute.xlu0 %1155
        %v1157 = vsel %vm338, %v1154, %v1156
        %v1161 = vsel %vm338, 0.0, %v1154
        %v1162 = vsel %vm338, %v1156, 0.0
        %1165 = vrot.lane.b32.xlu0 %v1120, 17
        %v1166 = vpop.permute.xlu0 %1165
        %1167 = vrot.lane.b32.xlu0 %v1121, 17
        %v1168 = vpop.permute.xlu0 %1167
        %v1169 = vsel %vm338, %v1166, %v1168
        %v1173 = vsel %vm338, 0.0, %v1166
        %v1174 = vsel %vm338, %v1168, 0.0
        %v1175 = vmul.f32 %v1137, %v356
        %v1176 = vmul.f32 %v1133, %v359
        %v1177 = vmul.f32 %v1138, %v358
        %v1178 = vmul.f32 %v1149, %v377
        %v1179 = vmul.f32 %v1145, %v381
        %v1180 = vmul.f32 %v1150, %v379
        %v1181 = vmul.f32 %v1161, %v399
        %v1182 = vmul.f32 %v1157, %v403
        %v1183 = vmul.f32 %v1162, %v401
        %v1184 = vmul.f32 %v1173, %v413
        %v1185 = vmul.f32 %v1169, %v417
        %1189 = vrot.lane.b32.xlu0 %v1178, 1
        %v1190 = vpop.permute.xlu0 %1189
        %1191 = vrot.lane.b32.xlu0 %v1179, 1
        %v1192 = vpop.permute.xlu0 %1191
        %1193 = vrot.lane.b32.xlu0 %v1180, 1
        %v1194 = vpop.permute.xlu0 %1193
        %v1195 = vsel %vm402, %v1190, %v1192
        %v1196 = vsel %vm402, %v1192, %v1194
        %1200 = vrot.lane.b32.xlu0 %v1181, 16
        %v1201 = vpop.permute.xlu0 %1200
        %1202 = vrot.lane.b32.xlu0 %v1182, 16
        %v1203 = vpop.permute.xlu0 %1202
        %1204 = vrot.lane.b32.xlu0 %v1183, 16
        %v1205 = vpop.permute.xlu0 %1204
        %v1206 = vsel %vm380, %v1201, %v1203
        %v1207 = vsel %vm380, %v1203, %v1205
        %1210 = vrot.lane.b32.xlu0 %v1184, 17
        %v1211 = vpop.permute.xlu0 %1210
        %1212 = vrot.lane.b32.xlu0 %v1185, 17
        %v1213 = vpop.permute.xlu0 %1212
        %v1214 = vsel %vm338, %v1211, %v1213
        %1216 = vset.pattern.permute.xlu0 0
        %1217 = vperm.xlu0 %1216, %v1126
        %v1218 = vpop.permute.xlu0 %1217
        %1223 = vrot.lane.b32.xlu0 %v1175, 111
        %v1224 = vpop.permute.xlu0 %1223
        %1225 = vrot.lane.b32.xlu0 %v1176, 111
        %v1226 = vpop.permute.xlu0 %1225
        %1227 = vrot.lane.b32.xlu0 %v1177, 111
        %v1228 = vpop.permute.xlu0 %1227
        %1229 = vrot.lane.b32.xlu0 %v1190, 111
        %v1230 = vpop.permute.xlu0 %1229
        %1231 = vrot.lane.b32.xlu0 %v1195, 111
        %v1232 = vpop.permute.xlu0 %1231
        %1233 = vrot.lane.b32.xlu0 %v1196, 111
        %v1234 = vpop.permute.xlu0 %1233
        %1235 = vrot.lane.b32.xlu0 %v1201, 111
        %v1236 = vpop.permute.xlu0 %1235
        %1237 = vrot.lane.b32.xlu0 %v1206, 111
        %v1238 = vpop.permute.xlu0 %1237
        %1239 = vrot.lane.b32.xlu0 %v1207, 111
        %v1240 = vpop.permute.xlu0 %1239
        %1241 = vrot.lane.b32.xlu0 %v1211, 111
        %v1242 = vpop.permute.xlu0 %1241
        %1243 = vrot.lane.b32.xlu0 %v1214, 111
        %v1244 = vpop.permute.xlu0 %1243
        %1245 = vrot.lane.b32.xlu0 %v1213, 111
        %v1246 = vpop.permute.xlu0 %1245
        %v1247 = vsel %vm481, %v1224, %v1226
        %v1248 = vsel %vm481, %v1226, %v1228
        %v1249 = vsel %vm481, %v1230, %v1232
        %v1250 = vsel %vm481, %v1232, %v1234
        %v1251 = vsel %vm481, %v1236, %v1238
        %v1252 = vsel %vm481, %v1238, %v1240
        %v1253 = vsel %vm481, %v1242, %v1244
        %v1254 = vsel %vm481, %v1244, %v1246
        %v1264 = vsel %vm498, %v1122, 0
        %1266 = vmatprep.subr.mxu0 0.0
        %1267 = vmatpush1.msra.mxu0 0.0
        %1268 = vmatprep.subr.mxu0 0.0
        %1269 = vmatpush1.msra.mxu0 0.0
        %1270 = vmatprep.subr.mxu0 0.0
        %1271 = vmatpush1.msra.mxu0 0.0
        %1272 = vmatprep.subr.mxu0 0.0
        %1273 = vmatpush1.msra.mxu0 0.0
        %1274 = vmatprep.subr.mxu0 0.0
        %1275 = vmatpush1.msra.mxu0 0.0
        %1276 = vmatprep.subr.mxu0 0.0
        %1277 = vmatpush1.msra.mxu0 0.0
        %1278 = vmatprep.subr.mxu0 0.0
        %1279 = vmatpush1.msra.mxu0 0.0
        %1280 = vmatprep.subr.mxu0 0.0
        %1281 = vmatpush1.msra.mxu0 0.0
        %1282 = vmatprep.subr.mxu0 0.0
        %1283 = vmatpush1.msra.mxu0 0.0
        %1284 = vmatprep.subr.mxu0 0.0
        %1285 = vmatpush1.msra.mxu0 0.0
        %1286 = vmatprep.subr.mxu0 0.0
        %1287 = vmatpush1.msra.mxu0 0.0
        %1288 = vmatprep.subr.mxu0 0.0
        %1289 = vmatpush1.msra.mxu0 0.0
        %1290 = vmatprep.subr.mxu0 %v1254
        %1291 = vmatpush1.msra.mxu0 %v1253
        %1292 = vmatprep.subr.mxu0 %v1252
        %1293 = vmatpush1.msra.mxu0 %v1251
        %1294 = vmatprep.subr.mxu0 %v1250
        %1295 = vmatpush1.msra.mxu0 %v1249
        %1296 = vmatprep.subr.mxu0 %v1248
        %1297 = vmatpush1.msra.mxu0 %v1247
        %1298 = vmatprep.subr.mxu0 0.0
        %1299 = vmatpush2.msra.mxu0 0.0
        %1300 = vmatprep.subr.mxu0 0.0
        %1301 = vmatpush2.msra.mxu0 0.0
        %1302 = vmatprep.subr.mxu0 0.0
        %1303 = vmatpush2.msra.mxu0 0.0
        %1304 = vmatprep.subr.mxu0 0.0
        %1305 = vmatpush2.msra.mxu0 0.0
        %1306 = vmatprep.subr.mxu0 0.0
        %1307 = vmatpush2.msra.mxu0 0.0
        %1308 = vmatprep.subr.mxu0 0.0
        %1309 = vmatpush2.msra.mxu0 0.0
        %1310 = vmatprep.subr.mxu0 0.0
        %1311 = vmatpush2.msra.mxu0 0.0
        %1312 = vmatprep.subr.mxu0 0.0
        %1313 = vmatpush2.msra.mxu0 0.0
        %1314 = vmatprep.subr.mxu0 0.0
        %1315 = vmatpush2.msra.mxu0 0.0
        %1316 = vmatprep.subr.mxu0 0.0
        %1317 = vmatpush2.msra.mxu0 0.0
        %1318 = vmatprep.subr.mxu0 0.0
        %1319 = vmatpush2.msra.mxu0 0.0
        %1320 = vmatprep.subr.mxu0 0.0
        %1321 = vmatpush2.msra.mxu0 0.0
        %1322 = vmatprep.subr.mxu0 0.0
        %1323 = vmatpush2.msra.mxu0 0.0
        %1324 = vmatprep.subr.mxu0 0.0
        %1325 = vmatpush2.msra.mxu0 0.0
        %1326 = vmatprep.subr.mxu0 0.0
        %1327 = vmatpush2.msra.mxu0 0.0
        %1328 = vmatprep.subr.mxu0 0.0
        %1329 = vmatpush2.msra.mxu0 0.0
        %1330 = vmatprep.mubr.f32.mxu0 0.0
        %1331 = vmatmul.mubr.f32.gmra.mxu0 %v1264
        %v1332 = vpop.f32.mrf.mxu0
        %v1333 = vadd.f32 %v1218, %v1332
        %v1334 = vpop.f32.mrf.mxu0
        %v1335 = vadd.f32 %v1218, %v1334
        %1336 = vdwg.mxu0
        %1337 = vst [vmem:[%s320] sm:$0xff] %v1333
        %1338 = vst [vmem:[%s320 + $0x8] sm:$0xff] %v1335
        %v1339 = vmul.f32 %v1149, %v356
        %v1340 = vmul.f32 %v1145, %v359
        %v1341 = vmul.f32 %v1150, %v358
        %v1342 = vmul.f32 %v1173, %v399
        %v1343 = vmul.f32 %v1169, %v403
        %v1344 = vmul.f32 %v1174, %v401
        %1348 = vrot.lane.b32.xlu0 %v1342, 16
        %v1349 = vpop.permute.xlu0 %1348
        %1350 = vrot.lane.b32.xlu0 %v1343, 16
        %v1351 = vpop.permute.xlu0 %1350
        %1352 = vrot.lane.b32.xlu0 %v1344, 16
        %v1353 = vpop.permute.xlu0 %1352
        %v1354 = vsel %vm380, %v1349, %v1351
        %v1355 = vsel %vm380, %v1351, %v1353
        %1359 = vrot.lane.b32.xlu0 %v1339, 111
        %v1360 = vpop.permute.xlu0 %1359
        %1361 = vrot.lane.b32.xlu0 %v1340, 111
        %v1362 = vpop.permute.xlu0 %1361
        %1363 = vrot.lane.b32.xlu0 %v1341, 111
        %v1364 = vpop.permute.xlu0 %1363
        %1365 = vrot.lane.b32.xlu0 %v1349, 111
        %v1366 = vpop.permute.xlu0 %1365
        %1367 = vrot.lane.b32.xlu0 %v1354, 111
        %v1368 = vpop.permute.xlu0 %1367
        %1369 = vrot.lane.b32.xlu0 %v1355, 111
        %v1370 = vpop.permute.xlu0 %1369
        %v1371 = vsel %vm481, %v1360, %v1362
        %v1372 = vsel %vm481, %v1362, %v1364
        %v1373 = vsel %vm481, %v1366, %v1368
        %v1374 = vsel %vm481, %v1368, %v1370
        %v1380 = vsel %vm498, %v1123, 0
        %1382 = vmatprep.subr.mxu0 0.0
        %1383 = vmatpush1.msra.mxu0 0.0
        %1384 = vmatprep.subr.mxu0 0.0
        %1385 = vmatpush1.msra.mxu0 0.0
        %1386 = vmatprep.subr.mxu0 0.0
        %1387 = vmatpush1.msra.mxu0 0.0
        %1388 = vmatprep.subr.mxu0 0.0
        %1389 = vmatpush1.msra.mxu0 0.0
        %1390 = vmatprep.subr.mxu0 0.0
        %1391 = vmatpush1.msra.mxu0 0.0
        %1392 = vmatprep.subr.mxu0 0.0
        %1393 = vmatpush1.msra.mxu0 0.0
        %1394 = vmatprep.subr.mxu0 0.0
        %1395 = vmatpush1.msra.mxu0 0.0
        %1396 = vmatprep.subr.mxu0 0.0
        %1397 = vmatpush1.msra.mxu0 0.0
        %1398 = vmatprep.subr.mxu0 0.0
        %1399 = vmatpush1.msra.mxu0 0.0
        %1400 = vmatprep.subr.mxu0 0.0
        %1401 = vmatpush1.msra.mxu0 0.0
        %1402 = vmatprep.subr.mxu0 0.0
        %1403 = vmatpush1.msra.mxu0 0.0
        %1404 = vmatprep.subr.mxu0 0.0
        %1405 = vmatpush1.msra.mxu0 0.0
        %1406 = vmatprep.subr.mxu0 %v1252
        %1407 = vmatpush1.msra.mxu0 %v1251
        %1408 = vmatprep.subr.mxu0 %v1374
        %1409 = vmatpush1.msra.mxu0 %v1373
        %1410 = vmatprep.subr.mxu0 %v1248
        %1411 = vmatpush1.msra.mxu0 %v1247
        %1412 = vmatprep.subr.mxu0 %v1372
        %1413 = vmatpush1.msra.mxu0 %v1371
        %1414 = vmatprep.subr.mxu0 0.0
        %1415 = vmatpush2.msra.mxu0 0.0
        %1416 = vmatprep.subr.mxu0 0.0
        %1417 = vmatpush2.msra.mxu0 0.0
        %1418 = vmatprep.subr.mxu0 0.0
        %1419 = vmatpush2.msra.mxu0 0.0
        %1420 = vmatprep.subr.mxu0 0.0
        %1421 = vmatpush2.msra.mxu0 0.0
        %1422 = vmatprep.subr.mxu0 0.0
        %1423 = vmatpush2.msra.mxu0 0.0
        %1424 = vmatprep.subr.mxu0 0.0
        %1425 = vmatpush2.msra.mxu0 0.0
        %1426 = vmatprep.subr.mxu0 0.0
        %1427 = vmatpush2.msra.mxu0 0.0
        %1428 = vmatprep.subr.mxu0 0.0
        %1429 = vmatpush2.msra.mxu0 0.0
        %1430 = vmatprep.subr.mxu0 0.0
        %1431 = vmatpush2.msra.mxu0 0.0
        %1432 = vmatprep.subr.mxu0 0.0
        %1433 = vmatpush2.msra.mxu0 0.0
        %1434 = vmatprep.subr.mxu0 0.0
        %1435 = vmatpush2.msra.mxu0 0.0
        %1436 = vmatprep.subr.mxu0 0.0
        %1437 = vmatpush2.msra.mxu0 0.0
        %1438 = vmatprep.subr.mxu0 0.0
        %1439 = vmatpush2.msra.mxu0 0.0
        %1440 = vmatprep.subr.mxu0 0.0
        %1441 = vmatpush2.msra.mxu0 0.0
        %1442 = vmatprep.subr.mxu0 0.0
        %1443 = vmatpush2.msra.mxu0 0.0
        %1444 = vmatprep.subr.mxu0 0.0
        %1445 = vmatpush2.msra.mxu0 0.0
        %1446 = vmatprep.mubr.f32.mxu0 0.0
        %1447 = vmatmul.mubr.f32.gmra.mxu0 %v1380
        %v1448 = vpop.f32.mrf.mxu0
        %v1449 = vadd.f32 %v1218, %v1448
        %v1450 = vpop.f32.mrf.mxu0
        %v1451 = vadd.f32 %v1218, %v1450
        %1452 = vdwg.mxu0
        %s1453 = scalar_lea.vmem %s320, 16
        %1454 = vst [vmem:[%s1453] sm:$0xff] %v1449
        %1455 = vst [vmem:[%s1453 + $0x8] sm:$0xff] %v1451
        %1456 = vmatprep.subr.mxu0 0.0
        %1457 = vmatpush1.msra.mxu0 0.0
        %1458 = vmatprep.subr.mxu0 0.0
        %1459 = vmatpush1.msra.mxu0 0.0
        %1460 = vmatprep.subr.mxu0 0.0
        %1461 = vmatpush1.msra.mxu0 0.0
        %1462 = vmatprep.subr.mxu0 0.0
        %1463 = vmatpush1.msra.mxu0 0.0
        %1464 = vmatprep.subr.mxu0 0.0
        %1465 = vmatpush1.msra.mxu0 0.0
        %1466 = vmatprep.subr.mxu0 0.0
        %1467 = vmatpush1.msra.mxu0 0.0
        %1468 = vmatprep.subr.mxu0 0.0
        %1469 = vmatpush1.msra.mxu0 0.0
        %1470 = vmatprep.subr.mxu0 0.0
        %1471 = vmatpush1.msra.mxu0 0.0
        %1472 = vmatprep.subr.mxu0 0.0
        %1473 = vmatpush1.msra.mxu0 0.0
        %1474 = vmatprep.subr.mxu0 0.0
        %1475 = vmatpush1.msra.mxu0 0.0
        %1476 = vmatprep.subr.mxu0 0.0
        %1477 = vmatpush1.msra.mxu0 0.0
        %1478 = vmatprep.subr.mxu0 0.0
        %1479 = vmatpush1.msra.mxu0 0.0
        %1480 = vmatprep.subr.mxu0 %v1252
        %1481 = vmatpush1.msra.mxu0 %v1251
        %1482 = vmatprep.subr.mxu0 %v1374
        %1483 = vmatpush1.msra.mxu0 %v1373
        %1484 = vmatprep.subr.mxu0 %v1248
        %1485 = vmatpush1.msra.mxu0 %v1247
        %1486 = vmatprep.subr.mxu0 %v1372
        %1487 = vmatpush1.msra.mxu0 %v1371
        %1488 = vmatprep.subr.mxu0 0.0
        %1489 = vmatpush2.msra.mxu0 0.0
        %1490 = vmatprep.subr.mxu0 0.0
        %1491 = vmatpush2.msra.mxu0 0.0
        %1492 = vmatprep.subr.mxu0 0.0
        %1493 = vmatpush2.msra.mxu0 0.0
        %1494 = vmatprep.subr.mxu0 0.0
        %1495 = vmatpush2.msra.mxu0 0.0
        %1496 = vmatprep.subr.mxu0 0.0
        %1497 = vmatpush2.msra.mxu0 0.0
        %1498 = vmatprep.subr.mxu0 0.0
        %1499 = vmatpush2.msra.mxu0 0.0
        %1500 = vmatprep.subr.mxu0 0.0
        %1501 = vmatpush2.msra.mxu0 0.0
        %1502 = vmatprep.subr.mxu0 0.0
        %1503 = vmatpush2.msra.mxu0 0.0
        %1504 = vmatprep.subr.mxu0 0.0
        %1505 = vmatpush2.msra.mxu0 0.0
        %1506 = vmatprep.subr.mxu0 0.0
        %1507 = vmatpush2.msra.mxu0 0.0
        %1508 = vmatprep.subr.mxu0 0.0
        %1509 = vmatpush2.msra.mxu0 0.0
        %1510 = vmatprep.subr.mxu0 0.0
        %1511 = vmatpush2.msra.mxu0 0.0
        %1512 = vmatprep.subr.mxu0 0.0
        %1513 = vmatpush2.msra.mxu0 0.0
        %1514 = vmatprep.subr.mxu0 0.0
        %1515 = vmatpush2.msra.mxu0 0.0
        %1516 = vmatprep.subr.mxu0 0.0
        %1517 = vmatpush2.msra.mxu0 0.0
        %1518 = vmatprep.subr.mxu0 0.0
        %1519 = vmatpush2.msra.mxu0 0.0
        %1520 = vmatprep.mubr.f32.mxu0 0.0
        %1521 = vmatmul.mubr.f32.gmra.mxu0 %v1264
        %v1522 = vpop.f32.mrf.mxu0
        %v1523 = vadd.f32 %v1218, %v1522
        %v1524 = vpop.f32.mrf.mxu0
        %v1525 = vadd.f32 %v1218, %v1524
        %1526 = vdwg.mxu0
        %s1527 = scalar_lea.vmem %s320, 32
        %1528 = vst [vmem:[%s1527] sm:$0xff] %v1523
        %1529 = vst [vmem:[%s1527 + $0x8] sm:$0xff] %v1525
        %v1530 = vmul.f32 %v1137, %v586
        %v1531 = vmul.f32 %v1133, %v590
        %v1532 = vmul.f32 %v1138, %v588
        %v1533 = vmul.f32 %v1161, %v608
        %v1534 = vmul.f32 %v1157, %v612
        %v1535 = vmul.f32 %v1162, %v610
        %1536 = vrot.lane.b32.xlu0 %v1339, 1
        %v1537 = vpop.permute.xlu0 %1536
        %1538 = vrot.lane.b32.xlu0 %v1340, 1
        %v1539 = vpop.permute.xlu0 %1538
        %1540 = vrot.lane.b32.xlu0 %v1341, 1
        %v1541 = vpop.permute.xlu0 %1540
        %v1542 = vsel %vm402, %v1537, %v1539
        %v1543 = vsel %vm402, %v1539, %v1541
        %1547 = vrot.lane.b32.xlu0 %v1533, 16
        %v1548 = vpop.permute.xlu0 %1547
        %1549 = vrot.lane.b32.xlu0 %v1534, 16
        %v1550 = vpop.permute.xlu0 %1549
        %1551 = vrot.lane.b32.xlu0 %v1535, 16
        %v1552 = vpop.permute.xlu0 %1551
        %v1553 = vsel %vm380, %v1548, %v1550
        %v1554 = vsel %vm380, %v1550, %v1552
        %1555 = vrot.lane.b32.xlu0 %v1342, 17
        %v1556 = vpop.permute.xlu0 %1555
        %1557 = vrot.lane.b32.xlu0 %v1343, 17
        %v1558 = vpop.permute.xlu0 %1557
        %1559 = vrot.lane.b32.xlu0 %v1344, 17
        %v1560 = vpop.permute.xlu0 %1559
        %v1561 = vsel %vm338, %v1556, %v1558
        %v1562 = vsel %vm338, %v1558, %v1560
        %1566 = vrot.lane.b32.xlu0 %v1530, 110
        %v1567 = vpop.permute.xlu0 %1566
        %1568 = vrot.lane.b32.xlu0 %v1531, 110
        %v1569 = vpop.permute.xlu0 %1568
        %1570 = vrot.lane.b32.xlu0 %v1532, 110
        %v1571 = vpop.permute.xlu0 %1570
        %1572 = vrot.lane.b32.xlu0 %v1537, 110
        %v1573 = vpop.permute.xlu0 %1572
        %1574 = vrot.lane.b32.xlu0 %v1542, 110
        %v1575 = vpop.permute.xlu0 %1574
        %1576 = vrot.lane.b32.xlu0 %v1543, 110
        %v1577 = vpop.permute.xlu0 %1576
        %1578 = vrot.lane.b32.xlu0 %v1548, 110
        %v1579 = vpop.permute.xlu0 %1578
        %1580 = vrot.lane.b32.xlu0 %v1553, 110
        %v1581 = vpop.permute.xlu0 %1580
        %1582 = vrot.lane.b32.xlu0 %v1554, 110
        %v1583 = vpop.permute.xlu0 %1582
        %1584 = vrot.lane.b32.xlu0 %v1556, 110
        %v1585 = vpop.permute.xlu0 %1584
        %1586 = vrot.lane.b32.xlu0 %v1561, 110
        %v1587 = vpop.permute.xlu0 %1586
        %1588 = vrot.lane.b32.xlu0 %v1562, 110
        %v1589 = vpop.permute.xlu0 %1588
        %v1590 = vsel %vm673, %v1567, %v1569
        %v1591 = vsel %vm673, %v1569, %v1571
        %v1592 = vsel %vm673, %v1573, %v1575
        %v1593 = vsel %vm673, %v1575, %v1577
        %v1594 = vsel %vm673, %v1579, %v1581
        %v1595 = vsel %vm673, %v1581, %v1583
        %v1596 = vsel %vm673, %v1585, %v1587
        %v1597 = vsel %vm673, %v1587, %v1589
        %1606 = vmatprep.subr.mxu0 0.0
        %1607 = vmatpush1.msra.mxu0 0.0
        %1608 = vmatprep.subr.mxu0 0.0
        %1609 = vmatpush1.msra.mxu0 0.0
        %1610 = vmatprep.subr.mxu0 0.0
        %1611 = vmatpush1.msra.mxu0 0.0
        %1612 = vmatprep.subr.mxu0 0.0
        %1613 = vmatpush1.msra.mxu0 0.0
        %1614 = vmatprep.subr.mxu0 0.0
        %1615 = vmatpush1.msra.mxu0 0.0
        %1616 = vmatprep.subr.mxu0 0.0
        %1617 = vmatpush1.msra.mxu0 0.0
        %1618 = vmatprep.subr.mxu0 0.0
        %1619 = vmatpush1.msra.mxu0 0.0
        %1620 = vmatprep.subr.mxu0 0.0
        %1621 = vmatpush1.msra.mxu0 0.0
        %1622 = vmatprep.subr.mxu0 0.0
        %1623 = vmatpush1.msra.mxu0 0.0
        %1624 = vmatprep.subr.mxu0 0.0
        %1625 = vmatpush1.msra.mxu0 0.0
        %1626 = vmatprep.subr.mxu0 0.0
        %1627 = vmatpush1.msra.mxu0 0.0
        %1628 = vmatprep.subr.mxu0 0.0
        %1629 = vmatpush1.msra.mxu0 0.0
        %1630 = vmatprep.subr.mxu0 %v1597
        %1631 = vmatpush1.msra.mxu0 %v1596
        %1632 = vmatprep.subr.mxu0 %v1595
        %1633 = vmatpush1.msra.mxu0 %v1594
        %1634 = vmatprep.subr.mxu0 %v1593
        %1635 = vmatpush1.msra.mxu0 %v1592
        %1636 = vmatprep.subr.mxu0 %v1591
        %1637 = vmatpush1.msra.mxu0 %v1590
        %1638 = vmatprep.subr.mxu0 0.0
        %1639 = vmatpush2.msra.mxu0 0.0
        %1640 = vmatprep.subr.mxu0 0.0
        %1641 = vmatpush2.msra.mxu0 0.0
        %1642 = vmatprep.subr.mxu0 0.0
        %1643 = vmatpush2.msra.mxu0 0.0
        %1644 = vmatprep.subr.mxu0 0.0
        %1645 = vmatpush2.msra.mxu0 0.0
        %1646 = vmatprep.subr.mxu0 0.0
        %1647 = vmatpush2.msra.mxu0 0.0
        %1648 = vmatprep.subr.mxu0 0.0
        %1649 = vmatpush2.msra.mxu0 0.0
        %1650 = vmatprep.subr.mxu0 0.0
        %1651 = vmatpush2.msra.mxu0 0.0
        %1652 = vmatprep.subr.mxu0 0.0
        %1653 = vmatpush2.msra.mxu0 0.0
        %1654 = vmatprep.subr.mxu0 0.0
        %1655 = vmatpush2.msra.mxu0 0.0
        %1656 = vmatprep.subr.mxu0 0.0
        %1657 = vmatpush2.msra.mxu0 0.0
        %1658 = vmatprep.subr.mxu0 0.0
        %1659 = vmatpush2.msra.mxu0 0.0
        %1660 = vmatprep.subr.mxu0 0.0
        %1661 = vmatpush2.msra.mxu0 0.0
        %1662 = vmatprep.subr.mxu0 0.0
        %1663 = vmatpush2.msra.mxu0 0.0
        %1664 = vmatprep.subr.mxu0 0.0
        %1665 = vmatpush2.msra.mxu0 0.0
        %1666 = vmatprep.subr.mxu0 0.0
        %1667 = vmatpush2.msra.mxu0 0.0
        %1668 = vmatprep.subr.mxu0 0.0
        %1669 = vmatpush2.msra.mxu0 0.0
        %1670 = vmatprep.mubr.f32.mxu0 0.0
        %1671 = vmatmul.mubr.f32.gmra.mxu0 %v1380
        %v1672 = vpop.f32.mrf.mxu0
        %v1673 = vadd.f32 %v1218, %v1672
        %v1674 = vpop.f32.mrf.mxu0
        %v1675 = vadd.f32 %v1218, %v1674
        %1676 = vdwg.mxu0
        %s1677 = scalar_lea.vmem %s320, 48
        %1678 = vst [vmem:[%s1677] sm:$0xff] %v1673
        %1679 = vst [vmem:[%s1677 + $0x8] sm:$0xff] %v1675
        %v1680 = vmul.f32 %v1161, %v356
        %v1681 = vmul.f32 %v1157, %v359
        %v1682 = vmul.f32 %v1162, %v358
        %v1683 = vmul.f32 %v1173, %v377
        %v1684 = vmul.f32 %v1169, %v381
        %v1685 = vmul.f32 %v1174, %v379
        %1689 = vrot.lane.b32.xlu0 %v1683, 1
        %v1690 = vpop.permute.xlu0 %1689
        %1691 = vrot.lane.b32.xlu0 %v1684, 1
        %v1692 = vpop.permute.xlu0 %1691
        %1693 = vrot.lane.b32.xlu0 %v1685, 1
        %v1694 = vpop.permute.xlu0 %1693
        %v1695 = vsel %vm402, %v1690, %v1692
        %v1696 = vsel %vm402, %v1692, %v1694
        %1700 = vrot.lane.b32.xlu0 %v1680, 111
        %v1701 = vpop.permute.xlu0 %1700
        %1702 = vrot.lane.b32.xlu0 %v1681, 111
        %v1703 = vpop.permute.xlu0 %1702
        %1704 = vrot.lane.b32.xlu0 %v1682, 111
        %v1705 = vpop.permute.xlu0 %1704
        %1706 = vrot.lane.b32.xlu0 %v1690, 111
        %v1707 = vpop.permute.xlu0 %1706
        %1708 = vrot.lane.b32.xlu0 %v1695, 111
        %v1709 = vpop.permute.xlu0 %1708
        %1710 = vrot.lane.b32.xlu0 %v1696, 111
        %v1711 = vpop.permute.xlu0 %1710
        %v1712 = vsel %vm481, %v1701, %v1703
        %v1713 = vsel %vm481, %v1703, %v1705
        %v1714 = vsel %vm481, %v1707, %v1709
        %v1715 = vsel %vm481, %v1709, %v1711
        %v1721 = vsel %vm498, %v1124, 0
        %1723 = vmatprep.subr.mxu0 0.0
        %1724 = vmatpush1.msra.mxu0 0.0
        %1725 = vmatprep.subr.mxu0 0.0
        %1726 = vmatpush1.msra.mxu0 0.0
        %1727 = vmatprep.subr.mxu0 0.0
        %1728 = vmatpush1.msra.mxu0 0.0
        %1729 = vmatprep.subr.mxu0 0.0
        %1730 = vmatpush1.msra.mxu0 0.0
        %1731 = vmatprep.subr.mxu0 0.0
        %1732 = vmatpush1.msra.mxu0 0.0
        %1733 = vmatprep.subr.mxu0 0.0
        %1734 = vmatpush1.msra.mxu0 0.0
        %1735 = vmatprep.subr.mxu0 0.0
        %1736 = vmatpush1.msra.mxu0 0.0
        %1737 = vmatprep.subr.mxu0 0.0
        %1738 = vmatpush1.msra.mxu0 0.0
        %1739 = vmatprep.subr.mxu0 0.0
        %1740 = vmatpush1.msra.mxu0 0.0
        %1741 = vmatprep.subr.mxu0 0.0
        %1742 = vmatpush1.msra.mxu0 0.0
        %1743 = vmatprep.subr.mxu0 0.0
        %1744 = vmatpush1.msra.mxu0 0.0
        %1745 = vmatprep.subr.mxu0 0.0
        %1746 = vmatpush1.msra.mxu0 0.0
        %1747 = vmatprep.subr.mxu0 %v1250
        %1748 = vmatpush1.msra.mxu0 %v1249
        %1749 = vmatprep.subr.mxu0 %v1248
        %1750 = vmatpush1.msra.mxu0 %v1247
        %1751 = vmatprep.subr.mxu0 %v1715
        %1752 = vmatpush1.msra.mxu0 %v1714
        %1753 = vmatprep.subr.mxu0 %v1713
        %1754 = vmatpush1.msra.mxu0 %v1712
        %1755 = vmatprep.subr.mxu0 0.0
        %1756 = vmatpush2.msra.mxu0 0.0
        %1757 = vmatprep.subr.mxu0 0.0
        %1758 = vmatpush2.msra.mxu0 0.0
        %1759 = vmatprep.subr.mxu0 0.0
        %1760 = vmatpush2.msra.mxu0 0.0
        %1761 = vmatprep.subr.mxu0 0.0
        %1762 = vmatpush2.msra.mxu0 0.0
        %1763 = vmatprep.subr.mxu0 0.0
        %1764 = vmatpush2.msra.mxu0 0.0
        %1765 = vmatprep.subr.mxu0 0.0
        %1766 = vmatpush2.msra.mxu0 0.0
        %1767 = vmatprep.subr.mxu0 0.0
        %1768 = vmatpush2.msra.mxu0 0.0
        %1769 = vmatprep.subr.mxu0 0.0
        %1770 = vmatpush2.msra.mxu0 0.0
        %1771 = vmatprep.subr.mxu0 0.0
        %1772 = vmatpush2.msra.mxu0 0.0
        %1773 = vmatprep.subr.mxu0 0.0
        %1774 = vmatpush2.msra.mxu0 0.0
        %1775 = vmatprep.subr.mxu0 0.0
        %1776 = vmatpush2.msra.mxu0 0.0
        %1777 = vmatprep.subr.mxu0 0.0
        %1778 = vmatpush2.msra.mxu0 0.0
        %1779 = vmatprep.subr.mxu0 0.0
        %1780 = vmatpush2.msra.mxu0 0.0
        %1781 = vmatprep.subr.mxu0 0.0
        %1782 = vmatpush2.msra.mxu0 0.0
        %1783 = vmatprep.subr.mxu0 0.0
        %1784 = vmatpush2.msra.mxu0 0.0
        %1785 = vmatprep.subr.mxu0 0.0
        %1786 = vmatpush2.msra.mxu0 0.0
        %1787 = vmatprep.mubr.f32.mxu0 0.0
        %1788 = vmatmul.mubr.f32.gmra.mxu0 %v1721
        %v1789 = vpop.f32.mrf.mxu0
        %v1790 = vadd.f32 %v1218, %v1789
        %v1791 = vpop.f32.mrf.mxu0
        %v1792 = vadd.f32 %v1218, %v1791
        %1793 = vdwg.mxu0
        %s1794 = scalar_lea.vmem %s320, 64
        %1795 = vst [vmem:[%s1794] sm:$0xff] %v1790
        %1796 = vst [vmem:[%s1794 + $0x8] sm:$0xff] %v1792
        %v1797 = vmul.f32 %v1173, %v356
        %v1798 = vmul.f32 %v1169, %v359
        %v1799 = vmul.f32 %v1174, %v358
        %1803 = vrot.lane.b32.xlu0 %v1797, 111
        %v1804 = vpop.permute.xlu0 %1803
        %1805 = vrot.lane.b32.xlu0 %v1798, 111
        %v1806 = vpop.permute.xlu0 %1805
        %1807 = vrot.lane.b32.xlu0 %v1799, 111
        %v1808 = vpop.permute.xlu0 %1807
        %v1809 = vsel %vm481, %v1804, %v1806
        %v1810 = vsel %vm481, %v1806, %v1808
        %v1814 = vsel %vm498, %v1125, 0
        %1816 = vmatprep.subr.mxu0 0.0
        %1817 = vmatpush1.msra.mxu0 0.0
        %1818 = vmatprep.subr.mxu0 0.0
        %1819 = vmatpush1.msra.mxu0 0.0
        %1820 = vmatprep.subr.mxu0 0.0
        %1821 = vmatpush1.msra.mxu0 0.0
        %1822 = vmatprep.subr.mxu0 0.0
        %1823 = vmatpush1.msra.mxu0 0.0
        %1824 = vmatprep.subr.mxu0 0.0
        %1825 = vmatpush1.msra.mxu0 0.0
        %1826 = vmatprep.subr.mxu0 0.0
        %1827 = vmatpush1.msra.mxu0 0.0
        %1828 = vmatprep.subr.mxu0 0.0
        %1829 = vmatpush1.msra.mxu0 0.0
        %1830 = vmatprep.subr.mxu0 0.0
        %1831 = vmatpush1.msra.mxu0 0.0
        %1832 = vmatprep.subr.mxu0 0.0
        %1833 = vmatpush1.msra.mxu0 0.0
        %1834 = vmatprep.subr.mxu0 0.0
        %1835 = vmatpush1.msra.mxu0 0.0
        %1836 = vmatprep.subr.mxu0 0.0
        %1837 = vmatpush1.msra.mxu0 0.0
        %1838 = vmatprep.subr.mxu0 0.0
        %1839 = vmatpush1.msra.mxu0 0.0
        %1840 = vmatprep.subr.mxu0 %v1248
        %1841 = vmatpush1.msra.mxu0 %v1247
        %1842 = vmatprep.subr.mxu0 %v1372
        %1843 = vmatpush1.msra.mxu0 %v1371
        %1844 = vmatprep.subr.mxu0 %v1713
        %1845 = vmatpush1.msra.mxu0 %v1712
        %1846 = vmatprep.subr.mxu0 %v1810
        %1847 = vmatpush1.msra.mxu0 %v1809
        %1848 = vmatprep.subr.mxu0 0.0
        %1849 = vmatpush2.msra.mxu0 0.0
        %1850 = vmatprep.subr.mxu0 0.0
        %1851 = vmatpush2.msra.mxu0 0.0
        %1852 = vmatprep.subr.mxu0 0.0
        %1853 = vmatpush2.msra.mxu0 0.0
        %1854 = vmatprep.subr.mxu0 0.0
        %1855 = vmatpush2.msra.mxu0 0.0
        %1856 = vmatprep.subr.mxu0 0.0
        %1857 = vmatpush2.msra.mxu0 0.0
        %1858 = vmatprep.subr.mxu0 0.0
        %1859 = vmatpush2.msra.mxu0 0.0
        %1860 = vmatprep.subr.mxu0 0.0
        %1861 = vmatpush2.msra.mxu0 0.0
        %1862 = vmatprep.subr.mxu0 0.0
        %1863 = vmatpush2.msra.mxu0 0.0
        %1864 = vmatprep.subr.mxu0 0.0
        %1865 = vmatpush2.msra.mxu0 0.0
        %1866 = vmatprep.subr.mxu0 0.0
        %1867 = vmatpush2.msra.mxu0 0.0
        %1868 = vmatprep.subr.mxu0 0.0
        %1869 = vmatpush2.msra.mxu0 0.0
        %1870 = vmatprep.subr.mxu0 0.0
        %1871 = vmatpush2.msra.mxu0 0.0
        %1872 = vmatprep.subr.mxu0 0.0
        %1873 = vmatpush2.msra.mxu0 0.0
        %1874 = vmatprep.subr.mxu0 0.0
        %1875 = vmatpush2.msra.mxu0 0.0
        %1876 = vmatprep.subr.mxu0 0.0
        %1877 = vmatpush2.msra.mxu0 0.0
        %1878 = vmatprep.subr.mxu0 0.0
        %1879 = vmatpush2.msra.mxu0 0.0
        %1880 = vmatprep.mubr.f32.mxu0 0.0
        %1881 = vmatmul.mubr.f32.gmra.mxu0 %v1814
        %v1882 = vpop.f32.mrf.mxu0
        %v1883 = vadd.f32 %v1218, %v1882
        %v1884 = vpop.f32.mrf.mxu0
        %v1885 = vadd.f32 %v1218, %v1884
        %1886 = vdwg.mxu0
        %s1887 = scalar_lea.vmem %s320, 80
        %1888 = vst [vmem:[%s1887] sm:$0xff] %v1883
        %1889 = vst [vmem:[%s1887 + $0x8] sm:$0xff] %v1885
        %1890 = vmatprep.subr.mxu0 0.0
        %1891 = vmatpush1.msra.mxu0 0.0
        %1892 = vmatprep.subr.mxu0 0.0
        %1893 = vmatpush1.msra.mxu0 0.0
        %1894 = vmatprep.subr.mxu0 0.0
        %1895 = vmatpush1.msra.mxu0 0.0
        %1896 = vmatprep.subr.mxu0 0.0
        %1897 = vmatpush1.msra.mxu0 0.0
        %1898 = vmatprep.subr.mxu0 0.0
        %1899 = vmatpush1.msra.mxu0 0.0
        %1900 = vmatprep.subr.mxu0 0.0
        %1901 = vmatpush1.msra.mxu0 0.0
        %1902 = vmatprep.subr.mxu0 0.0
        %1903 = vmatpush1.msra.mxu0 0.0
        %1904 = vmatprep.subr.mxu0 0.0
        %1905 = vmatpush1.msra.mxu0 0.0
        %1906 = vmatprep.subr.mxu0 0.0
        %1907 = vmatpush1.msra.mxu0 0.0
        %1908 = vmatprep.subr.mxu0 0.0
        %1909 = vmatpush1.msra.mxu0 0.0
        %1910 = vmatprep.subr.mxu0 0.0
        %1911 = vmatpush1.msra.mxu0 0.0
        %1912 = vmatprep.subr.mxu0 0.0
        %1913 = vmatpush1.msra.mxu0 0.0
        %1914 = vmatprep.subr.mxu0 %v1248
        %1915 = vmatpush1.msra.mxu0 %v1247
        %1916 = vmatprep.subr.mxu0 %v1372
        %1917 = vmatpush1.msra.mxu0 %v1371
        %1918 = vmatprep.subr.mxu0 %v1713
        %1919 = vmatpush1.msra.mxu0 %v1712
        %1920 = vmatprep.subr.mxu0 %v1810
        %1921 = vmatpush1.msra.mxu0 %v1809
        %1922 = vmatprep.subr.mxu0 0.0
        %1923 = vmatpush2.msra.mxu0 0.0
        %1924 = vmatprep.subr.mxu0 0.0
        %1925 = vmatpush2.msra.mxu0 0.0
        %1926 = vmatprep.subr.mxu0 0.0
        %1927 = vmatpush2.msra.mxu0 0.0
        %1928 = vmatprep.subr.mxu0 0.0
        %1929 = vmatpush2.msra.mxu0 0.0
        %1930 = vmatprep.subr.mxu0 0.0
        %1931 = vmatpush2.msra.mxu0 0.0
        %1932 = vmatprep.subr.mxu0 0.0
        %1933 = vmatpush2.msra.mxu0 0.0
        %1934 = vmatprep.subr.mxu0 0.0
        %1935 = vmatpush2.msra.mxu0 0.0
        %1936 = vmatprep.subr.mxu0 0.0
        %1937 = vmatpush2.msra.mxu0 0.0
        %1938 = vmatprep.subr.mxu0 0.0
        %1939 = vmatpush2.msra.mxu0 0.0
        %1940 = vmatprep.subr.mxu0 0.0
        %1941 = vmatpush2.msra.mxu0 0.0
        %1942 = vmatprep.subr.mxu0 0.0
        %1943 = vmatpush2.msra.mxu0 0.0
        %1944 = vmatprep.subr.mxu0 0.0
        %1945 = vmatpush2.msra.mxu0 0.0
        %1946 = vmatprep.subr.mxu0 0.0
        %1947 = vmatpush2.msra.mxu0 0.0
        %1948 = vmatprep.subr.mxu0 0.0
        %1949 = vmatpush2.msra.mxu0 0.0
        %1950 = vmatprep.subr.mxu0 0.0
        %1951 = vmatpush2.msra.mxu0 0.0
        %1952 = vmatprep.subr.mxu0 0.0
        %1953 = vmatpush2.msra.mxu0 0.0
        %1954 = vmatprep.mubr.f32.mxu0 0.0
        %1955 = vmatmul.mubr.f32.gmra.mxu0 %v1721
        %v1956 = vpop.f32.mrf.mxu0
        %v1957 = vadd.f32 %v1218, %v1956
        %v1958 = vpop.f32.mrf.mxu0
        %v1959 = vadd.f32 %v1218, %v1958
        %1960 = vdwg.mxu0
        %s1961 = scalar_lea.vmem %s320, 96
        %1962 = vst [vmem:[%s1961] sm:$0xff] %v1957
        %1963 = vst [vmem:[%s1961 + $0x8] sm:$0xff] %v1959
        %v1964 = vmul.f32 %v1161, %v586
        %v1965 = vmul.f32 %v1157, %v590
        %v1966 = vmul.f32 %v1162, %v588
        %1967 = vrot.lane.b32.xlu0 %v1797, 1
        %v1968 = vpop.permute.xlu0 %1967
        %1969 = vrot.lane.b32.xlu0 %v1798, 1
        %v1970 = vpop.permute.xlu0 %1969
        %1971 = vrot.lane.b32.xlu0 %v1799, 1
        %v1972 = vpop.permute.xlu0 %1971
        %v1973 = vsel %vm402, %v1968, %v1970
        %v1974 = vsel %vm402, %v1970, %v1972
        %1978 = vrot.lane.b32.xlu0 %v1964, 110
        %v1979 = vpop.permute.xlu0 %1978
        %1980 = vrot.lane.b32.xlu0 %v1965, 110
        %v1981 = vpop.permute.xlu0 %1980
        %1982 = vrot.lane.b32.xlu0 %v1966, 110
        %v1983 = vpop.permute.xlu0 %1982
        %1984 = vrot.lane.b32.xlu0 %v1968, 110
        %v1985 = vpop.permute.xlu0 %1984
        %1986 = vrot.lane.b32.xlu0 %v1973, 110
        %v1987 = vpop.permute.xlu0 %1986
        %1988 = vrot.lane.b32.xlu0 %v1974, 110
        %v1989 = vpop.permute.xlu0 %1988
        %v1990 = vsel %vm673, %v1979, %v1981
        %v1991 = vsel %vm673, %v1981, %v1983
        %v1992 = vsel %vm673, %v1985, %v1987
        %v1993 = vsel %vm673, %v1987, %v1989
        %1998 = vmatprep.subr.mxu0 0.0
        %1999 = vmatpush1.msra.mxu0 0.0
        %2000 = vmatprep.subr.mxu0 0.0
        %2001 = vmatpush1.msra.mxu0 0.0
        %2002 = vmatprep.subr.mxu0 0.0
        %2003 = vmatpush1.msra.mxu0 0.0
        %2004 = vmatprep.subr.mxu0 0.0
        %2005 = vmatpush1.msra.mxu0 0.0
        %2006 = vmatprep.subr.mxu0 0.0
        %2007 = vmatpush1.msra.mxu0 0.0
        %2008 = vmatprep.subr.mxu0 0.0
        %2009 = vmatpush1.msra.mxu0 0.0
        %2010 = vmatprep.subr.mxu0 0.0
        %2011 = vmatpush1.msra.mxu0 0.0
        %2012 = vmatprep.subr.mxu0 0.0
        %2013 = vmatpush1.msra.mxu0 0.0
        %2014 = vmatprep.subr.mxu0 0.0
        %2015 = vmatpush1.msra.mxu0 0.0
        %2016 = vmatprep.subr.mxu0 0.0
        %2017 = vmatpush1.msra.mxu0 0.0
        %2018 = vmatprep.subr.mxu0 0.0
        %2019 = vmatpush1.msra.mxu0 0.0
        %2020 = vmatprep.subr.mxu0 0.0
        %2021 = vmatpush1.msra.mxu0 0.0
        %2022 = vmatprep.subr.mxu0 %v1593
        %2023 = vmatpush1.msra.mxu0 %v1592
        %2024 = vmatprep.subr.mxu0 %v1591
        %2025 = vmatpush1.msra.mxu0 %v1590
        %2026 = vmatprep.subr.mxu0 %v1993
        %2027 = vmatpush1.msra.mxu0 %v1992
        %2028 = vmatprep.subr.mxu0 %v1991
        %2029 = vmatpush1.msra.mxu0 %v1990
        %2030 = vmatprep.subr.mxu0 0.0
        %2031 = vmatpush2.msra.mxu0 0.0
        %2032 = vmatprep.subr.mxu0 0.0
        %2033 = vmatpush2.msra.mxu0 0.0
        %2034 = vmatprep.subr.mxu0 0.0
        %2035 = vmatpush2.msra.mxu0 0.0
        %2036 = vmatprep.subr.mxu0 0.0
        %2037 = vmatpush2.msra.mxu0 0.0
        %2038 = vmatprep.subr.mxu0 0.0
        %2039 = vmatpush2.msra.mxu0 0.0
        %2040 = vmatprep.subr.mxu0 0.0
        %2041 = vmatpush2.msra.mxu0 0.0
        %2042 = vmatprep.subr.mxu0 0.0
        %2043 = vmatpush2.msra.mxu0 0.0
        %2044 = vmatprep.subr.mxu0 0.0
        %2045 = vmatpush2.msra.mxu0 0.0
        %2046 = vmatprep.subr.mxu0 0.0
        %2047 = vmatpush2.msra.mxu0 0.0
        %2048 = vmatprep.subr.mxu0 0.0
        %2049 = vmatpush2.msra.mxu0 0.0
        %2050 = vmatprep.subr.mxu0 0.0
        %2051 = vmatpush2.msra.mxu0 0.0
        %2052 = vmatprep.subr.mxu0 0.0
        %2053 = vmatpush2.msra.mxu0 0.0
        %2054 = vmatprep.subr.mxu0 0.0
        %2055 = vmatpush2.msra.mxu0 0.0
        %2056 = vmatprep.subr.mxu0 0.0
        %2057 = vmatpush2.msra.mxu0 0.0
        %2058 = vmatprep.subr.mxu0 0.0
        %2059 = vmatpush2.msra.mxu0 0.0
        %2060 = vmatprep.subr.mxu0 0.0
        %2061 = vmatpush2.msra.mxu0 0.0
        %2062 = vmatprep.mubr.f32.mxu0 0.0
        %2063 = vmatmul.mubr.f32.gmra.mxu0 %v1814
        %v2064 = vpop.f32.mrf.mxu0
        %v2065 = vadd.f32 %v1218, %v2064
        %v2066 = vpop.f32.mrf.mxu0
        %v2067 = vadd.f32 %v1218, %v2066
        %2068 = vdwg.mxu0
        %s2069 = scalar_lea.vmem %s320, 112
        %2070 = vst [vmem:[%s2069] sm:$0xff] %v2065
        %2071 = vst [vmem:[%s2069 + $0x8] sm:$0xff] %v2067
        %2072 = vmatprep.subr.mxu0 0.0
        %2073 = vmatpush1.msra.mxu0 0.0
        %2074 = vmatprep.subr.mxu0 0.0
        %2075 = vmatpush1.msra.mxu0 0.0
        %2076 = vmatprep.subr.mxu0 0.0
        %2077 = vmatpush1.msra.mxu0 0.0
        %2078 = vmatprep.subr.mxu0 0.0
        %2079 = vmatpush1.msra.mxu0 0.0
        %2080 = vmatprep.subr.mxu0 0.0
        %2081 = vmatpush1.msra.mxu0 0.0
        %2082 = vmatprep.subr.mxu0 0.0
        %2083 = vmatpush1.msra.mxu0 0.0
        %2084 = vmatprep.subr.mxu0 0.0
        %2085 = vmatpush1.msra.mxu0 0.0
        %2086 = vmatprep.subr.mxu0 0.0
        %2087 = vmatpush1.msra.mxu0 0.0
        %2088 = vmatprep.subr.mxu0 0.0
        %2089 = vmatpush1.msra.mxu0 0.0
        %2090 = vmatprep.subr.mxu0 0.0
        %2091 = vmatpush1.msra.mxu0 0.0
        %2092 = vmatprep.subr.mxu0 0.0
        %2093 = vmatpush1.msra.mxu0 0.0
        %2094 = vmatprep.subr.mxu0 0.0
        %2095 = vmatpush1.msra.mxu0 0.0
        %2096 = vmatprep.subr.mxu0 %v1250
        %2097 = vmatpush1.msra.mxu0 %v1249
        %2098 = vmatprep.subr.mxu0 %v1248
        %2099 = vmatpush1.msra.mxu0 %v1247
        %2100 = vmatprep.subr.mxu0 %v1715
        %2101 = vmatpush1.msra.mxu0 %v1714
        %2102 = vmatprep.subr.mxu0 %v1713
        %2103 = vmatpush1.msra.mxu0 %v1712
        %2104 = vmatprep.subr.mxu0 0.0
        %2105 = vmatpush2.msra.mxu0 0.0
        %2106 = vmatprep.subr.mxu0 0.0
        %2107 = vmatpush2.msra.mxu0 0.0
        %2108 = vmatprep.subr.mxu0 0.0
        %2109 = vmatpush2.msra.mxu0 0.0
        %2110 = vmatprep.subr.mxu0 0.0
        %2111 = vmatpush2.msra.mxu0 0.0
        %2112 = vmatprep.subr.mxu0 0.0
        %2113 = vmatpush2.msra.mxu0 0.0
        %2114 = vmatprep.subr.mxu0 0.0
        %2115 = vmatpush2.msra.mxu0 0.0
        %2116 = vmatprep.subr.mxu0 0.0
        %2117 = vmatpush2.msra.mxu0 0.0
        %2118 = vmatprep.subr.mxu0 0.0
        %2119 = vmatpush2.msra.mxu0 0.0
        %2120 = vmatprep.subr.mxu0 0.0
        %2121 = vmatpush2.msra.mxu0 0.0
        %2122 = vmatprep.subr.mxu0 0.0
        %2123 = vmatpush2.msra.mxu0 0.0
        %2124 = vmatprep.subr.mxu0 0.0
        %2125 = vmatpush2.msra.mxu0 0.0
        %2126 = vmatprep.subr.mxu0 0.0
        %2127 = vmatpush2.msra.mxu0 0.0
        %2128 = vmatprep.subr.mxu0 0.0
        %2129 = vmatpush2.msra.mxu0 0.0
        %2130 = vmatprep.subr.mxu0 0.0
        %2131 = vmatpush2.msra.mxu0 0.0
        %2132 = vmatprep.subr.mxu0 0.0
        %2133 = vmatpush2.msra.mxu0 0.0
        %2134 = vmatprep.subr.mxu0 0.0
        %2135 = vmatpush2.msra.mxu0 0.0
        %2136 = vmatprep.mubr.f32.mxu0 0.0
        %2137 = vmatmul.mubr.f32.gmra.mxu0 %v1264
        %v2138 = vpop.f32.mrf.mxu0
        %v2139 = vadd.f32 %v1218, %v2138
        %v2140 = vpop.f32.mrf.mxu0
        %v2141 = vadd.f32 %v1218, %v2140
        %2142 = vdwg.mxu0
        %s2143 = scalar_lea.vmem %s320, 128
        %2144 = vst [vmem:[%s2143] sm:$0xff] %v2139
        %2145 = vst [vmem:[%s2143 + $0x8] sm:$0xff] %v2141
        %2146 = vmatprep.subr.mxu0 0.0
        %2147 = vmatpush1.msra.mxu0 0.0
        %2148 = vmatprep.subr.mxu0 0.0
        %2149 = vmatpush1.msra.mxu0 0.0
        %2150 = vmatprep.subr.mxu0 0.0
        %2151 = vmatpush1.msra.mxu0 0.0
        %2152 = vmatprep.subr.mxu0 0.0
        %2153 = vmatpush1.msra.mxu0 0.0
        %2154 = vmatprep.subr.mxu0 0.0
        %2155 = vmatpush1.msra.mxu0 0.0
        %2156 = vmatprep.subr.mxu0 0.0
        %2157 = vmatpush1.msra.mxu0 0.0
        %2158 = vmatprep.subr.mxu0 0.0
        %2159 = vmatpush1.msra.mxu0 0.0
        %2160 = vmatprep.subr.mxu0 0.0
        %2161 = vmatpush1.msra.mxu0 0.0
        %2162 = vmatprep.subr.mxu0 0.0
        %2163 = vmatpush1.msra.mxu0 0.0
        %2164 = vmatprep.subr.mxu0 0.0
        %2165 = vmatpush1.msra.mxu0 0.0
        %2166 = vmatprep.subr.mxu0 0.0
        %2167 = vmatpush1.msra.mxu0 0.0
        %2168 = vmatprep.subr.mxu0 0.0
        %2169 = vmatpush1.msra.mxu0 0.0
        %2170 = vmatprep.subr.mxu0 %v1248
        %2171 = vmatpush1.msra.mxu0 %v1247
        %2172 = vmatprep.subr.mxu0 %v1372
        %2173 = vmatpush1.msra.mxu0 %v1371
        %2174 = vmatprep.subr.mxu0 %v1713
        %2175 = vmatpush1.msra.mxu0 %v1712
        %2176 = vmatprep.subr.mxu0 %v1810
        %2177 = vmatpush1.msra.mxu0 %v1809
        %2178 = vmatprep.subr.mxu0 0.0
        %2179 = vmatpush2.msra.mxu0 0.0
        %2180 = vmatprep.subr.mxu0 0.0
        %2181 = vmatpush2.msra.mxu0 0.0
        %2182 = vmatprep.subr.mxu0 0.0
        %2183 = vmatpush2.msra.mxu0 0.0
        %2184 = vmatprep.subr.mxu0 0.0
        %2185 = vmatpush2.msra.mxu0 0.0
        %2186 = vmatprep.subr.mxu0 0.0
        %2187 = vmatpush2.msra.mxu0 0.0
        %2188 = vmatprep.subr.mxu0 0.0
        %2189 = vmatpush2.msra.mxu0 0.0
        %2190 = vmatprep.subr.mxu0 0.0
        %2191 = vmatpush2.msra.mxu0 0.0
        %2192 = vmatprep.subr.mxu0 0.0
        %2193 = vmatpush2.msra.mxu0 0.0
        %2194 = vmatprep.subr.mxu0 0.0
        %2195 = vmatpush2.msra.mxu0 0.0
        %2196 = vmatprep.subr.mxu0 0.0
        %2197 = vmatpush2.msra.mxu0 0.0
        %2198 = vmatprep.subr.mxu0 0.0
        %2199 = vmatpush2.msra.mxu0 0.0
        %2200 = vmatprep.subr.mxu0 0.0
        %2201 = vmatpush2.msra.mxu0 0.0
        %2202 = vmatprep.subr.mxu0 0.0
        %2203 = vmatpush2.msra.mxu0 0.0
        %2204 = vmatprep.subr.mxu0 0.0
        %2205 = vmatpush2.msra.mxu0 0.0
        %2206 = vmatprep.subr.mxu0 0.0
        %2207 = vmatpush2.msra.mxu0 0.0
        %2208 = vmatprep.subr.mxu0 0.0
        %2209 = vmatpush2.msra.mxu0 0.0
        %2210 = vmatprep.mubr.f32.mxu0 0.0
        %2211 = vmatmul.mubr.f32.gmra.mxu0 %v1380
        %v2212 = vpop.f32.mrf.mxu0
        %v2213 = vadd.f32 %v1218, %v2212
        %v2214 = vpop.f32.mrf.mxu0
        %v2215 = vadd.f32 %v1218, %v2214
        %2216 = vdwg.mxu0
        %s2217 = scalar_lea.vmem %s320, 144
        %2218 = vst [vmem:[%s2217] sm:$0xff] %v2213
        %2219 = vst [vmem:[%s2217 + $0x8] sm:$0xff] %v2215
        %2220 = vmatprep.subr.mxu0 0.0
        %2221 = vmatpush1.msra.mxu0 0.0
        %2222 = vmatprep.subr.mxu0 0.0
        %2223 = vmatpush1.msra.mxu0 0.0
        %2224 = vmatprep.subr.mxu0 0.0
        %2225 = vmatpush1.msra.mxu0 0.0
        %2226 = vmatprep.subr.mxu0 0.0
        %2227 = vmatpush1.msra.mxu0 0.0
        %2228 = vmatprep.subr.mxu0 0.0
        %2229 = vmatpush1.msra.mxu0 0.0
        %2230 = vmatprep.subr.mxu0 0.0
        %2231 = vmatpush1.msra.mxu0 0.0
        %2232 = vmatprep.subr.mxu0 0.0
        %2233 = vmatpush1.msra.mxu0 0.0
        %2234 = vmatprep.subr.mxu0 0.0
        %2235 = vmatpush1.msra.mxu0 0.0
        %2236 = vmatprep.subr.mxu0 0.0
        %2237 = vmatpush1.msra.mxu0 0.0
        %2238 = vmatprep.subr.mxu0 0.0
        %2239 = vmatpush1.msra.mxu0 0.0
        %2240 = vmatprep.subr.mxu0 0.0
        %2241 = vmatpush1.msra.mxu0 0.0
        %2242 = vmatprep.subr.mxu0 0.0
        %2243 = vmatpush1.msra.mxu0 0.0
        %2244 = vmatprep.subr.mxu0 %v1248
        %2245 = vmatpush1.msra.mxu0 %v1247
        %2246 = vmatprep.subr.mxu0 %v1372
        %2247 = vmatpush1.msra.mxu0 %v1371
        %2248 = vmatprep.subr.mxu0 %v1713
        %2249 = vmatpush1.msra.mxu0 %v1712
        %2250 = vmatprep.subr.mxu0 %v1810
        %2251 = vmatpush1.msra.mxu0 %v1809
        %2252 = vmatprep.subr.mxu0 0.0
        %2253 = vmatpush2.msra.mxu0 0.0
        %2254 = vmatprep.subr.mxu0 0.0
        %2255 = vmatpush2.msra.mxu0 0.0
        %2256 = vmatprep.subr.mxu0 0.0
        %2257 = vmatpush2.msra.mxu0 0.0
        %2258 = vmatprep.subr.mxu0 0.0
        %2259 = vmatpush2.msra.mxu0 0.0
        %2260 = vmatprep.subr.mxu0 0.0
        %2261 = vmatpush2.msra.mxu0 0.0
        %2262 = vmatprep.subr.mxu0 0.0
        %2263 = vmatpush2.msra.mxu0 0.0
        %2264 = vmatprep.subr.mxu0 0.0
        %2265 = vmatpush2.msra.mxu0 0.0
        %2266 = vmatprep.subr.mxu0 0.0
        %2267 = vmatpush2.msra.mxu0 0.0
        %2268 = vmatprep.subr.mxu0 0.0
        %2269 = vmatpush2.msra.mxu0 0.0
        %2270 = vmatprep.subr.mxu0 0.0
        %2271 = vmatpush2.msra.mxu0 0.0
        %2272 = vmatprep.subr.mxu0 0.0
        %2273 = vmatpush2.msra.mxu0 0.0
        %2274 = vmatprep.subr.mxu0 0.0
        %2275 = vmatpush2.msra.mxu0 0.0
        %2276 = vmatprep.subr.mxu0 0.0
        %2277 = vmatpush2.msra.mxu0 0.0
        %2278 = vmatprep.subr.mxu0 0.0
        %2279 = vmatpush2.msra.mxu0 0.0
        %2280 = vmatprep.subr.mxu0 0.0
        %2281 = vmatpush2.msra.mxu0 0.0
        %2282 = vmatprep.subr.mxu0 0.0
        %2283 = vmatpush2.msra.mxu0 0.0
        %2284 = vmatprep.mubr.f32.mxu0 0.0
        %2285 = vmatmul.mubr.f32.gmra.mxu0 %v1264
        %v2286 = vpop.f32.mrf.mxu0
        %v2287 = vadd.f32 %v1218, %v2286
        %v2288 = vpop.f32.mrf.mxu0
        %v2289 = vadd.f32 %v1218, %v2288
        %2290 = vdwg.mxu0
        %s2291 = scalar_lea.vmem %s320, 160
        %2292 = vst [vmem:[%s2291] sm:$0xff] %v2287
        %2293 = vst [vmem:[%s2291 + $0x8] sm:$0xff] %v2289
        %2294 = vmatprep.subr.mxu0 0.0
        %2295 = vmatpush1.msra.mxu0 0.0
        %2296 = vmatprep.subr.mxu0 0.0
        %2297 = vmatpush1.msra.mxu0 0.0
        %2298 = vmatprep.subr.mxu0 0.0
        %2299 = vmatpush1.msra.mxu0 0.0
        %2300 = vmatprep.subr.mxu0 0.0
        %2301 = vmatpush1.msra.mxu0 0.0
        %2302 = vmatprep.subr.mxu0 0.0
        %2303 = vmatpush1.msra.mxu0 0.0
        %2304 = vmatprep.subr.mxu0 0.0
        %2305 = vmatpush1.msra.mxu0 0.0
        %2306 = vmatprep.subr.mxu0 0.0
        %2307 = vmatpush1.msra.mxu0 0.0
        %2308 = vmatprep.subr.mxu0 0.0
        %2309 = vmatpush1.msra.mxu0 0.0
        %2310 = vmatprep.subr.mxu0 0.0
        %2311 = vmatpush1.msra.mxu0 0.0
        %2312 = vmatprep.subr.mxu0 0.0
        %2313 = vmatpush1.msra.mxu0 0.0
        %2314 = vmatprep.subr.mxu0 0.0
        %2315 = vmatpush1.msra.mxu0 0.0
        %2316 = vmatprep.subr.mxu0 0.0
        %2317 = vmatpush1.msra.mxu0 0.0
        %2318 = vmatprep.subr.mxu0 %v1593
        %2319 = vmatpush1.msra.mxu0 %v1592
        %2320 = vmatprep.subr.mxu0 %v1591
        %2321 = vmatpush1.msra.mxu0 %v1590
        %2322 = vmatprep.subr.mxu0 %v1993
        %2323 = vmatpush1.msra.mxu0 %v1992
        %2324 = vmatprep.subr.mxu0 %v1991
        %2325 = vmatpush1.msra.mxu0 %v1990
        %2326 = vmatprep.subr.mxu0 0.0
        %2327 = vmatpush2.msra.mxu0 0.0
        %2328 = vmatprep.subr.mxu0 0.0
        %2329 = vmatpush2.msra.mxu0 0.0
        %2330 = vmatprep.subr.mxu0 0.0
        %2331 = vmatpush2.msra.mxu0 0.0
        %2332 = vmatprep.subr.mxu0 0.0
        %2333 = vmatpush2.msra.mxu0 0.0
        %2334 = vmatprep.subr.mxu0 0.0
        %2335 = vmatpush2.msra.mxu0 0.0
        %2336 = vmatprep.subr.mxu0 0.0
        %2337 = vmatpush2.msra.mxu0 0.0
        %2338 = vmatprep.subr.mxu0 0.0
        %2339 = vmatpush2.msra.mxu0 0.0
        %2340 = vmatprep.subr.mxu0 0.0
        %2341 = vmatpush2.msra.mxu0 0.0
        %2342 = vmatprep.subr.mxu0 0.0
        %2343 = vmatpush2.msra.mxu0 0.0
        %2344 = vmatprep.subr.mxu0 0.0
        %2345 = vmatpush2.msra.mxu0 0.0
        %2346 = vmatprep.subr.mxu0 0.0
        %2347 = vmatpush2.msra.mxu0 0.0
        %2348 = vmatprep.subr.mxu0 0.0
        %2349 = vmatpush2.msra.mxu0 0.0
        %2350 = vmatprep.subr.mxu0 0.0
        %2351 = vmatpush2.msra.mxu0 0.0
        %2352 = vmatprep.subr.mxu0 0.0
        %2353 = vmatpush2.msra.mxu0 0.0
        %2354 = vmatprep.subr.mxu0 0.0
        %2355 = vmatpush2.msra.mxu0 0.0
        %2356 = vmatprep.subr.mxu0 0.0
        %2357 = vmatpush2.msra.mxu0 0.0
        %2358 = vmatprep.mubr.f32.mxu0 0.0
        %2359 = vmatmul.mubr.f32.gmra.mxu0 %v1380
        %v2360 = vpop.f32.mrf.mxu0
        %v2361 = vadd.f32 %v1218, %v2360
        %v2362 = vpop.f32.mrf.mxu0
        %v2363 = vadd.f32 %v1218, %v2362
        %2364 = vdwg.mxu0
        %s2365 = scalar_lea.vmem %s320, 176
        %2366 = vst [vmem:[%s2365] sm:$0xff] %v2361
        %2367 = vst [vmem:[%s2365 + $0x8] sm:$0xff] %v2363
        %v2368 = vmul.f32 %v1137, %v777
        %v2369 = vmul.f32 %v1133, %v781
        %v2370 = vmul.f32 %v1138, %v779
        %v2371 = vmul.f32 %v1149, %v799
        %v2372 = vmul.f32 %v1145, %v802
        %v2373 = vmul.f32 %v1150, %v801
        %2377 = vrot.lane.b32.xlu0 %v2371, 1
        %v2378 = vpop.permute.xlu0 %2377
        %2379 = vrot.lane.b32.xlu0 %v2372, 1
        %v2380 = vpop.permute.xlu0 %2379
        %2381 = vrot.lane.b32.xlu0 %v2373, 1
        %v2382 = vpop.permute.xlu0 %2381
        %v2383 = vsel %vm402, %v2378, %v2380
        %v2384 = vsel %vm402, %v2380, %v2382
        %2385 = vrot.lane.b32.xlu0 %v1680, 16
        %v2386 = vpop.permute.xlu0 %2385
        %2387 = vrot.lane.b32.xlu0 %v1681, 16
        %v2388 = vpop.permute.xlu0 %2387
        %2389 = vrot.lane.b32.xlu0 %v1682, 16
        %v2390 = vpop.permute.xlu0 %2389
        %v2391 = vsel %vm380, %v2386, %v2388
        %v2392 = vsel %vm380, %v2388, %v2390
        %2393 = vrot.lane.b32.xlu0 %v1683, 17
        %v2394 = vpop.permute.xlu0 %2393
        %2395 = vrot.lane.b32.xlu0 %v1684, 17
        %v2396 = vpop.permute.xlu0 %2395
        %2397 = vrot.lane.b32.xlu0 %v1685, 17
        %v2398 = vpop.permute.xlu0 %2397
        %v2399 = vsel %vm338, %v2394, %v2396
        %v2400 = vsel %vm338, %v2396, %v2398
        %2404 = vrot.lane.b32.xlu0 %v2368, 95
        %v2405 = vpop.permute.xlu0 %2404
        %2406 = vrot.lane.b32.xlu0 %v2369, 95
        %v2407 = vpop.permute.xlu0 %2406
        %2408 = vrot.lane.b32.xlu0 %v2370, 95
        %v2409 = vpop.permute.xlu0 %2408
        %2410 = vrot.lane.b32.xlu0 %v2378, 95
        %v2411 = vpop.permute.xlu0 %2410
        %2412 = vrot.lane.b32.xlu0 %v2383, 95
        %v2413 = vpop.permute.xlu0 %2412
        %2414 = vrot.lane.b32.xlu0 %v2384, 95
        %v2415 = vpop.permute.xlu0 %2414
        %2416 = vrot.lane.b32.xlu0 %v2386, 95
        %v2417 = vpop.permute.xlu0 %2416
        %2418 = vrot.lane.b32.xlu0 %v2391, 95
        %v2419 = vpop.permute.xlu0 %2418
        %2420 = vrot.lane.b32.xlu0 %v2392, 95
        %v2421 = vpop.permute.xlu0 %2420
        %2422 = vrot.lane.b32.xlu0 %v2394, 95
        %v2423 = vpop.permute.xlu0 %2422
        %2424 = vrot.lane.b32.xlu0 %v2399, 95
        %v2425 = vpop.permute.xlu0 %2424
        %2426 = vrot.lane.b32.xlu0 %v2400, 95
        %v2427 = vpop.permute.xlu0 %2426
        %v2428 = vsel %vm863, %v2405, %v2407
        %v2429 = vsel %vm863, %v2407, %v2409
        %v2430 = vsel %vm863, %v2411, %v2413
        %v2431 = vsel %vm863, %v2413, %v2415
        %v2432 = vsel %vm863, %v2417, %v2419
        %v2433 = vsel %vm863, %v2419, %v2421
        %v2434 = vsel %vm863, %v2423, %v2425
        %v2435 = vsel %vm863, %v2425, %v2427
        %2444 = vmatprep.subr.mxu0 0.0
        %2445 = vmatpush1.msra.mxu0 0.0
        %2446 = vmatprep.subr.mxu0 0.0
        %2447 = vmatpush1.msra.mxu0 0.0
        %2448 = vmatprep.subr.mxu0 0.0
        %2449 = vmatpush1.msra.mxu0 0.0
        %2450 = vmatprep.subr.mxu0 0.0
        %2451 = vmatpush1.msra.mxu0 0.0
        %2452 = vmatprep.subr.mxu0 0.0
        %2453 = vmatpush1.msra.mxu0 0.0
        %2454 = vmatprep.subr.mxu0 0.0
        %2455 = vmatpush1.msra.mxu0 0.0
        %2456 = vmatprep.subr.mxu0 0.0
        %2457 = vmatpush1.msra.mxu0 0.0
        %2458 = vmatprep.subr.mxu0 0.0
        %2459 = vmatpush1.msra.mxu0 0.0
        %2460 = vmatprep.subr.mxu0 0.0
        %2461 = vmatpush1.msra.mxu0 0.0
        %2462 = vmatprep.subr.mxu0 0.0
        %2463 = vmatpush1.msra.mxu0 0.0
        %2464 = vmatprep.subr.mxu0 0.0
        %2465 = vmatpush1.msra.mxu0 0.0
        %2466 = vmatprep.subr.mxu0 0.0
        %2467 = vmatpush1.msra.mxu0 0.0
        %2468 = vmatprep.subr.mxu0 %v2435
        %2469 = vmatpush1.msra.mxu0 %v2434
        %2470 = vmatprep.subr.mxu0 %v2433
        %2471 = vmatpush1.msra.mxu0 %v2432
        %2472 = vmatprep.subr.mxu0 %v2431
        %2473 = vmatpush1.msra.mxu0 %v2430
        %2474 = vmatprep.subr.mxu0 %v2429
        %2475 = vmatpush1.msra.mxu0 %v2428
        %2476 = vmatprep.subr.mxu0 0.0
        %2477 = vmatpush2.msra.mxu0 0.0
        %2478 = vmatprep.subr.mxu0 0.0
        %2479 = vmatpush2.msra.mxu0 0.0
        %2480 = vmatprep.subr.mxu0 0.0
        %2481 = vmatpush2.msra.mxu0 0.0
        %2482 = vmatprep.subr.mxu0 0.0
        %2483 = vmatpush2.msra.mxu0 0.0
        %2484 = vmatprep.subr.mxu0 0.0
        %2485 = vmatpush2.msra.mxu0 0.0
        %2486 = vmatprep.subr.mxu0 0.0
        %2487 = vmatpush2.msra.mxu0 0.0
        %2488 = vmatprep.subr.mxu0 0.0
        %2489 = vmatpush2.msra.mxu0 0.0
        %2490 = vmatprep.subr.mxu0 0.0
        %2491 = vmatpush2.msra.mxu0 0.0
        %2492 = vmatprep.subr.mxu0 0.0
        %2493 = vmatpush2.msra.mxu0 0.0
        %2494 = vmatprep.subr.mxu0 0.0
        %2495 = vmatpush2.msra.mxu0 0.0
        %2496 = vmatprep.subr.mxu0 0.0
        %2497 = vmatpush2.msra.mxu0 0.0
        %2498 = vmatprep.subr.mxu0 0.0
        %2499 = vmatpush2.msra.mxu0 0.0
        %2500 = vmatprep.subr.mxu0 0.0
        %2501 = vmatpush2.msra.mxu0 0.0
        %2502 = vmatprep.subr.mxu0 0.0
        %2503 = vmatpush2.msra.mxu0 0.0
        %2504 = vmatprep.subr.mxu0 0.0
        %2505 = vmatpush2.msra.mxu0 0.0
        %2506 = vmatprep.subr.mxu0 0.0
        %2507 = vmatpush2.msra.mxu0 0.0
        %2508 = vmatprep.mubr.f32.mxu0 0.0
        %2509 = vmatmul.mubr.f32.gmra.mxu0 %v1721
        %v2510 = vpop.f32.mrf.mxu0
        %v2511 = vadd.f32 %v1218, %v2510
        %v2512 = vpop.f32.mrf.mxu0
        %v2513 = vadd.f32 %v1218, %v2512
        %2514 = vdwg.mxu0
        %s2515 = scalar_lea.vmem %s320, 192
        %2516 = vst [vmem:[%s2515] sm:$0xff] %v2511
        %2517 = vst [vmem:[%s2515 + $0x8] sm:$0xff] %v2513
        %v2518 = vmul.f32 %v1149, %v777
        %v2519 = vmul.f32 %v1145, %v781
        %v2520 = vmul.f32 %v1150, %v779
        %2521 = vrot.lane.b32.xlu0 %v1797, 16
        %v2522 = vpop.permute.xlu0 %2521
        %2523 = vrot.lane.b32.xlu0 %v1798, 16
        %v2524 = vpop.permute.xlu0 %2523
        %2525 = vrot.lane.b32.xlu0 %v1799, 16
        %v2526 = vpop.permute.xlu0 %2525
        %v2527 = vsel %vm380, %v2522, %v2524
        %v2528 = vsel %vm380, %v2524, %v2526
        %2532 = vrot.lane.b32.xlu0 %v2518, 95
        %v2533 = vpop.permute.xlu0 %2532
        %2534 = vrot.lane.b32.xlu0 %v2519, 95
        %v2535 = vpop.permute.xlu0 %2534
        %2536 = vrot.lane.b32.xlu0 %v2520, 95
        %v2537 = vpop.permute.xlu0 %2536
        %2538 = vrot.lane.b32.xlu0 %v2522, 95
        %v2539 = vpop.permute.xlu0 %2538
        %2540 = vrot.lane.b32.xlu0 %v2527, 95
        %v2541 = vpop.permute.xlu0 %2540
        %2542 = vrot.lane.b32.xlu0 %v2528, 95
        %v2543 = vpop.permute.xlu0 %2542
        %v2544 = vsel %vm863, %v2533, %v2535
        %v2545 = vsel %vm863, %v2535, %v2537
        %v2546 = vsel %vm863, %v2539, %v2541
        %v2547 = vsel %vm863, %v2541, %v2543
        %2552 = vmatprep.subr.mxu0 0.0
        %2553 = vmatpush1.msra.mxu0 0.0
        %2554 = vmatprep.subr.mxu0 0.0
        %2555 = vmatpush1.msra.mxu0 0.0
        %2556 = vmatprep.subr.mxu0 0.0
        %2557 = vmatpush1.msra.mxu0 0.0
        %2558 = vmatprep.subr.mxu0 0.0
        %2559 = vmatpush1.msra.mxu0 0.0
        %2560 = vmatprep.subr.mxu0 0.0
        %2561 = vmatpush1.msra.mxu0 0.0
        %2562 = vmatprep.subr.mxu0 0.0
        %2563 = vmatpush1.msra.mxu0 0.0
        %2564 = vmatprep.subr.mxu0 0.0
        %2565 = vmatpush1.msra.mxu0 0.0
        %2566 = vmatprep.subr.mxu0 0.0
        %2567 = vmatpush1.msra.mxu0 0.0
        %2568 = vmatprep.subr.mxu0 0.0
        %2569 = vmatpush1.msra.mxu0 0.0
        %2570 = vmatprep.subr.mxu0 0.0
        %2571 = vmatpush1.msra.mxu0 0.0
        %2572 = vmatprep.subr.mxu0 0.0
        %2573 = vmatpush1.msra.mxu0 0.0
        %2574 = vmatprep.subr.mxu0 0.0
        %2575 = vmatpush1.msra.mxu0 0.0
        %2576 = vmatprep.subr.mxu0 %v2433
        %2577 = vmatpush1.msra.mxu0 %v2432
        %2578 = vmatprep.subr.mxu0 %v2547
        %2579 = vmatpush1.msra.mxu0 %v2546
        %2580 = vmatprep.subr.mxu0 %v2429
        %2581 = vmatpush1.msra.mxu0 %v2428
        %2582 = vmatprep.subr.mxu0 %v2545
        %2583 = vmatpush1.msra.mxu0 %v2544
        %2584 = vmatprep.subr.mxu0 0.0
        %2585 = vmatpush2.msra.mxu0 0.0
        %2586 = vmatprep.subr.mxu0 0.0
        %2587 = vmatpush2.msra.mxu0 0.0
        %2588 = vmatprep.subr.mxu0 0.0
        %2589 = vmatpush2.msra.mxu0 0.0
        %2590 = vmatprep.subr.mxu0 0.0
        %2591 = vmatpush2.msra.mxu0 0.0
        %2592 = vmatprep.subr.mxu0 0.0
        %2593 = vmatpush2.msra.mxu0 0.0
        %2594 = vmatprep.subr.mxu0 0.0
        %2595 = vmatpush2.msra.mxu0 0.0
        %2596 = vmatprep.subr.mxu0 0.0
        %2597 = vmatpush2.msra.mxu0 0.0
        %2598 = vmatprep.subr.mxu0 0.0
        %2599 = vmatpush2.msra.mxu0 0.0
        %2600 = vmatprep.subr.mxu0 0.0
        %2601 = vmatpush2.msra.mxu0 0.0
        %2602 = vmatprep.subr.mxu0 0.0
        %2603 = vmatpush2.msra.mxu0 0.0
        %2604 = vmatprep.subr.mxu0 0.0
        %2605 = vmatpush2.msra.mxu0 0.0
        %2606 = vmatprep.subr.mxu0 0.0
        %2607 = vmatpush2.msra.mxu0 0.0
        %2608 = vmatprep.subr.mxu0 0.0
        %2609 = vmatpush2.msra.mxu0 0.0
        %2610 = vmatprep.subr.mxu0 0.0
        %2611 = vmatpush2.msra.mxu0 0.0
        %2612 = vmatprep.subr.mxu0 0.0
        %2613 = vmatpush2.msra.mxu0 0.0
        %2614 = vmatprep.subr.mxu0 0.0
        %2615 = vmatpush2.msra.mxu0 0.0
        %2616 = vmatprep.mubr.f32.mxu0 0.0
        %2617 = vmatmul.mubr.f32.gmra.mxu0 %v1814
        %v2618 = vpop.f32.mrf.mxu0
        %v2619 = vadd.f32 %v1218, %v2618
        %v2620 = vpop.f32.mrf.mxu0
        %v2621 = vadd.f32 %v1218, %v2620
        %2622 = vdwg.mxu0
        %s2623 = scalar_lea.vmem %s320, 208
        %2624 = vst [vmem:[%s2623] sm:$0xff] %v2619
        %2625 = vst [vmem:[%s2623 + $0x8] sm:$0xff] %v2621
        %2626 = vmatprep.subr.mxu0 0.0
        %2627 = vmatpush1.msra.mxu0 0.0
        %2628 = vmatprep.subr.mxu0 0.0
        %2629 = vmatpush1.msra.mxu0 0.0
        %2630 = vmatprep.subr.mxu0 0.0
        %2631 = vmatpush1.msra.mxu0 0.0
        %2632 = vmatprep.subr.mxu0 0.0
        %2633 = vmatpush1.msra.mxu0 0.0
        %2634 = vmatprep.subr.mxu0 0.0
        %2635 = vmatpush1.msra.mxu0 0.0
        %2636 = vmatprep.subr.mxu0 0.0
        %2637 = vmatpush1.msra.mxu0 0.0
        %2638 = vmatprep.subr.mxu0 0.0
        %2639 = vmatpush1.msra.mxu0 0.0
        %2640 = vmatprep.subr.mxu0 0.0
        %2641 = vmatpush1.msra.mxu0 0.0
        %2642 = vmatprep.subr.mxu0 0.0
        %2643 = vmatpush1.msra.mxu0 0.0
        %2644 = vmatprep.subr.mxu0 0.0
        %2645 = vmatpush1.msra.mxu0 0.0
        %2646 = vmatprep.subr.mxu0 0.0
        %2647 = vmatpush1.msra.mxu0 0.0
        %2648 = vmatprep.subr.mxu0 0.0
        %2649 = vmatpush1.msra.mxu0 0.0
        %2650 = vmatprep.subr.mxu0 %v2433
        %2651 = vmatpush1.msra.mxu0 %v2432
        %2652 = vmatprep.subr.mxu0 %v2547
        %2653 = vmatpush1.msra.mxu0 %v2546
        %2654 = vmatprep.subr.mxu0 %v2429
        %2655 = vmatpush1.msra.mxu0 %v2428
        %2656 = vmatprep.subr.mxu0 %v2545
        %2657 = vmatpush1.msra.mxu0 %v2544
        %2658 = vmatprep.subr.mxu0 0.0
        %2659 = vmatpush2.msra.mxu0 0.0
        %2660 = vmatprep.subr.mxu0 0.0
        %2661 = vmatpush2.msra.mxu0 0.0
        %2662 = vmatprep.subr.mxu0 0.0
        %2663 = vmatpush2.msra.mxu0 0.0
        %2664 = vmatprep.subr.mxu0 0.0
        %2665 = vmatpush2.msra.mxu0 0.0
        %2666 = vmatprep.subr.mxu0 0.0
        %2667 = vmatpush2.msra.mxu0 0.0
        %2668 = vmatprep.subr.mxu0 0.0
        %2669 = vmatpush2.msra.mxu0 0.0
        %2670 = vmatprep.subr.mxu0 0.0
        %2671 = vmatpush2.msra.mxu0 0.0
        %2672 = vmatprep.subr.mxu0 0.0
        %2673 = vmatpush2.msra.mxu0 0.0
        %2674 = vmatprep.subr.mxu0 0.0
        %2675 = vmatpush2.msra.mxu0 0.0
        %2676 = vmatprep.subr.mxu0 0.0
        %2677 = vmatpush2.msra.mxu0 0.0
        %2678 = vmatprep.subr.mxu0 0.0
        %2679 = vmatpush2.msra.mxu0 0.0
        %2680 = vmatprep.subr.mxu0 0.0
        %2681 = vmatpush2.msra.mxu0 0.0
        %2682 = vmatprep.subr.mxu0 0.0
        %2683 = vmatpush2.msra.mxu0 0.0
        %2684 = vmatprep.subr.mxu0 0.0
        %2685 = vmatpush2.msra.mxu0 0.0
        %2686 = vmatprep.subr.mxu0 0.0
        %2687 = vmatpush2.msra.mxu0 0.0
        %2688 = vmatprep.subr.mxu0 0.0
        %2689 = vmatpush2.msra.mxu0 0.0
        %2690 = vmatprep.mubr.f32.mxu0 0.0
        %2691 = vmatmul.mubr.f32.gmra.mxu0 %v1721
        %v2692 = vpop.f32.mrf.mxu0
        %v2693 = vadd.f32 %v1218, %v2692
        %v2694 = vpop.f32.mrf.mxu0
        %v2695 = vadd.f32 %v1218, %v2694
        %2696 = vdwg.mxu0
        %s2697 = scalar_lea.vmem %s320, 224
        %2698 = vst [vmem:[%s2697] sm:$0xff] %v2693
        %2699 = vst [vmem:[%s2697 + $0x8] sm:$0xff] %v2695
        %v2700 = vmul.f32 %v1137, %v967
        %v2701 = vmul.f32 %v1133, %v971
        %v2702 = vmul.f32 %v1138, %v969
        %2703 = vrot.lane.b32.xlu0 %v2518, 1
        %v2704 = vpop.permute.xlu0 %2703
        %2705 = vrot.lane.b32.xlu0 %v2519, 1
        %v2706 = vpop.permute.xlu0 %2705
        %2707 = vrot.lane.b32.xlu0 %v2520, 1
        %v2708 = vpop.permute.xlu0 %2707
        %v2709 = vsel %vm402, %v2704, %v2706
        %v2710 = vsel %vm402, %v2706, %v2708
        %2711 = vrot.lane.b32.xlu0 %v1964, 16
        %v2712 = vpop.permute.xlu0 %2711
        %2713 = vrot.lane.b32.xlu0 %v1965, 16
        %v2714 = vpop.permute.xlu0 %2713
        %2715 = vrot.lane.b32.xlu0 %v1966, 16
        %v2716 = vpop.permute.xlu0 %2715
        %v2717 = vsel %vm380, %v2712, %v2714
        %v2718 = vsel %vm380, %v2714, %v2716
        %2719 = vrot.lane.b32.xlu0 %v1797, 17
        %v2720 = vpop.permute.xlu0 %2719
        %2721 = vrot.lane.b32.xlu0 %v1798, 17
        %v2722 = vpop.permute.xlu0 %2721
        %2723 = vrot.lane.b32.xlu0 %v1799, 17
        %v2724 = vpop.permute.xlu0 %2723
        %v2725 = vsel %vm338, %v2720, %v2722
        %v2726 = vsel %vm338, %v2722, %v2724
        %2730 = vrot.lane.b32.xlu0 %v2700, 94
        %v2731 = vpop.permute.xlu0 %2730
        %2732 = vrot.lane.b32.xlu0 %v2701, 94
        %v2733 = vpop.permute.xlu0 %2732
        %2734 = vrot.lane.b32.xlu0 %v2702, 94
        %v2735 = vpop.permute.xlu0 %2734
        %2736 = vrot.lane.b32.xlu0 %v2704, 94
        %v2737 = vpop.permute.xlu0 %2736
        %2738 = vrot.lane.b32.xlu0 %v2709, 94
        %v2739 = vpop.permute.xlu0 %2738
        %2740 = vrot.lane.b32.xlu0 %v2710, 94
        %v2741 = vpop.permute.xlu0 %2740
        %2742 = vrot.lane.b32.xlu0 %v2712, 94
        %v2743 = vpop.permute.xlu0 %2742
        %2744 = vrot.lane.b32.xlu0 %v2717, 94
        %v2745 = vpop.permute.xlu0 %2744
        %2746 = vrot.lane.b32.xlu0 %v2718, 94
        %v2747 = vpop.permute.xlu0 %2746
        %2748 = vrot.lane.b32.xlu0 %v2720, 94
        %v2749 = vpop.permute.xlu0 %2748
        %2750 = vrot.lane.b32.xlu0 %v2725, 94
        %v2751 = vpop.permute.xlu0 %2750
        %2752 = vrot.lane.b32.xlu0 %v2726, 94
        %v2753 = vpop.permute.xlu0 %2752
        %v2754 = vsel %vm1029, %v2731, %v2733
        %v2755 = vsel %vm1029, %v2733, %v2735
        %v2756 = vsel %vm1029, %v2737, %v2739
        %v2757 = vsel %vm1029, %v2739, %v2741
        %v2758 = vsel %vm1029, %v2743, %v2745
        %v2759 = vsel %vm1029, %v2745, %v2747
        %v2760 = vsel %vm1029, %v2749, %v2751
        %v2761 = vsel %vm1029, %v2751, %v2753
        %2770 = vmatprep.subr.mxu0 0.0
        %2771 = vmatpush1.msra.mxu0 0.0
        %2772 = vmatprep.subr.mxu0 0.0
        %2773 = vmatpush1.msra.mxu0 0.0
        %2774 = vmatprep.subr.mxu0 0.0
        %2775 = vmatpush1.msra.mxu0 0.0
        %2776 = vmatprep.subr.mxu0 0.0
        %2777 = vmatpush1.msra.mxu0 0.0
        %2778 = vmatprep.subr.mxu0 0.0
        %2779 = vmatpush1.msra.mxu0 0.0
        %2780 = vmatprep.subr.mxu0 0.0
        %2781 = vmatpush1.msra.mxu0 0.0
        %2782 = vmatprep.subr.mxu0 0.0
        %2783 = vmatpush1.msra.mxu0 0.0
        %2784 = vmatprep.subr.mxu0 0.0
        %2785 = vmatpush1.msra.mxu0 0.0
        %2786 = vmatprep.subr.mxu0 0.0
        %2787 = vmatpush1.msra.mxu0 0.0
        %2788 = vmatprep.subr.mxu0 0.0
        %2789 = vmatpush1.msra.mxu0 0.0
        %2790 = vmatprep.subr.mxu0 0.0
        %2791 = vmatpush1.msra.mxu0 0.0
        %2792 = vmatprep.subr.mxu0 0.0
        %2793 = vmatpush1.msra.mxu0 0.0
        %2794 = vmatprep.subr.mxu0 %v2761
        %2795 = vmatpush1.msra.mxu0 %v2760
        %2796 = vmatprep.subr.mxu0 %v2759
        %2797 = vmatpush1.msra.mxu0 %v2758
        %2798 = vmatprep.subr.mxu0 %v2757
        %2799 = vmatpush1.msra.mxu0 %v2756
        %2800 = vmatprep.subr.mxu0 %v2755
        %2801 = vmatpush1.msra.mxu0 %v2754
        %2802 = vmatprep.subr.mxu0 0.0
        %2803 = vmatpush2.msra.mxu0 0.0
        %2804 = vmatprep.subr.mxu0 0.0
        %2805 = vmatpush2.msra.mxu0 0.0
        %2806 = vmatprep.subr.mxu0 0.0
        %2807 = vmatpush2.msra.mxu0 0.0
        %2808 = vmatprep.subr.mxu0 0.0
        %2809 = vmatpush2.msra.mxu0 0.0
        %2810 = vmatprep.subr.mxu0 0.0
        %2811 = vmatpush2.msra.mxu0 0.0
        %2812 = vmatprep.subr.mxu0 0.0
        %2813 = vmatpush2.msra.mxu0 0.0
        %2814 = vmatprep.subr.mxu0 0.0
        %2815 = vmatpush2.msra.mxu0 0.0
        %2816 = vmatprep.subr.mxu0 0.0
        %2817 = vmatpush2.msra.mxu0 0.0
        %2818 = vmatprep.subr.mxu0 0.0
        %2819 = vmatpush2.msra.mxu0 0.0
        %2820 = vmatprep.subr.mxu0 0.0
        %2821 = vmatpush2.msra.mxu0 0.0
        %2822 = vmatprep.subr.mxu0 0.0
        %2823 = vmatpush2.msra.mxu0 0.0
        %2824 = vmatprep.subr.mxu0 0.0
        %2825 = vmatpush2.msra.mxu0 0.0
        %2826 = vmatprep.subr.mxu0 0.0
        %2827 = vmatpush2.msra.mxu0 0.0
        %2828 = vmatprep.subr.mxu0 0.0
        %2829 = vmatpush2.msra.mxu0 0.0
        %2830 = vmatprep.subr.mxu0 0.0
        %2831 = vmatpush2.msra.mxu0 0.0
        %2832 = vmatprep.subr.mxu0 0.0
        %2833 = vmatpush2.msra.mxu0 0.0
        %2834 = vmatprep.mubr.f32.mxu0 0.0
        %2835 = vmatmul.mubr.f32.gmra.mxu0 %v1814
        %v2836 = vpop.f32.mrf.mxu0
        %v2837 = vadd.f32 %v1218, %v2836
        %v2838 = vpop.f32.mrf.mxu0
        %v2839 = vadd.f32 %v1218, %v2838
        %2840 = vdwg.mxu0
        %s2841 = scalar_lea.vmem %s320, 240
        %2842 = vst [vmem:[%s2841] sm:$0xff] %v2837
        %2843 = vst [vmem:[%s2841 + $0x8] sm:$0xff] %v2839
        %p2844 = scmp.lt.s32.totalorder %s20, 1
        %s2845 = scalar_select %p2844, %s20, 1
        %s2846 = smul.addr %s2845, 32
        %s2847 = smul.addr %s2846, 8
        %s2848 = scalar_lea.vmem %s6, %s2847
        // Predicated region
        $region65: #{_lambda_.1} parent=43 // pred_check
          %p2849 = pneg %p169
        $region66: #{_lambda_.1} parent=43 // pred_check_branch
          %2851 = sbr.rel (%p2849) target = $region68
        $region67: #{_lambda_.1} parent=43 // pred_region
          _
        $region68: #{_lambda_.1} parent=43 // pred_fallthru
          _
      $region44: #{_lambda_.1} parent=5 // pred_fallthru
        _
      %p2852 = scmp.le.s32.totalorder 2, %s15
      // Predicated region
      $region69: #{_lambda_.1} parent=5 // pred_check
        %p2853 = pneg %p2852
      $region70: #{_lambda_.1} parent=5 // pred_check_branch
        %2855 = sbr.rel (%p2853) target = $region72
      $region71: #{_lambda_.1} parent=5 // pred_region
        %s2856 = ssub.s32 %s15, 2
        // Predicated region
        $region73: #{_lambda_.1} parent=71 // pred_check
          %p2857 = pneg %p175
        $region74: #{_lambda_.1} parent=71 // pred_check_branch
          %2859 = sbr.rel (%p2857) target = $region76
        $region75: #{_lambda_.1} parent=71 // pred_region
          %p2860 = scmp.lt.s32.totalorder %s21, 1
          %s2861 = scalar_select %p2860, %s21, 1
          %s2862 = smul.addr %s2861, 32
          %s2863 = smul.addr %s2862, 8
          %s2864 = scalar_lea.vmem %s6, %s2863
        $region76: #{_lambda_.1} parent=71 // pred_fallthru
          _
      $region72: #{_lambda_.1} parent=5 // pred_fallthru
        _
    $region6: #{_lambda_.1} parent=1 // loop_footer
      %s19 = sadd.s32 1, %s15
    $region7: #{_lambda_.1} parent=1 // loop_footer_branch
      %14 = sbr.rel target = $region3
    $region8: #{_lambda_.1} parent=1 // loop_exit
      _
    %2865 = vsyncpa [#allocation3], 1
    %s2866 = scalar_lea.sflag [#allocation3], 1
    %2867 = vsyncpa %s2866, 1
    %2868 = vsyncpa [#allocation5], 1
    %2869 = vsyncpa [#allocation8], 1

</llo_original>
